<compile_context>
chip_gen: v7x
topology: tpu7x:2x2x1
jax: 0.10.0
libtpu: 0.0.40
codegen_flags: <defaults>
</compile_context>

<pallas_src>
import math
import functools

import jax
import jax.numpy as jnp
from jax import lax
from jax.experimental import pallas as pl
from jax.experimental.pallas import tpu as pltpu  # noqa: F401  (TPU backend)

# ----------------------------- configuration -------------------------------
CLASSES = ["Bar", "Position", "Pitch", "Duration"]
N_TOKENS = [6, 18, 18, 18]            # per-class vocab (incl. <PAD>/<MASK>)
EMB_SIZE = 256                        # self.emb_sizes = [256, 256, 256, 256]
CAT_SIZE = EMB_SIZE * len(CLASSES)    # 1024
TOTAL_VOCAB = sum(N_TOKENS)           # 60 (folded-table rows)
HIDDEN = 32                           # bertConfig.hidden_size (small demo)
NUM_HEADS = 4
HEAD_DIM = HIDDEN // NUM_HEADS        # 8
INTERMEDIATE = 64
NUM_LAYERS = 2
LN_EPS = 1e-5
ROPE_THETA = 10000.0

# ------------- packed-parameter blob row layout (static, width 32) ----------
EMB_ROWS = 64                                    # rows 0..59 table, 60 bias, 61..63 pad
LN_BASE = EMB_ROWS                               # 64
LN_ROWS = 8                                      # emb, (attn,mlp)*L, final, pad
ATTN_BASE = LN_BASE + LN_ROWS                    # 72
ATTN_ROWS = 4 * HIDDEN                           # Wq|Wk|Wv|Wo per layer (128 rows)
WO_MLP_BASE = ATTN_BASE + NUM_LAYERS * ATTN_ROWS          # 328
W32_ROWS = WO_MLP_BASE + NUM_LAYERS * INTERMEDIATE        # 456
ROW_EMB_LN = LN_BASE + 0
ROW_FINAL_LN = LN_BASE + 1 + 2 * NUM_LAYERS

BATCH = 2
SEQ = 8


# ------------------------------ small helpers ------------------------------
def _layer_norm(x, w):
    # LayerNorm, no bias (ModernBERT norm_bias=False); weight shape (1, H).
    mean = jnp.mean(x, axis=-1, keepdims=True)
    var = jnp.mean((x - mean) ** 2, axis=-1, keepdims=True)
    return (x - mean) * lax.rsqrt(var + LN_EPS) * w


def _erf_approx(x):
    # Abramowitz & Stegun 7.1.26 (max abs error ~1.5e-7) — built only from
    # exp/mul/add/where so it is guaranteed to lower in Mosaic.
    a1, a2, a3, a4, a5 = (0.254829592, -0.284496736, 1.421413741,
                          -1.453152027, 1.061405429)
    p = 0.3275911
    s = jnp.where(x >= 0.0, 1.0, -1.0)
    ax = jnp.abs(x)
    t = 1.0 / (1.0 + p * ax)
    poly = ((((a5 * t + a4) * t + a3) * t + a2) * t + a1) * t
    return s * (1.0 - poly * jnp.exp(-ax * ax))


def _gelu_exact(x):
    # ModernBERT default hidden_activation = exact GELU (erf form).
    return 0.5 * x * (1.0 + _erf_approx(x * (1.0 / math.sqrt(2.0))))


def _roll_lanes(x, shift):
    # Static roll along the last (lane) axis; equals jnp.roll(x, shift, -1).
    n = x.shape[-1]
    return jnp.concatenate([x[..., n - shift:], x[..., :n - shift]], axis=-1)


def _apply_rope(x, cos_f, sin_neg, sin_pos):
    # x: (BS, H), all heads at once.  The per-head rotate_half (within each
    # Dh=8 block) is expressed as two FULL-width lane rolls; cross-head
    # wrap-around contamination is zeroed because sin_neg is nonzero only on
    # the first half of each head and sin_pos only on the second half (the
    # rotate_half sign is folded into sin_neg).
    half = HEAD_DIM // 2
    x_fwd = _roll_lanes(x, HIDDEN - half)   # x_fwd[m] = x[(m + half) % H]
    x_bwd = _roll_lanes(x, half)            # x_bwd[m] = x[(m - half) % H]
    return x * cos_f + x_fwd * sin_neg + x_bwd * sin_pos


# ------------------------- fused forward kernel ----------------------------
def _fused_forward_kernel(ids_ref, bias_ref, rope_ref, w32_ref, w64_ref, out_ref):
    B, S, n_cls = ids_ref.shape
    BS = B * S

    # --- embeddings (pre-folded through in_linear) + embeddings LayerNorm ---
    ids = ids_ref[...].reshape(BS, n_cls)                    # offsets pre-added
    iota = lax.broadcasted_iota(jnp.int32, (BS, EMB_ROWS), 1)
    multihot = (iota == TOTAL_VOCAB).astype(jnp.float32)     # constant-1 col -> in_b row
    for c in range(n_cls):
        multihot = multihot + (ids[:, c:c + 1] == iota).astype(jnp.float32)
    x = jnp.dot(multihot, w32_ref[0:EMB_ROWS, :],
                preferred_element_type=jnp.float32)          # table + bias in one MXU op
    x = _layer_norm(x, w32_ref[ROW_EMB_LN:ROW_EMB_LN + 1, :])  # (BS, H)
    out_ref[0] = x.reshape(B, S, HIDDEN)

    # pre-tiled rope tables: (BS, H) each; rotate_half sign folded into sin_neg
    cos_f = rope_ref[0]
    sin_neg = rope_ref[1]
    sin_pos = rope_ref[2]
    bias = bias_ref[...]                                     # (B, 1, S): 0 keep / -1e9 mask

    for li in range(NUM_LAYERS):
        abase = ATTN_BASE + li * ATTN_ROWS
        wq = w32_ref[abase:abase + HIDDEN, :]                # score scale pre-folded
        wk = w32_ref[abase + HIDDEN:abase + 2 * HIDDEN, :]
        wv = w32_ref[abase + 2 * HIDDEN:abase + 3 * HIDDEN, :]
        wo = w32_ref[abase + 3 * HIDDEN:abase + 4 * HIDDEN, :]
        attn_ln = w32_ref[LN_BASE + 1 + 2 * li:LN_BASE + 2 + 2 * li, :]
        mlp_ln = w32_ref[LN_BASE + 2 + 2 * li:LN_BASE + 3 + 2 * li, :]

        # attn_norm is Identity on layer 0 (embeddings already normalized).
        xn = x if li == 0 else _layer_norm(x, attn_ln)

        q = jnp.dot(xn, wq, preferred_element_type=jnp.float32)   # (BS, H)
        k = jnp.dot(xn, wk, preferred_element_type=jnp.float32)
        v = jnp.dot(xn, wv, preferred_element_type=jnp.float32)

        # RoPE once, full width (all heads).
        q = _apply_rope(q, cos_f, sin_neg, sin_pos)
        k = _apply_rope(k, cos_f, sin_neg, sin_pos)

        q3 = q.reshape(B, S, HIDDEN)
        k3 = k.reshape(B, S, HIDDEN)
        v3 = v.reshape(B, S, HIDDEN)

        # Per-head scores/softmax/context (3-D einsums, batch dim = B), then
        # one concat + one full-width Wo matmul (no per-head accumulation).
        ctxs = []
        for h in range(NUM_HEADS):
            lo, hi = h * HEAD_DIM, (h + 1) * HEAD_DIM
            scores = jnp.einsum("bqd,bkd->bqk", q3[:, :, lo:hi], k3[:, :, lo:hi],
                                preferred_element_type=jnp.float32) + bias
            scores = scores - jnp.max(scores, axis=-1, keepdims=True)
            p = jnp.exp(scores)
            p = p * pl.reciprocal(jnp.sum(p, axis=-1, keepdims=True), approx=True)
            ctxs.append(jnp.einsum("bqk,bkd->bqd", p, v3[:, :, lo:hi],
                                   preferred_element_type=jnp.float32))
        ctx = jnp.concatenate(ctxs, axis=-1).reshape(BS, HIDDEN)
        attn_out = jnp.dot(ctx, wo, preferred_element_type=jnp.float32)

        h1 = x + attn_out                                     # residual

        # GeGLU MLP
        wbase = li * 2 * HIDDEN
        wi_in = w64_ref[wbase:wbase + HIDDEN, :]
        wi_gate = w64_ref[wbase + HIDDEN:wbase + 2 * HIDDEN, :]
        wo_mlp = w32_ref[WO_MLP_BASE + li * INTERMEDIATE:
                         WO_MLP_BASE + (li + 1) * INTERMEDIATE, :]

        h1n = _layer_norm(h1, mlp_ln)
        inp = jnp.dot(h1n, wi_in, preferred_element_type=jnp.float32)
        gate = jnp.dot(h1n, wi_gate, preferred_element_type=jnp.float32)
        act = _gelu_exact(inp) * gate
        x = h1 + jnp.dot(act, wo_mlp, preferred_element_type=jnp.float32)

        out_ref[1 + li] = x.reshape(B, S, HIDDEN)

    out_ref[NUM_LAYERS + 1] = _layer_norm(
        x, w32_ref[ROW_FINAL_LN:ROW_FINAL_LN + 1, :]).reshape(B, S, HIDDEN)


# ------------------------------- full model ---------------------------------
def rope_tables(B, S):
    """(3, B*S, H) pack: [cos, sin_neg, sin_pos], pre-tiled over heads & batch.

    sin_neg multiplies roll(x, -Dh/2) (the 'x2' half, sign folded in) and is
    zero on second halves; sin_pos multiplies roll(x, +Dh/2) (the 'x1' half)
    and is zero on first halves, so one full-width rotation serves all heads.
    """
    half = HEAD_DIM // 2
    pos = jnp.arange(S, dtype=jnp.float32)[:, None]                     # (S, 1)
    inv_freq = 1.0 / (ROPE_THETA ** (
        jnp.arange(0, HEAD_DIM, 2, dtype=jnp.float32) / HEAD_DIM))      # (Dh/2,)
    freqs = pos * inv_freq[None, :]                                     # (S, Dh/2)
    emb = jnp.concatenate([freqs, freqs], axis=-1)                      # (S, Dh)
    cos_h = jnp.cos(emb)
    sin_h = jnp.sin(emb)
    first = jnp.concatenate([jnp.ones((half,), jnp.float32),
                             jnp.zeros((half,), jnp.float32)])[None, :]  # (1, Dh)
    sin_neg_h = -sin_h * first
    sin_pos_h = sin_h * (1.0 - first)

    def tile_full(t):                      # (S, Dh) -> (B*S, H)
        return jnp.tile(jnp.tile(t, (1, NUM_HEADS)), (B, 1))

    return jnp.stack([tile_full(cos_h), tile_full(sin_neg_h), tile_full(sin_pos_h)],
                     axis=0)


def midi_modernbert_forward(prep, input_ids, attn_mask=None):
    B, S, _ = input_ids.shape
    if attn_mask is None:
        attn_mask = jnp.ones((B, S), jnp.float32)
    ids_off = input_ids.astype(jnp.int32) + prep["vocab_offsets"][None, None, :]
    bias = (attn_mask.astype(jnp.float32).reshape(B, 1, S) - 1.0) * 1e9
    rope_pack = rope_tables(B, S)

    out = pl.pallas_call(
        _fused_forward_kernel,
        out_shape=jax.ShapeDtypeStruct((NUM_LAYERS + 2, B, S, HIDDEN), jnp.float32),
    )(ids_off, bias, rope_pack, prep["w32"], prep["w64"])

    hidden_states = tuple(out[i] for i in range(NUM_LAYERS + 1))  # emb + each layer
    return {"last_hidden_state": out[NUM_LAYERS + 1], "hidden_states": hidden_states}


# --------------------------- deterministic params ---------------------------
def init_params(key):
    """Parameters in the original module's layout (tables + in_linear + encoder)."""
    keys = jax.random.split(key, 8 + 4 * NUM_LAYERS)
    std = 0.02
    p = {}
    p["emb_tables"] = [
        std * jax.random.normal(keys[i], (N_TOKENS[i], EMB_SIZE), jnp.float32)
        for i in range(len(CLASSES))
    ]
    p["in_linear_w"] = std * jax.random.normal(keys[4], (CAT_SIZE, HIDDEN), jnp.float32)
    p["in_linear_b"] = jnp.zeros((1, HIDDEN), jnp.float32)
    p["emb_ln_w"] = jnp.ones((1, HIDDEN), jnp.float32)
    layers = []
    for li in range(NUM_LAYERS):
        k0, k1, k2, k3 = keys[8 + 4 * li: 8 + 4 * (li + 1)]
        layers.append(dict(
            wqkv=std * jax.random.normal(k0, (HIDDEN, 3 * HIDDEN), jnp.float32),
            wo=std * jax.random.normal(k1, (HIDDEN, HIDDEN), jnp.float32),
            ln1=jnp.ones((1, HIDDEN), jnp.float32),
            ln2=jnp.ones((1, HIDDEN), jnp.float32),
            wi=std * jax.random.normal(k2, (HIDDEN, 2 * INTERMEDIATE), jnp.float32),
            wmo=std * jax.random.normal(k3, (INTERMEDIATE, HIDDEN), jnp.float32),
        ))
    p["layers"] = layers
    p["final_ln_w"] = jnp.ones((1, HIDDEN), jnp.float32)
    return p


def prepare_inference_params(p):
    """Fold embeddings through in_linear and pack everything into two blobs.

    folded_i = sqrt(EMB_SIZE) * E_i @ W_in[i*256:(i+1)*256]   (mathematically
    identical, removes the 1024-wide concat + in_linear matmul).  The 1/sqrt(Dh)
    attention scale is folded into Wq (RoPE is linear, so this commutes).
    """
    scale = math.sqrt(float(EMB_SIZE))
    folded, offsets, acc = [], [], 0
    for i in range(len(CLASSES)):
        w_slice = p["in_linear_w"][i * EMB_SIZE:(i + 1) * EMB_SIZE, :]   # (256, H)
        folded.append(scale * (p["emb_tables"][i] @ w_slice))            # (V_i, H)
        offsets.append(acc)
        acc += N_TOKENS[i]

    emb_rows = jnp.zeros((EMB_ROWS, HIDDEN), jnp.float32)
    emb_rows = emb_rows.at[:TOTAL_VOCAB].set(jnp.concatenate(folded, axis=0))
    emb_rows = emb_rows.at[TOTAL_VOCAB].set(p["in_linear_b"].reshape(HIDDEN))

    ln_rows = jnp.zeros((LN_ROWS, HIDDEN), jnp.float32)
    ln_rows = ln_rows.at[0].set(p["emb_ln_w"].reshape(HIDDEN))
    for li, lp in enumerate(p["layers"]):
        ln_rows = ln_rows.at[1 + 2 * li].set(lp["ln1"].reshape(HIDDEN))
        ln_rows = ln_rows.at[2 + 2 * li].set(lp["ln2"].reshape(HIDDEN))
    ln_rows = ln_rows.at[1 + 2 * NUM_LAYERS].set(p["final_ln_w"].reshape(HIDDEN))

    qk_scale = 1.0 / math.sqrt(float(HEAD_DIM))
    attn_blocks, wo_mlp_blocks, wi_blocks = [], [], []
    for lp in p["layers"]:
        wqkv = lp["wqkv"]
        attn_blocks += [wqkv[:, :HIDDEN] * qk_scale,          # Wq (scale folded)
                        wqkv[:, HIDDEN:2 * HIDDEN],           # Wk
                        wqkv[:, 2 * HIDDEN:],                 # Wv
                        lp["wo"]]                             # Wo
        wo_mlp_blocks.append(lp["wmo"])                       # (I, H)
        wi_blocks += [lp["wi"][:, :INTERMEDIATE],             # Wi_in   (H, I)
                      lp["wi"][:, INTERMEDIATE:]]             # Wi_gate (H, I)

    w32 = jnp.concatenate([emb_rows, ln_rows] + attn_blocks + wo_mlp_blocks, axis=0)
    w64 = jnp.concatenate(wi_blocks, axis=0)
    assert w32.shape == (W32_ROWS, HIDDEN)
    assert w64.shape == (NUM_LAYERS * 2 * HIDDEN, INTERMEDIATE)
    return {"w32": w32, "w64": w64, "vocab_offsets": jnp.array(offsets, jnp.int32)}


# ----------------------------------- main ------------------------------------
if __name__ == "__main__":
    key = jax.random.PRNGKey(0)
    pkey, *id_keys = jax.random.split(key, 1 + len(CLASSES))
    params = init_params(pkey)
    prep = prepare_inference_params(params)

    # input_ids: [B, S, 4], each class column drawn from its own vocab
    cols = [
        jax.random.randint(id_keys[i], (BATCH, SEQ), 0, N_TOKENS[i], jnp.int32)
        for i in range(len(CLASSES))
    ]
    input_ids = jnp.stack(cols, axis=-1)                      # (2, 8, 4)
    attn_mask = jnp.ones((BATCH, SEQ), jnp.float32).at[1, -2:].set(0.0)

    fwd = jax.jit(functools.partial(midi_modernbert_forward, prep))
    out = fwd(input_ids, attn_mask)
    jax.block_until_ready(out["last_hidden_state"])
    jax.block_until_ready(out["hidden_states"][-1])
    assert out["last_hidden_state"].shape == (BATCH, SEQ, HIDDEN)
    assert len(out["hidden_states"]) == NUM_LAYERS + 1
    assert all(h.shape == (BATCH, SEQ, HIDDEN) for h in out["hidden_states"])
    print("KERNEL_OK")
</pallas_src>

<mosaic_0001>
module attributes {stable_mosaic.version = 11 : i64} {
  func.func @_fused_forward_kernel(%arg0: memref<2x8x4xi32, #tpu.memory_space<vmem>>, %arg1: memref<2x1x8xf32, #tpu.memory_space<vmem>>, %arg2: memref<3x16x32xf32, #tpu.memory_space<vmem>>, %arg3: memref<456x32xf32, #tpu.memory_space<vmem>>, %arg4: memref<128x64xf32, #tpu.memory_space<vmem>>, %arg5: memref<4x2x8x32xf32, #tpu.memory_space<vmem>>) attributes {dimension_semantics = [], scalar_prefetch = 0 : i64, scratch_operands = 0 : i64, tpu.core_type = #tpu.core_type<tc>} {
    %c0 = arith.constant 0 : index
    %c0_0 = arith.constant 0 : index
    %c0_1 = arith.constant 0 : index
    %0 = vector.load %arg0[%c0, %c0_0, %c0_1] : memref<2x8x4xi32, #tpu.memory_space<vmem>>, vector<2x8x4xi32>
    %1 = vector.shape_cast %0 : vector<2x8x4xi32> to vector<16x4xi32>
    %2 = tpu.iota {dimensions = array<i32: 1>} : vector<16x64xi32>
    %c60_i32 = arith.constant 60 : i32
    %3 = vector.broadcast %c60_i32 : i32 to vector<16x64xi32>
    %4 = arith.cmpi eq, %2, %3 : vector<16x64xi32>
    %5 = arith.extui %4 : vector<16x64xi1> to vector<16x64xi32>
    %6 = arith.sitofp %5 : vector<16x64xi32> to vector<16x64xf32>
    %7 = vector.extract_strided_slice %1 {offsets = [0, 0], sizes = [16, 1], strides = [1, 1]} : vector<16x4xi32> to vector<16x1xi32>
    %8 = vector.broadcast %7 : vector<16x1xi32> to vector<16x64xi32>
    %9 = arith.cmpi eq, %8, %2 : vector<16x64xi32>
    %10 = arith.extui %9 : vector<16x64xi1> to vector<16x64xi32>
    %11 = arith.sitofp %10 : vector<16x64xi32> to vector<16x64xf32>
    %12 = arith.addf %6, %11 : vector<16x64xf32>
    %13 = vector.extract_strided_slice %1 {offsets = [0, 1], sizes = [16, 1], strides = [1, 1]} : vector<16x4xi32> to vector<16x1xi32>
    %14 = vector.broadcast %13 : vector<16x1xi32> to vector<16x64xi32>
    %15 = arith.cmpi eq, %14, %2 : vector<16x64xi32>
    %16 = arith.extui %15 : vector<16x64xi1> to vector<16x64xi32>
    %17 = arith.sitofp %16 : vector<16x64xi32> to vector<16x64xf32>
    %18 = arith.addf %12, %17 : vector<16x64xf32>
    %19 = vector.extract_strided_slice %1 {offsets = [0, 2], sizes = [16, 1], strides = [1, 1]} : vector<16x4xi32> to vector<16x1xi32>
    %20 = vector.broadcast %19 : vector<16x1xi32> to vector<16x64xi32>
    %21 = arith.cmpi eq, %20, %2 : vector<16x64xi32>
    %22 = arith.extui %21 : vector<16x64xi1> to vector<16x64xi32>
    %23 = arith.sitofp %22 : vector<16x64xi32> to vector<16x64xf32>
    %24 = arith.addf %18, %23 : vector<16x64xf32>
    %25 = vector.extract_strided_slice %1 {offsets = [0, 3], sizes = [16, 1], strides = [1, 1]} : vector<16x4xi32> to vector<16x1xi32>
    %26 = vector.broadcast %25 : vector<16x1xi32> to vector<16x64xi32>
    %27 = arith.cmpi eq, %26, %2 : vector<16x64xi32>
    %28 = arith.extui %27 : vector<16x64xi1> to vector<16x64xi32>
    %29 = arith.sitofp %28 : vector<16x64xi32> to vector<16x64xf32>
    %30 = arith.addf %24, %29 : vector<16x64xf32>
    %c0_2 = arith.constant 0 : index
    %c0_3 = arith.constant 0 : index
    %31 = vector.load %arg3[%c0_2, %c0_3] : memref<456x32xf32, #tpu.memory_space<vmem>>, vector<64x32xf32>
    %cst = arith.constant dense<0.000000e+00> : vector<16x32xf32>
    %32 = tpu.matmul %30, %31, %cst {dimension_numbers = #tpu.dot_dimension_numbers<[1], [0], [0], [1], [0, 0, 1, 1], [], []>} : vector<16x64xf32>, vector<64x32xf32>, vector<16x32xf32> -> vector<16x32xf32>
    %c64 = arith.constant 64 : index
    %c0_4 = arith.constant 0 : index
    %33 = vector.load %arg3[%c64, %c0_4] : memref<456x32xf32, #tpu.memory_space<vmem>>, vector<1x32xf32>
    %cst_5 = arith.constant dense<0.000000e+00> : vector<16xf32>
    %34 = vector.multi_reduction <add>, %32, %cst_5 [1] : vector<16x32xf32> to vector<16xf32>
    %35 = vector.shape_cast %34 : vector<16xf32> to vector<16x1xf32>
    %cst_6 = arith.constant 3.200000e+01 : f32
    %36 = vector.broadcast %cst_6 : f32 to vector<16x1xf32>
    %37 = arith.divf %35, %36 : vector<16x1xf32>
    %38 = vector.broadcast %37 : vector<16x1xf32> to vector<16x32xf32>
    %39 = arith.subf %32, %38 : vector<16x32xf32>
    %40 = arith.mulf %39, %39 : vector<16x32xf32>
    %cst_7 = arith.constant dense<0.000000e+00> : vector<16xf32>
    %41 = vector.multi_reduction <add>, %40, %cst_7 [1] : vector<16x32xf32> to vector<16xf32>
    %42 = vector.shape_cast %41 : vector<16xf32> to vector<16x1xf32>
    %cst_8 = arith.constant 3.200000e+01 : f32
    %43 = vector.broadcast %cst_8 : f32 to vector<16x1xf32>
    %44 = arith.divf %42, %43 : vector<16x1xf32>
    %45 = vector.broadcast %37 : vector<16x1xf32> to vector<16x32xf32>
    %46 = arith.subf %32, %45 : vector<16x32xf32>
    %cst_9 = arith.constant 9.99999974E-6 : f32
    %47 = vector.broadcast %cst_9 : f32 to vector<16x1xf32>
    %48 = arith.addf %44, %47 : vector<16x1xf32>
    %49 = math.rsqrt %48 : vector<16x1xf32>
    %50 = vector.broadcast %49 : vector<16x1xf32> to vector<16x32xf32>
    %51 = arith.mulf %46, %50 : vector<16x32xf32>
    %52 = vector.broadcast %33 : vector<1x32xf32> to vector<16x32xf32>
    %53 = arith.mulf %51, %52 : vector<16x32xf32>
    %54 = vector.shape_cast %53 : vector<16x32xf32> to vector<2x8x32xf32>
    %c0_10 = arith.constant 0 : index
    %c0_11 = arith.constant 0 : index
    %c0_12 = arith.constant 0 : index
    %c0_13 = arith.constant 0 : index
    %55 = vector.load %arg5[%c0_10, %c0_11, %c0_12, %c0_13] : memref<4x2x8x32xf32, #tpu.memory_space<vmem>>, vector<1x2x8x32xf32>
    %56 = vector.shape_cast %55 : vector<1x2x8x32xf32> to vector<2x8x32xf32>
    %57 = vector.shape_cast %54 : vector<2x8x32xf32> to vector<1x2x8x32xf32>
    tpu.vector_store %arg5[%c0_10, %c0_11, %c0_12, %c0_13], %57 {strides = array<i32>} : memref<4x2x8x32xf32, #tpu.memory_space<vmem>>, vector<1x2x8x32xf32>,
    %c0_14 = arith.constant 0 : index
    %c0_15 = arith.constant 0 : index
    %c0_16 = arith.constant 0 : index
    %58 = vector.load %arg2[%c0_14, %c0_15, %c0_16] : memref<3x16x32xf32, #tpu.memory_space<vmem>>, vector<1x16x32xf32>
    %59 = vector.shape_cast %58 : vector<1x16x32xf32> to vector<16x32xf32>
    %c1 = arith.constant 1 : index
    %c0_17 = arith.constant 0 : index
    %c0_18 = arith.constant 0 : index
    %60 = vector.load %arg2[%c1, %c0_17, %c0_18] : memref<3x16x32xf32, #tpu.memory_space<vmem>>, vector<1x16x32xf32>
    %61 = vector.shape_cast %60 : vector<1x16x32xf32> to vector<16x32xf32>
    %c2 = arith.constant 2 : index
    %c0_19 = arith.constant 0 : index
    %c0_20 = arith.constant 0 : index
    %62 = vector.load %arg2[%c2, %c0_19, %c0_20] : memref<3x16x32xf32, #tpu.memory_space<vmem>>, vector<1x16x32xf32>
    %63 = vector.shape_cast %62 : vector<1x16x32xf32> to vector<16x32xf32>
    %c0_21 = arith.constant 0 : index
    %c0_22 = arith.constant 0 : index
    %c0_23 = arith.constant 0 : index
    %64 = vector.load %arg1[%c0_21, %c0_22, %c0_23] : memref<2x1x8xf32, #tpu.memory_space<vmem>>, vector<2x1x8xf32>
    %c72 = arith.constant 72 : index
    %c0_24 = arith.constant 0 : index
    %65 = vector.load %arg3[%c72, %c0_24] : memref<456x32xf32, #tpu.memory_space<vmem>>, vector<32x32xf32>
    %c104 = arith.constant 104 : index
    %c0_25 = arith.constant 0 : index
    %66 = vector.load %arg3[%c104, %c0_25] : memref<456x32xf32, #tpu.memory_space<vmem>>, vector<32x32xf32>
    %c136 = arith.constant 136 : index
    %c0_26 = arith.constant 0 : index
    %67 = vector.load %arg3[%c136, %c0_26] : memref<456x32xf32, #tpu.memory_space<vmem>>, vector<32x32xf32>
    %c168 = arith.constant 168 : index
    %c0_27 = arith.constant 0 : index
    %68 = vector.load %arg3[%c168, %c0_27] : memref<456x32xf32, #tpu.memory_space<vmem>>, vector<32x32xf32>
    %c66 = arith.constant 66 : index
    %c0_28 = arith.constant 0 : index
    %69 = vector.load %arg3[%c66, %c0_28] : memref<456x32xf32, #tpu.memory_space<vmem>>, vector<1x32xf32>
    %cst_29 = arith.constant dense<0.000000e+00> : vector<16x32xf32>
    %70 = tpu.matmul %53, %65, %cst_29 {dimension_numbers = #tpu.dot_dimension_numbers<[1], [0], [0], [1], [0, 0, 1, 1], [], []>} : vector<16x32xf32>, vector<32x32xf32>, vector<16x32xf32> -> vector<16x32xf32>
    %cst_30 = arith.constant dense<0.000000e+00> : vector<16x32xf32>
    %71 = tpu.matmul %53, %66, %cst_30 {dimension_numbers = #tpu.dot_dimension_numbers<[1], [0], [0], [1], [0, 0, 1, 1], [], []>} : vector<16x32xf32>, vector<32x32xf32>, vector<16x32xf32> -> vector<16x32xf32>
    %cst_31 = arith.constant dense<0.000000e+00> : vector<16x32xf32>
    %72 = tpu.matmul %53, %67, %cst_31 {dimension_numbers = #tpu.dot_dimension_numbers<[1], [0], [0], [1], [0, 0, 1, 1], [], []>} : vector<16x32xf32>, vector<32x32xf32>, vector<16x32xf32> -> vector<16x32xf32>
    %73 = vector.extract_strided_slice %70 {offsets = [0, 4], sizes = [16, 28], strides = [1, 1]} : vector<16x32xf32> to vector<16x28xf32>
    %74 = vector.extract_strided_slice %70 {offsets = [0, 0], sizes = [16, 4], strides = [1, 1]} : vector<16x32xf32> to vector<16x4xf32>
    %75 = tpu.concatenate %73, %74 in 1 : vector<16x28xf32>, vector<16x4xf32> -> vector<16x32xf32>
    %76 = vector.extract_strided_slice %70 {offsets = [0, 28], sizes = [16, 4], strides = [1, 1]} : vector<16x32xf32> to vector<16x4xf32>
    %77 = vector.extract_strided_slice %70 {offsets = [0, 0], sizes = [16, 28], strides = [1, 1]} : vector<16x32xf32> to vector<16x28xf32>
    %78 = tpu.concatenate %76, %77 in 1 : vector<16x4xf32>, vector<16x28xf32> -> vector<16x32xf32>
    %79 = arith.mulf %70, %59 : vector<16x32xf32>
    %80 = arith.mulf %75, %61 : vector<16x32xf32>
    %81 = arith.addf %79, %80 : vector<16x32xf32>
    %82 = arith.mulf %78, %63 : vector<16x32xf32>
    %83 = arith.addf %81, %82 : vector<16x32xf32>
    %84 = vector.extract_strided_slice %71 {offsets = [0, 4], sizes = [16, 28], strides = [1, 1]} : vector<16x32xf32> to vector<16x28xf32>
    %85 = vector.extract_strided_slice %71 {offsets = [0, 0], sizes = [16, 4], strides = [1, 1]} : vector<16x32xf32> to vector<16x4xf32>
    %86 = tpu.concatenate %84, %85 in 1 : vector<16x28xf32>, vector<16x4xf32> -> vector<16x32xf32>
    %87 = vector.extract_strided_slice %71 {offsets = [0, 28], sizes = [16, 4], strides = [1, 1]} : vector<16x32xf32> to vector<16x4xf32>
    %88 = vector.extract_strided_slice %71 {offsets = [0, 0], sizes = [16, 28], strides = [1, 1]} : vector<16x32xf32> to vector<16x28xf32>
    %89 = tpu.concatenate %87, %88 in 1 : vector<16x4xf32>, vector<16x28xf32> -> vector<16x32xf32>
    %90 = arith.mulf %71, %59 : vector<16x32xf32>
    %91 = arith.mulf %86, %61 : vector<16x32xf32>
    %92 = arith.addf %90, %91 : vector<16x32xf32>
    %93 = arith.mulf %89, %63 : vector<16x32xf32>
    %94 = arith.addf %92, %93 : vector<16x32xf32>
    %95 = vector.shape_cast %83 : vector<16x32xf32> to vector<2x8x32xf32>
    %96 = vector.shape_cast %94 : vector<16x32xf32> to vector<2x8x32xf32>
    %97 = vector.shape_cast %72 : vector<16x32xf32> to vector<2x8x32xf32>
    %98 = vector.extract_strided_slice %95 {offsets = [0, 0, 0], sizes = [2, 8, 8], strides = [1, 1, 1]} : vector<2x8x32xf32> to vector<2x8x8xf32>
    %99 = vector.extract_strided_slice %96 {offsets = [0, 0, 0], sizes = [2, 8, 8], strides = [1, 1, 1]} : vector<2x8x32xf32> to vector<2x8x8xf32>
    "tpu.trace_start"() <{level = 10 : i32, message = "bqd,bkd->bqk"}> : () -> ()
    %cst_32 = arith.constant dense<0.000000e+00> : vector<2x8x8xf32>
    %100 = tpu.matmul %98, %99, %cst_32 {dimension_numbers = #tpu.dot_dimension_numbers<[2], [2], [1], [1], [0, 0, 0, 1, 1, 1], [0], [0]>} : vector<2x8x8xf32>, vector<2x8x8xf32>, vector<2x8x8xf32> -> vector<2x8x8xf32>
    "tpu.trace_stop"() : () -> ()
    %101 = vector.broadcast %64 : vector<2x1x8xf32> to vector<2x8x8xf32>
    %102 = arith.addf %100, %101 : vector<2x8x8xf32>
    %cst_33 = arith.constant dense<0xFF800000> : vector<2x8xf32>
    %103 = vector.multi_reduction <maximumf>, %102, %cst_33 [2] : vector<2x8x8xf32> to vector<2x8xf32>
    %104 = vector.shape_cast %103 : vector<2x8xf32> to vector<2x8x1xf32>
    %105 = vector.broadcast %104 : vector<2x8x1xf32> to vector<2x8x8xf32>
    %106 = arith.subf %102, %105 : vector<2x8x8xf32>
    %107 = math.exp %106 : vector<2x8x8xf32>
    %cst_34 = arith.constant dense<0.000000e+00> : vector<2x8xf32>
    %108 = vector.multi_reduction <add>, %107, %cst_34 [2] : vector<2x8x8xf32> to vector<2x8xf32>
    %109 = vector.shape_cast %108 : vector<2x8xf32> to vector<2x8x1xf32>
    %110 = tpu.reciprocal %109 {approx = true} : vector<2x8x1xf32> -> vector<2x8x1xf32>
    %111 = vector.broadcast %110 : vector<2x8x1xf32> to vector<2x8x8xf32>
    %112 = arith.mulf %107, %111 : vector<2x8x8xf32>
    %113 = vector.extract_strided_slice %97 {offsets = [0, 0, 0], sizes = [2, 8, 8], strides = [1, 1, 1]} : vector<2x8x32xf32> to vector<2x8x8xf32>
    "tpu.trace_start"() <{level = 10 : i32, message = "bqk,bkd->bqd"}> : () -> ()
    %cst_35 = arith.constant dense<0.000000e+00> : vector<2x8x8xf32>
    %114 = tpu.matmul %112, %113, %cst_35 {dimension_numbers = #tpu.dot_dimension_numbers<[2], [1], [1], [2], [0, 0, 0, 1, 1, 2], [0], [0]>} : vector<2x8x8xf32>, vector<2x8x8xf32>, vector<2x8x8xf32> -> vector<2x8x8xf32>
    "tpu.trace_stop"() : () -> ()
    %115 = vector.extract_strided_slice %95 {offsets = [0, 0, 8], sizes = [2, 8, 8], strides = [1, 1, 1]} : vector<2x8x32xf32> to vector<2x8x8xf32>
    %116 = vector.extract_strided_slice %96 {offsets = [0, 0, 8], sizes = [2, 8, 8], strides = [1, 1, 1]} : vector<2x8x32xf32> to vector<2x8x8xf32>
    "tpu.trace_start"() <{level = 10 : i32, message = "bqd,bkd->bqk"}> : () -> ()
    %cst_36 = arith.constant dense<0.000000e+00> : vector<2x8x8xf32>
    %117 = tpu.matmul %115, %116, %cst_36 {dimension_numbers = #tpu.dot_dimension_numbers<[2], [2], [1], [1], [0, 0, 0, 1, 1, 1], [0], [0]>} : vector<2x8x8xf32>, vector<2x8x8xf32>, vector<2x8x8xf32> -> vector<2x8x8xf32>
    "tpu.trace_stop"() : () -> ()
    %118 = vector.broadcast %64 : vector<2x1x8xf32> to vector<2x8x8xf32>
    %119 = arith.addf %117, %118 : vector<2x8x8xf32>
    %cst_37 = arith.constant dense<0xFF800000> : vector<2x8xf32>
    %120 = vector.multi_reduction <maximumf>, %119, %cst_37 [2] : vector<2x8x8xf32> to vector<2x8xf32>
    %121 = vector.shape_cast %120 : vector<2x8xf32> to vector<2x8x1xf32>
    %122 = vector.broadcast %121 : vector<2x8x1xf32> to vector<2x8x8xf32>
    %123 = arith.subf %119, %122 : vector<2x8x8xf32>
    %124 = math.exp %123 : vector<2x8x8xf32>
    %cst_38 = arith.constant dense<0.000000e+00> : vector<2x8xf32>
    %125 = vector.multi_reduction <add>, %124, %cst_38 [2] : vector<2x8x8xf32> to vector<2x8xf32>
    %126 = vector.shape_cast %125 : vector<2x8xf32> to vector<2x8x1xf32>
    %127 = tpu.reciprocal %126 {approx = true} : vector<2x8x1xf32> -> vector<2x8x1xf32>
    %128 = vector.broadcast %127 : vector<2x8x1xf32> to vector<2x8x8xf32>
    %129 = arith.mulf %124, %128 : vector<2x8x8xf32>
    %130 = vector.extract_strided_slice %97 {offsets = [0, 0, 8], sizes = [2, 8, 8], strides = [1, 1, 1]} : vector<2x8x32xf32> to vector<2x8x8xf32>
    "tpu.trace_start"() <{level = 10 : i32, message = "bqk,bkd->bqd"}> : () -> ()
    %cst_39 = arith.constant dense<0.000000e+00> : vector<2x8x8xf32>
    %131 = tpu.matmul %129, %130, %cst_39 {dimension_numbers = #tpu.dot_dimension_numbers<[2], [1], [1], [2], [0, 0, 0, 1, 1, 2], [0], [0]>} : vector<2x8x8xf32>, vector<2x8x8xf32>, vector<2x8x8xf32> -> vector<2x8x8xf32>
    "tpu.trace_stop"() : () -> ()
    %132 = vector.extract_strided_slice %95 {offsets = [0, 0, 16], sizes = [2, 8, 8], strides = [1, 1, 1]} : vector<2x8x32xf32> to vector<2x8x8xf32>
    %133 = vector.extract_strided_slice %96 {offsets = [0, 0, 16], sizes = [2, 8, 8], strides = [1, 1, 1]} : vector<2x8x32xf32> to vector<2x8x8xf32>
    "tpu.trace_start"() <{level = 10 : i32, message = "bqd,bkd->bqk"}> : () -> ()
    %cst_40 = arith.constant dense<0.000000e+00> : vector<2x8x8xf32>
    %134 = tpu.matmul %132, %133, %cst_40 {dimension_numbers = #tpu.dot_dimension_numbers<[2], [2], [1], [1], [0, 0, 0, 1, 1, 1], [0], [0]>} : vector<2x8x8xf32>, vector<2x8x8xf32>, vector<2x8x8xf32> -> vector<2x8x8xf32>
    "tpu.trace_stop"() : () -> ()
    %135 = vector.broadcast %64 : vector<2x1x8xf32> to vector<2x8x8xf32>
    %136 = arith.addf %134, %135 : vector<2x8x8xf32>
    %cst_41 = arith.constant dense<0xFF800000> : vector<2x8xf32>
    %137 = vector.multi_reduction <maximumf>, %136, %cst_41 [2] : vector<2x8x8xf32> to vector<2x8xf32>
    %138 = vector.shape_cast %137 : vector<2x8xf32> to vector<2x8x1xf32>
    %139 = vector.broadcast %138 : vector<2x8x1xf32> to vector<2x8x8xf32>
    %140 = arith.subf %136, %139 : vector<2x8x8xf32>
    %141 = math.exp %140 : vector<2x8x8xf32>
    %cst_42 = arith.constant dense<0.000000e+00> : vector<2x8xf32>
    %142 = vector.multi_reduction <add>, %141, %cst_42 [2] : vector<2x8x8xf32> to vector<2x8xf32>
    %143 = vector.shape_cast %142 : vector<2x8xf32> to vector<2x8x1xf32>
    %144 = tpu.reciprocal %143 {approx = true} : vector<2x8x1xf32> -> vector<2x8x1xf32>
    %145 = vector.broadcast %144 : vector<2x8x1xf32> to vector<2x8x8xf32>
    %146 = arith.mulf %141, %145 : vector<2x8x8xf32>
    %147 = vector.extract_strided_slice %97 {offsets = [0, 0, 16], sizes = [2, 8, 8], strides = [1, 1, 1]} : vector<2x8x32xf32> to vector<2x8x8xf32>
    "tpu.trace_start"() <{level = 10 : i32, message = "bqk,bkd->bqd"}> : () -> ()
    %cst_43 = arith.constant dense<0.000000e+00> : vector<2x8x8xf32>
    %148 = tpu.matmul %146, %147, %cst_43 {dimension_numbers = #tpu.dot_dimension_numbers<[2], [1], [1], [2], [0, 0, 0, 1, 1, 2], [0], [0]>} : vector<2x8x8xf32>, vector<2x8x8xf32>, vector<2x8x8xf32> -> vector<2x8x8xf32>
    "tpu.trace_stop"() : () -> ()
    %149 = vector.extract_strided_slice %95 {offsets = [0, 0, 24], sizes = [2, 8, 8], strides = [1, 1, 1]} : vector<2x8x32xf32> to vector<2x8x8xf32>
    %150 = vector.extract_strided_slice %96 {offsets = [0, 0, 24], sizes = [2, 8, 8], strides = [1, 1, 1]} : vector<2x8x32xf32> to vector<2x8x8xf32>
    "tpu.trace_start"() <{level = 10 : i32, message = "bqd,bkd->bqk"}> : () -> ()
    %cst_44 = arith.constant dense<0.000000e+00> : vector<2x8x8xf32>
    %151 = tpu.matmul %149, %150, %cst_44 {dimension_numbers = #tpu.dot_dimension_numbers<[2], [2], [1], [1], [0, 0, 0, 1, 1, 1], [0], [0]>} : vector<2x8x8xf32>, vector<2x8x8xf32>, vector<2x8x8xf32> -> vector<2x8x8xf32>
    "tpu.trace_stop"() : () -> ()
    %152 = vector.broadcast %64 : vector<2x1x8xf32> to vector<2x8x8xf32>
    %153 = arith.addf %151, %152 : vector<2x8x8xf32>
    %cst_45 = arith.constant dense<0xFF800000> : vector<2x8xf32>
    %154 = vector.multi_reduction <maximumf>, %153, %cst_45 [2] : vector<2x8x8xf32> to vector<2x8xf32>
    %155 = vector.shape_cast %154 : vector<2x8xf32> to vector<2x8x1xf32>
    %156 = vector.broadcast %155 : vector<2x8x1xf32> to vector<2x8x8xf32>
    %157 = arith.subf %153, %156 : vector<2x8x8xf32>
    %158 = math.exp %157 : vector<2x8x8xf32>
    %cst_46 = arith.constant dense<0.000000e+00> : vector<2x8xf32>
    %159 = vector.multi_reduction <add>, %158, %cst_46 [2] : vector<2x8x8xf32> to vector<2x8xf32>
    %160 = vector.shape_cast %159 : vector<2x8xf32> to vector<2x8x1xf32>
    %161 = tpu.reciprocal %160 {approx = true} : vector<2x8x1xf32> -> vector<2x8x1xf32>
    %162 = vector.broadcast %161 : vector<2x8x1xf32> to vector<2x8x8xf32>
    %163 = arith.mulf %158, %162 : vector<2x8x8xf32>
    %164 = vector.extract_strided_slice %97 {offsets = [0, 0, 24], sizes = [2, 8, 8], strides = [1, 1, 1]} : vector<2x8x32xf32> to vector<2x8x8xf32>
    "tpu.trace_start"() <{level = 10 : i32, message = "bqk,bkd->bqd"}> : () -> ()
    %cst_47 = arith.constant dense<0.000000e+00> : vector<2x8x8xf32>
    %165 = tpu.matmul %163, %164, %cst_47 {dimension_numbers = #tpu.dot_dimension_numbers<[2], [1], [1], [2], [0, 0, 0, 1, 1, 2], [0], [0]>} : vector<2x8x8xf32>, vector<2x8x8xf32>, vector<2x8x8xf32> -> vector<2x8x8xf32>
    "tpu.trace_stop"() : () -> ()
    %166 = tpu.concatenate %114, %131, %148, %165 in 2 : vector<2x8x8xf32>, vector<2x8x8xf32>, vector<2x8x8xf32>, vector<2x8x8xf32> -> vector<2x8x32xf32>
    %167 = vector.shape_cast %166 : vector<2x8x32xf32> to vector<16x32xf32>
    %cst_48 = arith.constant dense<0.000000e+00> : vector<16x32xf32>
    %168 = tpu.matmul %167, %68, %cst_48 {dimension_numbers = #tpu.dot_dimension_numbers<[1], [0], [0], [1], [0, 0, 1, 1], [], []>} : vector<16x32xf32>, vector<32x32xf32>, vector<16x32xf32> -> vector<16x32xf32>
    %169 = arith.addf %53, %168 : vector<16x32xf32>
    %c0_49 = arith.constant 0 : index
    %c0_50 = arith.constant 0 : index
    %170 = vector.load %arg4[%c0_49, %c0_50] : memref<128x64xf32, #tpu.memory_space<vmem>>, vector<32x64xf32>
    %c32 = arith.constant 32 : index
    %c0_51 = arith.constant 0 : index
    %171 = vector.load %arg4[%c32, %c0_51] : memref<128x64xf32, #tpu.memory_space<vmem>>, vector<32x64xf32>
    %c328 = arith.constant 328 : index
    %c0_52 = arith.constant 0 : index
    %172 = vector.load %arg3[%c328, %c0_52] : memref<456x32xf32, #tpu.memory_space<vmem>>, vector<64x32xf32>
    %cst_53 = arith.constant dense<0.000000e+00> : vector<16xf32>
    %173 = vector.multi_reduction <add>, %169, %cst_53 [1] : vector<16x32xf32> to vector<16xf32>
    %174 = vector.shape_cast %173 : vector<16xf32> to vector<16x1xf32>
    %cst_54 = arith.constant 3.200000e+01 : f32
    %175 = vector.broadcast %cst_54 : f32 to vector<16x1xf32>
    %176 = arith.divf %174, %175 : vector<16x1xf32>
    %177 = vector.broadcast %176 : vector<16x1xf32> to vector<16x32xf32>
    %178 = arith.subf %169, %177 : vector<16x32xf32>
    %179 = arith.mulf %178, %178 : vector<16x32xf32>
    %cst_55 = arith.constant dense<0.000000e+00> : vector<16xf32>
    %180 = vector.multi_reduction <add>, %179, %cst_55 [1] : vector<16x32xf32> to vector<16xf32>
    %181 = vector.shape_cast %180 : vector<16xf32> to vector<16x1xf32>
    %cst_56 = arith.constant 3.200000e+01 : f32
    %182 = vector.broadcast %cst_56 : f32 to vector<16x1xf32>
    %183 = arith.divf %181, %182 : vector<16x1xf32>
    %184 = vector.broadcast %176 : vector<16x1xf32> to vector<16x32xf32>
    %185 = arith.subf %169, %184 : vector<16x32xf32>
    %cst_57 = arith.constant 9.99999974E-6 : f32
    %186 = vector.broadcast %cst_57 : f32 to vector<16x1xf32>
    %187 = arith.addf %183, %186 : vector<16x1xf32>
    %188 = math.rsqrt %187 : vector<16x1xf32>
    %189 = vector.broadcast %188 : vector<16x1xf32> to vector<16x32xf32>
    %190 = arith.mulf %185, %189 : vector<16x32xf32>
    %191 = vector.broadcast %69 : vector<1x32xf32> to vector<16x32xf32>
    %192 = arith.mulf %190, %191 : vector<16x32xf32>
    %cst_58 = arith.constant dense<0.000000e+00> : vector<16x64xf32>
    %193 = tpu.matmul %192, %170, %cst_58 {dimension_numbers = #tpu.dot_dimension_numbers<[1], [0], [0], [1], [0, 0, 1, 1], [], []>} : vector<16x32xf32>, vector<32x64xf32>, vector<16x64xf32> -> vector<16x64xf32>
    %cst_59 = arith.constant dense<0.000000e+00> : vector<16x64xf32>
    %194 = tpu.matmul %192, %171, %cst_59 {dimension_numbers = #tpu.dot_dimension_numbers<[1], [0], [0], [1], [0, 0, 1, 1], [], []>} : vector<16x32xf32>, vector<32x64xf32>, vector<16x64xf32> -> vector<16x64xf32>
    %cst_60 = arith.constant 5.000000e-01 : f32
    %195 = vector.broadcast %cst_60 : f32 to vector<16x64xf32>
    %196 = arith.mulf %195, %193 : vector<16x64xf32>
    %cst_61 = arith.constant 0.707106769 : f32
    %197 = vector.broadcast %cst_61 : f32 to vector<16x64xf32>
    %198 = arith.mulf %193, %197 : vector<16x64xf32>
    %cst_62 = arith.constant 0.000000e+00 : f32
    %199 = vector.broadcast %cst_62 : f32 to vector<16x64xf32>
    %200 = arith.cmpf oge, %198, %199 : vector<16x64xf32>
    %cst_63 = arith.constant 1.000000e+00 : f32
    %cst_64 = arith.constant -1.000000e+00 : f32
    %201 = vector.broadcast %cst_63 : f32 to vector<16x64xf32>
    %202 = vector.broadcast %cst_64 : f32 to vector<16x64xf32>
    %203 = arith.select %200, %201, %202 : vector<16x64xi1>, vector<16x64xf32>
    %204 = math.absf %198 : vector<16x64xf32>
    %cst_65 = arith.constant 0.327591091 : f32
    %205 = vector.broadcast %cst_65 : f32 to vector<16x64xf32>
    %206 = arith.mulf %205, %204 : vector<16x64xf32>
    %cst_66 = arith.constant 1.000000e+00 : f32
    %207 = vector.broadcast %cst_66 : f32 to vector<16x64xf32>
    %208 = arith.addf %207, %206 : vector<16x64xf32>
    %cst_67 = arith.constant 1.000000e+00 : f32
    %209 = vector.broadcast %cst_67 : f32 to vector<16x64xf32>
    %210 = arith.divf %209, %208 : vector<16x64xf32>
    %cst_68 = arith.constant 1.06140542 : f32
    %211 = vector.broadcast %cst_68 : f32 to vector<16x64xf32>
    %212 = arith.mulf %211, %210 : vector<16x64xf32>
    %cst_69 = arith.constant -1.45315206 : f32
    %213 = vector.broadcast %cst_69 : f32 to vector<16x64xf32>
    %214 = arith.addf %212, %213 : vector<16x64xf32>
    %215 = arith.mulf %214, %210 : vector<16x64xf32>
    %cst_70 = arith.constant 1.42141378 : f32
    %216 = vector.broadcast %cst_70 : f32 to vector<16x64xf32>
    %217 = arith.addf %215, %216 : vector<16x64xf32>
    %218 = arith.mulf %217, %210 : vector<16x64xf32>
    %cst_71 = arith.constant -0.284496725 : f32
    %219 = vector.broadcast %cst_71 : f32 to vector<16x64xf32>
    %220 = arith.addf %218, %219 : vector<16x64xf32>
    %221 = arith.mulf %220, %210 : vector<16x64xf32>
    %cst_72 = arith.constant 0.254829586 : f32
    %222 = vector.broadcast %cst_72 : f32 to vector<16x64xf32>
    %223 = arith.addf %221, %222 : vector<16x64xf32>
    %224 = arith.mulf %223, %210 : vector<16x64xf32>
    %cst_73 = arith.constant 0.000000e+00 : f32
    %225 = vector.broadcast %cst_73 : f32 to vector<16x64xf32>
    %226 = arith.subf %225, %204 : vector<16x64xf32>
    %227 = arith.mulf %226, %204 : vector<16x64xf32>
    %228 = math.exp %227 : vector<16x64xf32>
    %229 = arith.mulf %224, %228 : vector<16x64xf32>
    %cst_74 = arith.constant 1.000000e+00 : f32
    %230 = vector.broadcast %cst_74 : f32 to vector<16x64xf32>
    %231 = arith.subf %230, %229 : vector<16x64xf32>
    %232 = arith.mulf %203, %231 : vector<16x64xf32>
    %cst_75 = arith.constant 1.000000e+00 : f32
    %233 = vector.broadcast %cst_75 : f32 to vector<16x64xf32>
    %234 = arith.addf %233, %232 : vector<16x64xf32>
    %235 = arith.mulf %196, %234 : vector<16x64xf32>
    %236 = arith.mulf %235, %194 : vector<16x64xf32>
    %cst_76 = arith.constant dense<0.000000e+00> : vector<16x32xf32>
    %237 = tpu.matmul %236, %172, %cst_76 {dimension_numbers = #tpu.dot_dimension_numbers<[1], [0], [0], [1], [0, 0, 1, 1], [], []>} : vector<16x64xf32>, vector<64x32xf32>, vector<16x32xf32> -> vector<16x32xf32>
    %238 = arith.addf %169, %237 : vector<16x32xf32>
    %239 = vector.shape_cast %238 : vector<16x32xf32> to vector<2x8x32xf32>
    %c1_77 = arith.constant 1 : index
    %c0_78 = arith.constant 0 : index
    %c0_79 = arith.constant 0 : index
    %c0_80 = arith.constant 0 : index
    %240 = vector.load %arg5[%c1_77, %c0_78, %c0_79, %c0_80] : memref<4x2x8x32xf32, #tpu.memory_space<vmem>>, vector<1x2x8x32xf32>
    %241 = vector.shape_cast %240 : vector<1x2x8x32xf32> to vector<2x8x32xf32>
    %242 = vector.shape_cast %239 : vector<2x8x32xf32> to vector<1x2x8x32xf32>
    tpu.vector_store %arg5[%c1_77, %c0_78, %c0_79, %c0_80], %242 {strides = array<i32>} : memref<4x2x8x32xf32, #tpu.memory_space<vmem>>, vector<1x2x8x32xf32>,
    %c200 = arith.constant 200 : index
    %c0_81 = arith.constant 0 : index
    %243 = vector.load %arg3[%c200, %c0_81] : memref<456x32xf32, #tpu.memory_space<vmem>>, vector<32x32xf32>
    %c232 = arith.constant 232 : index
    %c0_82 = arith.constant 0 : index
    %244 = vector.load %arg3[%c232, %c0_82] : memref<456x32xf32, #tpu.memory_space<vmem>>, vector<32x32xf32>
    %c264 = arith.constant 264 : index
    %c0_83 = arith.constant 0 : index
    %245 = vector.load %arg3[%c264, %c0_83] : memref<456x32xf32, #tpu.memory_space<vmem>>, vector<32x32xf32>
    %c296 = arith.constant 296 : index
    %c0_84 = arith.constant 0 : index
    %246 = vector.load %arg3[%c296, %c0_84] : memref<456x32xf32, #tpu.memory_space<vmem>>, vector<32x32xf32>
    %c67 = arith.constant 67 : index
    %c0_85 = arith.constant 0 : index
    %247 = vector.load %arg3[%c67, %c0_85] : memref<456x32xf32, #tpu.memory_space<vmem>>, vector<1x32xf32>
    %c68 = arith.constant 68 : index
    %c0_86 = arith.constant 0 : index
    %248 = vector.load %arg3[%c68, %c0_86] : memref<456x32xf32, #tpu.memory_space<vmem>>, vector<1x32xf32>
    %cst_87 = arith.constant dense<0.000000e+00> : vector<16xf32>
    %249 = vector.multi_reduction <add>, %238, %cst_87 [1] : vector<16x32xf32> to vector<16xf32>
    %250 = vector.shape_cast %249 : vector<16xf32> to vector<16x1xf32>
    %cst_88 = arith.constant 3.200000e+01 : f32
    %251 = vector.broadcast %cst_88 : f32 to vector<16x1xf32>
    %252 = arith.divf %250, %251 : vector<16x1xf32>
    %253 = vector.broadcast %252 : vector<16x1xf32> to vector<16x32xf32>
    %254 = arith.subf %238, %253 : vector<16x32xf32>
    %255 = arith.mulf %254, %254 : vector<16x32xf32>
    %cst_89 = arith.constant dense<0.000000e+00> : vector<16xf32>
    %256 = vector.multi_reduction <add>, %255, %cst_89 [1] : vector<16x32xf32> to vector<16xf32>
    %257 = vector.shape_cast %256 : vector<16xf32> to vector<16x1xf32>
    %cst_90 = arith.constant 3.200000e+01 : f32
    %258 = vector.broadcast %cst_90 : f32 to vector<16x1xf32>
    %259 = arith.divf %257, %258 : vector<16x1xf32>
    %260 = vector.broadcast %252 : vector<16x1xf32> to vector<16x32xf32>
    %261 = arith.subf %238, %260 : vector<16x32xf32>
    %cst_91 = arith.constant 9.99999974E-6 : f32
    %262 = vector.broadcast %cst_91 : f32 to vector<16x1xf32>
    %263 = arith.addf %259, %262 : vector<16x1xf32>
    %264 = math.rsqrt %263 : vector<16x1xf32>
    %265 = vector.broadcast %264 : vector<16x1xf32> to vector<16x32xf32>
    %266 = arith.mulf %261, %265 : vector<16x32xf32>
    %267 = vector.broadcast %247 : vector<1x32xf32> to vector<16x32xf32>
    %268 = arith.mulf %266, %267 : vector<16x32xf32>
    %cst_92 = arith.constant dense<0.000000e+00> : vector<16x32xf32>
    %269 = tpu.matmul %268, %243, %cst_92 {dimension_numbers = #tpu.dot_dimension_numbers<[1], [0], [0], [1], [0, 0, 1, 1], [], []>} : vector<16x32xf32>, vector<32x32xf32>, vector<16x32xf32> -> vector<16x32xf32>
    %cst_93 = arith.constant dense<0.000000e+00> : vector<16x32xf32>
    %270 = tpu.matmul %268, %244, %cst_93 {dimension_numbers = #tpu.dot_dimension_numbers<[1], [0], [0], [1], [0, 0, 1, 1], [], []>} : vector<16x32xf32>, vector<32x32xf32>, vector<16x32xf32> -> vector<16x32xf32>
    %cst_94 = arith.constant dense<0.000000e+00> : vector<16x32xf32>
    %271 = tpu.matmul %268, %245, %cst_94 {dimension_numbers = #tpu.dot_dimension_numbers<[1], [0], [0], [1], [0, 0, 1, 1], [], []>} : vector<16x32xf32>, vector<32x32xf32>, vector<16x32xf32> -> vector<16x32xf32>
    %272 = vector.extract_strided_slice %269 {offsets = [0, 4], sizes = [16, 28], strides = [1, 1]} : vector<16x32xf32> to vector<16x28xf32>
    %273 = vector.extract_strided_slice %269 {offsets = [0, 0], sizes = [16, 4], strides = [1, 1]} : vector<16x32xf32> to vector<16x4xf32>
    %274 = tpu.concatenate %272, %273 in 1 : vector<16x28xf32>, vector<16x4xf32> -> vector<16x32xf32>
    %275 = vector.extract_strided_slice %269 {offsets = [0, 28], sizes = [16, 4], strides = [1, 1]} : vector<16x32xf32> to vector<16x4xf32>
    %276 = vector.extract_strided_slice %269 {offsets = [0, 0], sizes = [16, 28], strides = [1, 1]} : vector<16x32xf32> to vector<16x28xf32>
    %277 = tpu.concatenate %275, %276 in 1 : vector<16x4xf32>, vector<16x28xf32> -> vector<16x32xf32>
    %278 = arith.mulf %269, %59 : vector<16x32xf32>
    %279 = arith.mulf %274, %61 : vector<16x32xf32>
    %280 = arith.addf %278, %279 : vector<16x32xf32>
    %281 = arith.mulf %277, %63 : vector<16x32xf32>
    %282 = arith.addf %280, %281 : vector<16x32xf32>
    %283 = vector.extract_strided_slice %270 {offsets = [0, 4], sizes = [16, 28], strides = [1, 1]} : vector<16x32xf32> to vector<16x28xf32>
    %284 = vector.extract_strided_slice %270 {offsets = [0, 0], sizes = [16, 4], strides = [1, 1]} : vector<16x32xf32> to vector<16x4xf32>
    %285 = tpu.concatenate %283, %284 in 1 : vector<16x28xf32>, vector<16x4xf32> -> vector<16x32xf32>
    %286 = vector.extract_strided_slice %270 {offsets = [0, 28], sizes = [16, 4], strides = [1, 1]} : vector<16x32xf32> to vector<16x4xf32>
    %287 = vector.extract_strided_slice %270 {offsets = [0, 0], sizes = [16, 28], strides = [1, 1]} : vector<16x32xf32> to vector<16x28xf32>
    %288 = tpu.concatenate %286, %287 in 1 : vector<16x4xf32>, vector<16x28xf32> -> vector<16x32xf32>
    %289 = arith.mulf %270, %59 : vector<16x32xf32>
    %290 = arith.mulf %285, %61 : vector<16x32xf32>
    %291 = arith.addf %289, %290 : vector<16x32xf32>
    %292 = arith.mulf %288, %63 : vector<16x32xf32>
    %293 = arith.addf %291, %292 : vector<16x32xf32>
    %294 = vector.shape_cast %282 : vector<16x32xf32> to vector<2x8x32xf32>
    %295 = vector.shape_cast %293 : vector<16x32xf32> to vector<2x8x32xf32>
    %296 = vector.shape_cast %271 : vector<16x32xf32> to vector<2x8x32xf32>
    %297 = vector.extract_strided_slice %294 {offsets = [0, 0, 0], sizes = [2, 8, 8], strides = [1, 1, 1]} : vector<2x8x32xf32> to vector<2x8x8xf32>
    %298 = vector.extract_strided_slice %295 {offsets = [0, 0, 0], sizes = [2, 8, 8], strides = [1, 1, 1]} : vector<2x8x32xf32> to vector<2x8x8xf32>
    "tpu.trace_start"() <{level = 10 : i32, message = "bqd,bkd->bqk"}> : () -> ()
    %cst_95 = arith.constant dense<0.000000e+00> : vector<2x8x8xf32>
    %299 = tpu.matmul %297, %298, %cst_95 {dimension_numbers = #tpu.dot_dimension_numbers<[2], [2], [1], [1], [0, 0, 0, 1, 1, 1], [0], [0]>} : vector<2x8x8xf32>, vector<2x8x8xf32>, vector<2x8x8xf32> -> vector<2x8x8xf32>
    "tpu.trace_stop"() : () -> ()
    %300 = vector.broadcast %64 : vector<2x1x8xf32> to vector<2x8x8xf32>
    %301 = arith.addf %299, %300 : vector<2x8x8xf32>
    %cst_96 = arith.constant dense<0xFF800000> : vector<2x8xf32>
    %302 = vector.multi_reduction <maximumf>, %301, %cst_96 [2] : vector<2x8x8xf32> to vector<2x8xf32>
    %303 = vector.shape_cast %302 : vector<2x8xf32> to vector<2x8x1xf32>
    %304 = vector.broadcast %303 : vector<2x8x1xf32> to vector<2x8x8xf32>
    %305 = arith.subf %301, %304 : vector<2x8x8xf32>
    %306 = math.exp %305 : vector<2x8x8xf32>
    %cst_97 = arith.constant dense<0.000000e+00> : vector<2x8xf32>
    %307 = vector.multi_reduction <add>, %306, %cst_97 [2] : vector<2x8x8xf32> to vector<2x8xf32>
    %308 = vector.shape_cast %307 : vector<2x8xf32> to vector<2x8x1xf32>
    %309 = tpu.reciprocal %308 {approx = true} : vector<2x8x1xf32> -> vector<2x8x1xf32>
    %310 = vector.broadcast %309 : vector<2x8x1xf32> to vector<2x8x8xf32>
    %311 = arith.mulf %306, %310 : vector<2x8x8xf32>
    %312 = vector.extract_strided_slice %296 {offsets = [0, 0, 0], sizes = [2, 8, 8], strides = [1, 1, 1]} : vector<2x8x32xf32> to vector<2x8x8xf32>
    "tpu.trace_start"() <{level = 10 : i32, message = "bqk,bkd->bqd"}> : () -> ()
    %cst_98 = arith.constant dense<0.000000e+00> : vector<2x8x8xf32>
    %313 = tpu.matmul %311, %312, %cst_98 {dimension_numbers = #tpu.dot_dimension_numbers<[2], [1], [1], [2], [0, 0, 0, 1, 1, 2], [0], [0]>} : vector<2x8x8xf32>, vector<2x8x8xf32>, vector<2x8x8xf32> -> vector<2x8x8xf32>
    "tpu.trace_stop"() : () -> ()
    %314 = vector.extract_strided_slice %294 {offsets = [0, 0, 8], sizes = [2, 8, 8], strides = [1, 1, 1]} : vector<2x8x32xf32> to vector<2x8x8xf32>
    %315 = vector.extract_strided_slice %295 {offsets = [0, 0, 8], sizes = [2, 8, 8], strides = [1, 1, 1]} : vector<2x8x32xf32> to vector<2x8x8xf32>
    "tpu.trace_start"() <{level = 10 : i32, message = "bqd,bkd->bqk"}> : () -> ()
    %cst_99 = arith.constant dense<0.000000e+00> : vector<2x8x8xf32>
    %316 = tpu.matmul %314, %315, %cst_99 {dimension_numbers = #tpu.dot_dimension_numbers<[2], [2], [1], [1], [0, 0, 0, 1, 1, 1], [0], [0]>} : vector<2x8x8xf32>, vector<2x8x8xf32>, vector<2x8x8xf32> -> vector<2x8x8xf32>
    "tpu.trace_stop"() : () -> ()
    %317 = vector.broadcast %64 : vector<2x1x8xf32> to vector<2x8x8xf32>
    %318 = arith.addf %316, %317 : vector<2x8x8xf32>
    %cst_100 = arith.constant dense<0xFF800000> : vector<2x8xf32>
    %319 = vector.multi_reduction <maximumf>, %318, %cst_100 [2] : vector<2x8x8xf32> to vector<2x8xf32>
    %320 = vector.shape_cast %319 : vector<2x8xf32> to vector<2x8x1xf32>
    %321 = vector.broadcast %320 : vector<2x8x1xf32> to vector<2x8x8xf32>
    %322 = arith.subf %318, %321 : vector<2x8x8xf32>
    %323 = math.exp %322 : vector<2x8x8xf32>
    %cst_101 = arith.constant dense<0.000000e+00> : vector<2x8xf32>
    %324 = vector.multi_reduction <add>, %323, %cst_101 [2] : vector<2x8x8xf32> to vector<2x8xf32>
    %325 = vector.shape_cast %324 : vector<2x8xf32> to vector<2x8x1xf32>
    %326 = tpu.reciprocal %325 {approx = true} : vector<2x8x1xf32> -> vector<2x8x1xf32>
    %327 = vector.broadcast %326 : vector<2x8x1xf32> to vector<2x8x8xf32>
    %328 = arith.mulf %323, %327 : vector<2x8x8xf32>
    %329 = vector.extract_strided_slice %296 {offsets = [0, 0, 8], sizes = [2, 8, 8], strides = [1, 1, 1]} : vector<2x8x32xf32> to vector<2x8x8xf32>
    "tpu.trace_start"() <{level = 10 : i32, message = "bqk,bkd->bqd"}> : () -> ()
    %cst_102 = arith.constant dense<0.000000e+00> : vector<2x8x8xf32>
    %330 = tpu.matmul %328, %329, %cst_102 {dimension_numbers = #tpu.dot_dimension_numbers<[2], [1], [1], [2], [0, 0, 0, 1, 1, 2], [0], [0]>} : vector<2x8x8xf32>, vector<2x8x8xf32>, vector<2x8x8xf32> -> vector<2x8x8xf32>
    "tpu.trace_stop"() : () -> ()
    %331 = vector.extract_strided_slice %294 {offsets = [0, 0, 16], sizes = [2, 8, 8], strides = [1, 1, 1]} : vector<2x8x32xf32> to vector<2x8x8xf32>
    %332 = vector.extract_strided_slice %295 {offsets = [0, 0, 16], sizes = [2, 8, 8], strides = [1, 1, 1]} : vector<2x8x32xf32> to vector<2x8x8xf32>
    "tpu.trace_start"() <{level = 10 : i32, message = "bqd,bkd->bqk"}> : () -> ()
    %cst_103 = arith.constant dense<0.000000e+00> : vector<2x8x8xf32>
    %333 = tpu.matmul %331, %332, %cst_103 {dimension_numbers = #tpu.dot_dimension_numbers<[2], [2], [1], [1], [0, 0, 0, 1, 1, 1], [0], [0]>} : vector<2x8x8xf32>, vector<2x8x8xf32>, vector<2x8x8xf32> -> vector<2x8x8xf32>
    "tpu.trace_stop"() : () -> ()
    %334 = vector.broadcast %64 : vector<2x1x8xf32> to vector<2x8x8xf32>
    %335 = arith.addf %333, %334 : vector<2x8x8xf32>
    %cst_104 = arith.constant dense<0xFF800000> : vector<2x8xf32>
    %336 = vector.multi_reduction <maximumf>, %335, %cst_104 [2] : vector<2x8x8xf32> to vector<2x8xf32>
    %337 = vector.shape_cast %336 : vector<2x8xf32> to vector<2x8x1xf32>
    %338 = vector.broadcast %337 : vector<2x8x1xf32> to vector<2x8x8xf32>
    %339 = arith.subf %335, %338 : vector<2x8x8xf32>
    %340 = math.exp %339 : vector<2x8x8xf32>
    %cst_105 = arith.constant dense<0.000000e+00> : vector<2x8xf32>
    %341 = vector.multi_reduction <add>, %340, %cst_105 [2] : vector<2x8x8xf32> to vector<2x8xf32>
    %342 = vector.shape_cast %341 : vector<2x8xf32> to vector<2x8x1xf32>
    %343 = tpu.reciprocal %342 {approx = true} : vector<2x8x1xf32> -> vector<2x8x1xf32>
    %344 = vector.broadcast %343 : vector<2x8x1xf32> to vector<2x8x8xf32>
    %345 = arith.mulf %340, %344 : vector<2x8x8xf32>
    %346 = vector.extract_strided_slice %296 {offsets = [0, 0, 16], sizes = [2, 8, 8], strides = [1, 1, 1]} : vector<2x8x32xf32> to vector<2x8x8xf32>
    "tpu.trace_start"() <{level = 10 : i32, message = "bqk,bkd->bqd"}> : () -> ()
    %cst_106 = arith.constant dense<0.000000e+00> : vector<2x8x8xf32>
    %347 = tpu.matmul %345, %346, %cst_106 {dimension_numbers = #tpu.dot_dimension_numbers<[2], [1], [1], [2], [0, 0, 0, 1, 1, 2], [0], [0]>} : vector<2x8x8xf32>, vector<2x8x8xf32>, vector<2x8x8xf32> -> vector<2x8x8xf32>
    "tpu.trace_stop"() : () -> ()
    %348 = vector.extract_strided_slice %294 {offsets = [0, 0, 24], sizes = [2, 8, 8], strides = [1, 1, 1]} : vector<2x8x32xf32> to vector<2x8x8xf32>
    %349 = vector.extract_strided_slice %295 {offsets = [0, 0, 24], sizes = [2, 8, 8], strides = [1, 1, 1]} : vector<2x8x32xf32> to vector<2x8x8xf32>
    "tpu.trace_start"() <{level = 10 : i32, message = "bqd,bkd->bqk"}> : () -> ()
    %cst_107 = arith.constant dense<0.000000e+00> : vector<2x8x8xf32>
    %350 = tpu.matmul %348, %349, %cst_107 {dimension_numbers = #tpu.dot_dimension_numbers<[2], [2], [1], [1], [0, 0, 0, 1, 1, 1], [0], [0]>} : vector<2x8x8xf32>, vector<2x8x8xf32>, vector<2x8x8xf32> -> vector<2x8x8xf32>
    "tpu.trace_stop"() : () -> ()
    %351 = vector.broadcast %64 : vector<2x1x8xf32> to vector<2x8x8xf32>
    %352 = arith.addf %350, %351 : vector<2x8x8xf32>
    %cst_108 = arith.constant dense<0xFF800000> : vector<2x8xf32>
    %353 = vector.multi_reduction <maximumf>, %352, %cst_108 [2] : vector<2x8x8xf32> to vector<2x8xf32>
    %354 = vector.shape_cast %353 : vector<2x8xf32> to vector<2x8x1xf32>
    %355 = vector.broadcast %354 : vector<2x8x1xf32> to vector<2x8x8xf32>
    %356 = arith.subf %352, %355 : vector<2x8x8xf32>
    %357 = math.exp %356 : vector<2x8x8xf32>
    %cst_109 = arith.constant dense<0.000000e+00> : vector<2x8xf32>
    %358 = vector.multi_reduction <add>, %357, %cst_109 [2] : vector<2x8x8xf32> to vector<2x8xf32>
    %359 = vector.shape_cast %358 : vector<2x8xf32> to vector<2x8x1xf32>
    %360 = tpu.reciprocal %359 {approx = true} : vector<2x8x1xf32> -> vector<2x8x1xf32>
    %361 = vector.broadcast %360 : vector<2x8x1xf32> to vector<2x8x8xf32>
    %362 = arith.mulf %357, %361 : vector<2x8x8xf32>
    %363 = vector.extract_strided_slice %296 {offsets = [0, 0, 24], sizes = [2, 8, 8], strides = [1, 1, 1]} : vector<2x8x32xf32> to vector<2x8x8xf32>
    "tpu.trace_start"() <{level = 10 : i32, message = "bqk,bkd->bqd"}> : () -> ()
    %cst_110 = arith.constant dense<0.000000e+00> : vector<2x8x8xf32>
    %364 = tpu.matmul %362, %363, %cst_110 {dimension_numbers = #tpu.dot_dimension_numbers<[2], [1], [1], [2], [0, 0, 0, 1, 1, 2], [0], [0]>} : vector<2x8x8xf32>, vector<2x8x8xf32>, vector<2x8x8xf32> -> vector<2x8x8xf32>
    "tpu.trace_stop"() : () -> ()
    %365 = tpu.concatenate %313, %330, %347, %364 in 2 : vector<2x8x8xf32>, vector<2x8x8xf32>, vector<2x8x8xf32>, vector<2x8x8xf32> -> vector<2x8x32xf32>
    %366 = vector.shape_cast %365 : vector<2x8x32xf32> to vector<16x32xf32>
    %cst_111 = arith.constant dense<0.000000e+00> : vector<16x32xf32>
    %367 = tpu.matmul %366, %246, %cst_111 {dimension_numbers = #tpu.dot_dimension_numbers<[1], [0], [0], [1], [0, 0, 1, 1], [], []>} : vector<16x32xf32>, vector<32x32xf32>, vector<16x32xf32> -> vector<16x32xf32>
    %368 = arith.addf %238, %367 : vector<16x32xf32>
    %c64_112 = arith.constant 64 : index
    %c0_113 = arith.constant 0 : index
    %369 = vector.load %arg4[%c64_112, %c0_113] : memref<128x64xf32, #tpu.memory_space<vmem>>, vector<32x64xf32>
    %c96 = arith.constant 96 : index
    %c0_114 = arith.constant 0 : index
    %370 = vector.load %arg4[%c96, %c0_114] : memref<128x64xf32, #tpu.memory_space<vmem>>, vector<32x64xf32>
    %c392 = arith.constant 392 : index
    %c0_115 = arith.constant 0 : index
    %371 = vector.load %arg3[%c392, %c0_115] : memref<456x32xf32, #tpu.memory_space<vmem>>, vector<64x32xf32>
    %cst_116 = arith.constant dense<0.000000e+00> : vector<16xf32>
    %372 = vector.multi_reduction <add>, %368, %cst_116 [1] : vector<16x32xf32> to vector<16xf32>
    %373 = vector.shape_cast %372 : vector<16xf32> to vector<16x1xf32>
    %cst_117 = arith.constant 3.200000e+01 : f32
    %374 = vector.broadcast %cst_117 : f32 to vector<16x1xf32>
    %375 = arith.divf %373, %374 : vector<16x1xf32>
    %376 = vector.broadcast %375 : vector<16x1xf32> to vector<16x32xf32>
    %377 = arith.subf %368, %376 : vector<16x32xf32>
    %378 = arith.mulf %377, %377 : vector<16x32xf32>
    %cst_118 = arith.constant dense<0.000000e+00> : vector<16xf32>
    %379 = vector.multi_reduction <add>, %378, %cst_118 [1] : vector<16x32xf32> to vector<16xf32>
    %380 = vector.shape_cast %379 : vector<16xf32> to vector<16x1xf32>
    %cst_119 = arith.constant 3.200000e+01 : f32
    %381 = vector.broadcast %cst_119 : f32 to vector<16x1xf32>
    %382 = arith.divf %380, %381 : vector<16x1xf32>
    %383 = vector.broadcast %375 : vector<16x1xf32> to vector<16x32xf32>
    %384 = arith.subf %368, %383 : vector<16x32xf32>
    %cst_120 = arith.constant 9.99999974E-6 : f32
    %385 = vector.broadcast %cst_120 : f32 to vector<16x1xf32>
    %386 = arith.addf %382, %385 : vector<16x1xf32>
    %387 = math.rsqrt %386 : vector<16x1xf32>
    %388 = vector.broadcast %387 : vector<16x1xf32> to vector<16x32xf32>
    %389 = arith.mulf %384, %388 : vector<16x32xf32>
    %390 = vector.broadcast %248 : vector<1x32xf32> to vector<16x32xf32>
    %391 = arith.mulf %389, %390 : vector<16x32xf32>
    %cst_121 = arith.constant dense<0.000000e+00> : vector<16x64xf32>
    %392 = tpu.matmul %391, %369, %cst_121 {dimension_numbers = #tpu.dot_dimension_numbers<[1], [0], [0], [1], [0, 0, 1, 1], [], []>} : vector<16x32xf32>, vector<32x64xf32>, vector<16x64xf32> -> vector<16x64xf32>
    %cst_122 = arith.constant dense<0.000000e+00> : vector<16x64xf32>
    %393 = tpu.matmul %391, %370, %cst_122 {dimension_numbers = #tpu.dot_dimension_numbers<[1], [0], [0], [1], [0, 0, 1, 1], [], []>} : vector<16x32xf32>, vector<32x64xf32>, vector<16x64xf32> -> vector<16x64xf32>
    %cst_123 = arith.constant 5.000000e-01 : f32
    %394 = vector.broadcast %cst_123 : f32 to vector<16x64xf32>
    %395 = arith.mulf %394, %392 : vector<16x64xf32>
    %cst_124 = arith.constant 0.707106769 : f32
    %396 = vector.broadcast %cst_124 : f32 to vector<16x64xf32>
    %397 = arith.mulf %392, %396 : vector<16x64xf32>
    %cst_125 = arith.constant 0.000000e+00 : f32
    %398 = vector.broadcast %cst_125 : f32 to vector<16x64xf32>
    %399 = arith.cmpf oge, %397, %398 : vector<16x64xf32>
    %cst_126 = arith.constant 1.000000e+00 : f32
    %cst_127 = arith.constant -1.000000e+00 : f32
    %400 = vector.broadcast %cst_126 : f32 to vector<16x64xf32>
    %401 = vector.broadcast %cst_127 : f32 to vector<16x64xf32>
    %402 = arith.select %399, %400, %401 : vector<16x64xi1>, vector<16x64xf32>
    %403 = math.absf %397 : vector<16x64xf32>
    %cst_128 = arith.constant 0.327591091 : f32
    %404 = vector.broadcast %cst_128 : f32 to vector<16x64xf32>
    %405 = arith.mulf %404, %403 : vector<16x64xf32>
    %cst_129 = arith.constant 1.000000e+00 : f32
    %406 = vector.broadcast %cst_129 : f32 to vector<16x64xf32>
    %407 = arith.addf %406, %405 : vector<16x64xf32>
    %cst_130 = arith.constant 1.000000e+00 : f32
    %408 = vector.broadcast %cst_130 : f32 to vector<16x64xf32>
    %409 = arith.divf %408, %407 : vector<16x64xf32>
    %cst_131 = arith.constant 1.06140542 : f32
    %410 = vector.broadcast %cst_131 : f32 to vector<16x64xf32>
    %411 = arith.mulf %410, %409 : vector<16x64xf32>
    %cst_132 = arith.constant -1.45315206 : f32
    %412 = vector.broadcast %cst_132 : f32 to vector<16x64xf32>
    %413 = arith.addf %411, %412 : vector<16x64xf32>
    %414 = arith.mulf %413, %409 : vector<16x64xf32>
    %cst_133 = arith.constant 1.42141378 : f32
    %415 = vector.broadcast %cst_133 : f32 to vector<16x64xf32>
    %416 = arith.addf %414, %415 : vector<16x64xf32>
    %417 = arith.mulf %416, %409 : vector<16x64xf32>
    %cst_134 = arith.constant -0.284496725 : f32
    %418 = vector.broadcast %cst_134 : f32 to vector<16x64xf32>
    %419 = arith.addf %417, %418 : vector<16x64xf32>
    %420 = arith.mulf %419, %409 : vector<16x64xf32>
    %cst_135 = arith.constant 0.254829586 : f32
    %421 = vector.broadcast %cst_135 : f32 to vector<16x64xf32>
    %422 = arith.addf %420, %421 : vector<16x64xf32>
    %423 = arith.mulf %422, %409 : vector<16x64xf32>
    %cst_136 = arith.constant 0.000000e+00 : f32
    %424 = vector.broadcast %cst_136 : f32 to vector<16x64xf32>
    %425 = arith.subf %424, %403 : vector<16x64xf32>
    %426 = arith.mulf %425, %403 : vector<16x64xf32>
    %427 = math.exp %426 : vector<16x64xf32>
    %428 = arith.mulf %423, %427 : vector<16x64xf32>
    %cst_137 = arith.constant 1.000000e+00 : f32
    %429 = vector.broadcast %cst_137 : f32 to vector<16x64xf32>
    %430 = arith.subf %429, %428 : vector<16x64xf32>
    %431 = arith.mulf %402, %430 : vector<16x64xf32>
    %cst_138 = arith.constant 1.000000e+00 : f32
    %432 = vector.broadcast %cst_138 : f32 to vector<16x64xf32>
    %433 = arith.addf %432, %431 : vector<16x64xf32>
    %434 = arith.mulf %395, %433 : vector<16x64xf32>
    %435 = arith.mulf %434, %393 : vector<16x64xf32>
    %cst_139 = arith.constant dense<0.000000e+00> : vector<16x32xf32>
    %436 = tpu.matmul %435, %371, %cst_139 {dimension_numbers = #tpu.dot_dimension_numbers<[1], [0], [0], [1], [0, 0, 1, 1], [], []>} : vector<16x64xf32>, vector<64x32xf32>, vector<16x32xf32> -> vector<16x32xf32>
    %437 = arith.addf %368, %436 : vector<16x32xf32>
    %438 = vector.shape_cast %437 : vector<16x32xf32> to vector<2x8x32xf32>
    %c2_140 = arith.constant 2 : index
    %c0_141 = arith.constant 0 : index
    %c0_142 = arith.constant 0 : index
    %c0_143 = arith.constant 0 : index
    %439 = vector.load %arg5[%c2_140, %c0_141, %c0_142, %c0_143] : memref<4x2x8x32xf32, #tpu.memory_space<vmem>>, vector<1x2x8x32xf32>
    %440 = vector.shape_cast %439 : vector<1x2x8x32xf32> to vector<2x8x32xf32>
    %441 = vector.shape_cast %438 : vector<2x8x32xf32> to vector<1x2x8x32xf32>
    tpu.vector_store %arg5[%c2_140, %c0_141, %c0_142, %c0_143], %441 {strides = array<i32>} : memref<4x2x8x32xf32, #tpu.memory_space<vmem>>, vector<1x2x8x32xf32>,
    %c69 = arith.constant 69 : index
    %c0_144 = arith.constant 0 : index
    %442 = vector.load %arg3[%c69, %c0_144] : memref<456x32xf32, #tpu.memory_space<vmem>>, vector<1x32xf32>
    %cst_145 = arith.constant dense<0.000000e+00> : vector<16xf32>
    %443 = vector.multi_reduction <add>, %437, %cst_145 [1] : vector<16x32xf32> to vector<16xf32>
    %444 = vector.shape_cast %443 : vector<16xf32> to vector<16x1xf32>
    %cst_146 = arith.constant 3.200000e+01 : f32
    %445 = vector.broadcast %cst_146 : f32 to vector<16x1xf32>
    %446 = arith.divf %444, %445 : vector<16x1xf32>
    %447 = vector.broadcast %446 : vector<16x1xf32> to vector<16x32xf32>
    %448 = arith.subf %437, %447 : vector<16x32xf32>
    %449 = arith.mulf %448, %448 : vector<16x32xf32>
    %cst_147 = arith.constant dense<0.000000e+00> : vector<16xf32>
    %450 = vector.multi_reduction <add>, %449, %cst_147 [1] : vector<16x32xf32> to vector<16xf32>
    %451 = vector.shape_cast %450 : vector<16xf32> to vector<16x1xf32>
    %cst_148 = arith.constant 3.200000e+01 : f32
    %452 = vector.broadcast %cst_148 : f32 to vector<16x1xf32>
    %453 = arith.divf %451, %452 : vector<16x1xf32>
    %454 = vector.broadcast %446 : vector<16x1xf32> to vector<16x32xf32>
    %455 = arith.subf %437, %454 : vector<16x32xf32>
    %cst_149 = arith.constant 9.99999974E-6 : f32
    %456 = vector.broadcast %cst_149 : f32 to vector<16x1xf32>
    %457 = arith.addf %453, %456 : vector<16x1xf32>
    %458 = math.rsqrt %457 : vector<16x1xf32>
    %459 = vector.broadcast %458 : vector<16x1xf32> to vector<16x32xf32>
    %460 = arith.mulf %455, %459 : vector<16x32xf32>
    %461 = vector.broadcast %442 : vector<1x32xf32> to vector<16x32xf32>
    %462 = arith.mulf %460, %461 : vector<16x32xf32>
    %463 = vector.shape_cast %462 : vector<16x32xf32> to vector<2x8x32xf32>
    %c3 = arith.constant 3 : index
    %c0_150 = arith.constant 0 : index
    %c0_151 = arith.constant 0 : index
    %c0_152 = arith.constant 0 : index
    %464 = vector.load %arg5[%c3, %c0_150, %c0_151, %c0_152] : memref<4x2x8x32xf32, #tpu.memory_space<vmem>>, vector<1x2x8x32xf32>
    %465 = vector.shape_cast %464 : vector<1x2x8x32xf32> to vector<2x8x32xf32>
    %466 = vector.shape_cast %463 : vector<2x8x32xf32> to vector<1x2x8x32xf32>
    tpu.vector_store %arg5[%c3, %c0_150, %c0_151, %c0_152], %466 {strides = array<i32>} : memref<4x2x8x32xf32, #tpu.memory_space<vmem>>, vector<1x2x8x32xf32>,
    return
  }
}

</mosaic_0001>

<llo_original>
// kernel: midi_modernbert_forward.1
$region0: #{midi_modernbert_forward.1}
  #allocation0 [shape = 'u32[]', space=smem, size = 0x4, offset = 0x4, fixed_abs, tag = 'smem constant byte address 0x4 - core index']
  #allocation1 [shape = 'u32[144,128]{1,0:T(1,128)}', space=vmem, size = 0x12000, scoped, tag = 'internal scratch']
  %s0 = inlined_call_operand.vmem [shape: s32[2,8,4], index: 0, kind: input, shape index: {}]
  %s1 = inlined_call_operand.vmem [shape: f32[2,1,8], index: 1, kind: input, shape index: {}]
  %s2 = inlined_call_operand.vmem [shape: f32[3,16,32], index: 2, kind: input, shape index: {}]
  %s3 = inlined_call_operand.vmem [shape: f32[456,32], index: 3, kind: input, shape index: {}]
  %s4 = inlined_call_operand.hbm [shape: f32[128,64], index: 4, kind: input, shape index: {}]
  %s5 = inlined_call_operand.vmem [shape: f32[4,2,8,32], index: 5, kind: output, shape index: {}]
  %s6 = sld [smem:[#allocation0]]
  $region34: #{midi_modernbert_forward.1} parent=0
    _
  %s8 = ssub.s32 1, %s6
  %s9 = scalar_select 0, %s8, %s6
  $region1: #{midi_modernbert_forward.1} parent=0
    #allocation2 [shape = 'u8[65536]{0}', space=vmem, size = 0x10000, scoped, tag = 'input window, operand 4, single buffered']
    #allocation3 [shape = 's32[1]{0}', space=sflag, size = 0x4, scoped, tag = 'scoped memory for midi_modernbert_forward.1']
    %10 = vsyncpa [#allocation3], 0
    // Predicated region
    $region2: #{midi_modernbert_forward.1} parent=1 // pred_check
      _
    $region3: #{midi_modernbert_forward.1} parent=1 // pred_check_branch
      %12 = sbr.rel (0) target = $region5
    $region4: #{midi_modernbert_forward.1} parent=1 // pred_region
      _
    $region5: #{midi_modernbert_forward.1} parent=1 // pred_fallthru
      _
    // Predicated region
    $region6: #{midi_modernbert_forward.1} parent=1 // pred_check
      _
    $region7: #{midi_modernbert_forward.1} parent=1 // pred_check_branch
      %14 = sbr.rel (0) target = $region9
    $region8: #{midi_modernbert_forward.1} parent=1 // pred_region
      _
    $region9: #{midi_modernbert_forward.1} parent=1 // pred_fallthru
      _
    // Predicated region
    $region10: #{midi_modernbert_forward.1} parent=1 // pred_check
      _
    $region11: #{midi_modernbert_forward.1} parent=1 // pred_check_branch
      %16 = sbr.rel (0) target = $region13
    $region12: #{midi_modernbert_forward.1} parent=1 // pred_region
      _
    $region13: #{midi_modernbert_forward.1} parent=1 // pred_fallthru
      _
    // Predicated region
    $region14: #{midi_modernbert_forward.1} parent=1 // pred_check
      _
    $region15: #{midi_modernbert_forward.1} parent=1 // pred_check_branch
      %18 = sbr.rel (0) target = $region17
    $region16: #{midi_modernbert_forward.1} parent=1 // pred_region
      _
    $region17: #{midi_modernbert_forward.1} parent=1 // pred_fallthru
      _
    // Predicated region
    $region18: #{midi_modernbert_forward.1} parent=1 // pred_check
      _
    $region19: #{midi_modernbert_forward.1} parent=1 // pred_check_branch
      %20 = sbr.rel (0) target = $region21
    $region20: #{midi_modernbert_forward.1} parent=1 // pred_region
      %s22 = ssub.s32 2048, 2048
      %23 = vsyncadd [#allocation3], %s22
      %s24 = sshll.u32 [#allocation2], 4
      %s25 = int_to_ptr.vmem [resolvable:$true] %s24
      %30 = dma.hbm_to_vmem [thread:$0]  %s4, 2048, %s25, [#allocation3], 128, 128, 8
    $region21: #{midi_modernbert_forward.1} parent=1 // pred_fallthru
      _
    // Predicated region
    $region22: #{midi_modernbert_forward.1} parent=1 // pred_check
      _
    $region23: #{midi_modernbert_forward.1} parent=1 // pred_check_branch
      %32 = sbr.rel (0) target = $region25
    $region24: #{midi_modernbert_forward.1} parent=1 // pred_region
      %33 = dma.done [#allocation3], 2048
    $region25: #{midi_modernbert_forward.1} parent=1 // pred_fallthru
      _
    %v34 = vld [vmem:[%s0] sm:$0xff]
    %v35 = vld [vmem:[%s0 + $0x8] sm:$0xff]
    %v36 = vlaneseq
    %v37 = vand.u32 %v36, 127
    %vm38 = vcmp.eq.s32.totalorder %v37, 60
    %v39 = vsel %vm38, 1, 0
    %v40 = vcvt.s32.f32 %v39
    %41 = vset.pattern.permute.xlu0 0
    %42 = vperm.xlu0 %41, %v34
    %v43 = vpop.permute.xlu0 %42
    %44 = vset.pattern.permute.xlu0 0
    %45 = vperm.xlu0 %44, %v35
    %v46 = vpop.permute.xlu0 %45
    %vm47 = vcmp.eq.s32.totalorder %v43, %v37
    %vm48 = vcmp.eq.s32.totalorder %v46, %v37
    %v49 = vsel %vm47, 1, 0
    %v50 = vsel %vm48, 1, 0
    %v51 = vcvt.s32.f32 %v49
    %v52 = vcvt.s32.f32 %v50
    %v53 = vadd.f32 %v40, %v51
    %v54 = vadd.f32 %v40, %v52
    %55 = vset.pattern.permute.xlu0 1
    %56 = vperm.xlu0 %55, %v34
    %v57 = vpop.permute.xlu0 %56
    %58 = vset.pattern.permute.xlu0 1
    %59 = vperm.xlu0 %58, %v35
    %v60 = vpop.permute.xlu0 %59
    %vm61 = vcmp.eq.s32.totalorder %v57, %v37
    %vm62 = vcmp.eq.s32.totalorder %v60, %v37
    %v63 = vsel %vm61, 1, 0
    %v64 = vsel %vm62, 1, 0
    %v65 = vcvt.s32.f32 %v63
    %v66 = vcvt.s32.f32 %v64
    %v67 = vadd.f32 %v53, %v65
    %v68 = vadd.f32 %v54, %v66
    %69 = vset.pattern.permute.xlu0 2
    %70 = vperm.xlu0 %69, %v34
    %v71 = vpop.permute.xlu0 %70
    %72 = vset.pattern.permute.xlu0 2
    %73 = vperm.xlu0 %72, %v35
    %v74 = vpop.permute.xlu0 %73
    %vm75 = vcmp.eq.s32.totalorder %v71, %v37
    %vm76 = vcmp.eq.s32.totalorder %v74, %v37
    %v77 = vsel %vm75, 1, 0
    %v78 = vsel %vm76, 1, 0
    %v79 = vcvt.s32.f32 %v77
    %v80 = vcvt.s32.f32 %v78
    %v81 = vadd.f32 %v67, %v79
    %v82 = vadd.f32 %v68, %v80
    %83 = vset.pattern.permute.xlu0 3
    %84 = vperm.xlu0 %83, %v34
    %v85 = vpop.permute.xlu0 %84
    %86 = vset.pattern.permute.xlu0 3
    %87 = vperm.xlu0 %86, %v35
    %v88 = vpop.permute.xlu0 %87
    %vm89 = vcmp.eq.s32.totalorder %v85, %v37
    %vm90 = vcmp.eq.s32.totalorder %v88, %v37
    %v91 = vsel %vm89, 1, 0
    %v92 = vsel %vm90, 1, 0
    %v93 = vcvt.s32.f32 %v91
    %v94 = vcvt.s32.f32 %v92
    %v95 = vadd.f32 %v81, %v93
    %v96 = vadd.f32 %v82, %v94
    %v97 = vld [vmem:[%s3] sm:$0xff]
    %v98 = vld [vmem:[%s3 + $0x8] sm:$0xff]
    %v99 = vld [vmem:[%s3 + $0x10] sm:$0xff]
    %v100 = vld [vmem:[%s3 + $0x18] sm:$0xff]
    %v101 = vld [vmem:[%s3 + $0x20] sm:$0xff]
    %v102 = vld [vmem:[%s3 + $0x28] sm:$0xff]
    %v103 = vld [vmem:[%s3 + $0x30] sm:$0xff]
    %v104 = vld [vmem:[%s3 + $0x38] sm:$0xff]
    %vm105 = vcmask 523264
    %v107 = vsel %vm105, %v95, 0
    %v110 = vsel %vm105, %v96, 0
    %112 = vmatprep.subr.mxu0 0.0
    %113 = vmatpush1.msra.mxu0 %v97
    %114 = vmatprep.subr.mxu0 0.0
    %115 = vmatpush1.msra.mxu0 %v98
    %116 = vmatprep.subr.mxu0 0.0
    %117 = vmatpush1.msra.mxu0 %v99
    %118 = vmatprep.subr.mxu0 0.0
    %119 = vmatpush1.msra.mxu0 %v100
    %120 = vmatprep.subr.mxu0 0.0
    %121 = vmatpush1.msra.mxu0 %v101
    %122 = vmatprep.subr.mxu0 0.0
    %123 = vmatpush1.msra.mxu0 %v102
    %124 = vmatprep.subr.mxu0 0.0
    %125 = vmatpush1.msra.mxu0 %v103
    %126 = vmatprep.subr.mxu0 0.0
    %127 = vmatpush1.msra.mxu0 %v104
    %128 = vmatprep.subr.mxu0 0.0
    %129 = vmatpush1.msra.mxu0 0.0
    %130 = vmatprep.subr.mxu0 0.0
    %131 = vmatpush1.msra.mxu0 0.0
    %132 = vmatprep.subr.mxu0 0.0
    %133 = vmatpush1.msra.mxu0 0.0
    %134 = vmatprep.subr.mxu0 0.0
    %135 = vmatpush1.msra.mxu0 0.0
    %136 = vmatprep.subr.mxu0 0.0
    %137 = vmatpush1.msra.mxu0 0.0
    %138 = vmatprep.subr.mxu0 0.0
    %139 = vmatpush1.msra.mxu0 0.0
    %140 = vmatprep.subr.mxu0 0.0
    %141 = vmatpush1.msra.mxu0 0.0
    %142 = vmatprep.subr.mxu0 0.0
    %143 = vmatpush1.msra.mxu0 0.0
    %144 = vmatprep.subr.mxu0 0.0
    %145 = vmatpush1.msra.mxu0 0.0
    %146 = vmatprep.subr.mxu0 0.0
    %147 = vmatpush1.msra.mxu0 0.0
    %148 = vmatprep.subr.mxu0 0.0
    %149 = vmatpush1.msra.mxu0 0.0
    %150 = vmatprep.subr.mxu0 0.0
    %151 = vmatpush1.msra.mxu0 0.0
    %152 = vmatprep.subr.mxu0 0.0
    %153 = vmatpush1.msra.mxu0 0.0
    %154 = vmatprep.subr.mxu0 0.0
    %155 = vmatpush1.msra.mxu0 0.0
    %156 = vmatprep.subr.mxu0 0.0
    %157 = vmatpush1.msra.mxu0 0.0
    %158 = vmatprep.subr.mxu0 0.0
    %159 = vmatpush1.msra.mxu0 0.0
    %160 = vmatprep.subr.mxu0 0.0
    %161 = vmatpush1.msra.mxu0 0.0
    %162 = vmatprep.subr.mxu0 0.0
    %163 = vmatpush1.msra.mxu0 0.0
    %164 = vmatprep.subr.mxu0 0.0
    %165 = vmatpush1.msra.mxu0 0.0
    %166 = vmatprep.subr.mxu0 0.0
    %167 = vmatpush1.msra.mxu0 0.0
    %168 = vmatprep.subr.mxu0 0.0
    %169 = vmatpush1.msra.mxu0 0.0
    %170 = vmatprep.subr.mxu0 0.0
    %171 = vmatpush1.msra.mxu0 0.0
    %172 = vmatprep.subr.mxu0 0.0
    %173 = vmatpush1.msra.mxu0 0.0
    %174 = vmatprep.subr.mxu0 0.0
    %175 = vmatpush1.msra.mxu0 0.0
    %176 = vmatprep.mubr.f32.mxu0 0.0
    %177 = vmatmul.mubr.f32.gmra.mrb[0].mxu0 %v107
    %v178 = vpop.f32.mrb[0].mxu0
    %v179 = vadd.f32 0.0, %v178
    %v180 = vpop.f32.mrb[0].mxu0
    %181 = vmatprep.mubr.f32.mxu0 0.0
    %182 = vmatmul.mubr.f32.gmra.mrb[0].mxu0 %v110
    %v183 = vpop.f32.mrb[0].mxu0
    %v184 = vadd.f32 0.0, %v183
    %v185 = vpop.f32.mrb[0].mxu0
    %186 = vdwg.mxu0
    %v187 = vld [vmem:[%s3 + $0x40] sm:$0x1]
    %vm188 = vcmask 261120
    %v189 = vsel %vm188, %v179, 0.0
    %190 = vadd.xlane.f32.xlu0 %v189
    %v191 = vpop.xlane.xlu0 %190
    %v192 = vsel %vm188, %v184, 0.0
    %193 = vadd.xlane.f32.xlu0 %v192
    %v194 = vpop.xlane.xlu0 %193
    %v195 = vrcp.pop 32.0
    %v196 = vmul.f32 %v191, %v195
    %v197 = vmul.f32 %v194, %v195
    %v198 = vsub.f32 %v179, %v196
    %v199 = vsub.f32 %v184, %v197
    %v200 = vmul.f32 %v198, %v198
    %v201 = vmul.f32 %v199, %v199
    %v202 = vsel %vm188, %v200, 0.0
    %203 = vadd.xlane.f32.xlu0 %v202
    %v204 = vpop.xlane.xlu0 %203
    %v205 = vsel %vm188, %v201, 0.0
    %206 = vadd.xlane.f32.xlu0 %v205
    %v207 = vpop.xlane.xlu0 %206
    %v208 = vmul.f32 %v204, %v195
    %v209 = vmul.f32 %v207, %v195
    %v210 = vadd.f32 %v208, 1e-05
    %v211 = vadd.f32 %v209, 1e-05
    %v212 = vrsqrt.pop %v210
    %v213 = vrsqrt.pop %v211
    %v214 = vmul.f32 %v198, %v212
    %v215 = vmul.f32 %v199, %v213
    %v216 = vlaneseq
    %v217 = vshrl.u32 %v216, 7
    %v218 = vsub.s32 0, %v217
    %v219 = vrot.slane %v187, %v218
    %v220 = vmul.f32 %v214, %v219
    %v221 = vmul.f32 %v215, %v219
    %222 = vst.msk [vmem:[%s5] sm:$0xff] %vm188, %v220
    %223 = vst.msk [vmem:[%s5 + $0x8] sm:$0xff] %vm188, %v221
    %v224 = vld [vmem:[%s2] sm:$0xff]
    %v225 = vld [vmem:[%s2 + $0x8] sm:$0xff]
    %s226 = scalar_lea.vmem %s2, 16
    %v227 = vld [vmem:[%s226] sm:$0xff]
    %v228 = vld [vmem:[%s226 + $0x8] sm:$0xff]
    %s229 = scalar_lea.vmem %s2, 32
    %v230 = vld [vmem:[%s229] sm:$0xff]
    %v231 = vld [vmem:[%s229 + $0x8] sm:$0xff]
    %v232 = vld [vmem:[%s1] sm:$0x1]
    %v233 = vld [vmem:[%s1 + $0x1] sm:$0x1]
    %v234 = vld [vmem:[%s3 + $0x48] sm:$0xff]
    %v235 = vld [vmem:[%s3 + $0x50] sm:$0xff]
    %v236 = vld [vmem:[%s3 + $0x58] sm:$0xff]
    %v237 = vld [vmem:[%s3 + $0x60] sm:$0xff]
    %v238 = vld [vmem:[%s3 + $0x68] sm:$0xff]
    %v239 = vld [vmem:[%s3 + $0x70] sm:$0xff]
    %v240 = vld [vmem:[%s3 + $0x78] sm:$0xff]
    %v241 = vld [vmem:[%s3 + $0x80] sm:$0xff]
    %v242 = vld [vmem:[%s3 + $0x88] sm:$0xff]
    %v243 = vld [vmem:[%s3 + $0x90] sm:$0xff]
    %v244 = vld [vmem:[%s3 + $0x98] sm:$0xff]
    %v245 = vld [vmem:[%s3 + $0xa0] sm:$0xff]
    %v246 = vld [vmem:[%s3 + $0xa8] sm:$0xff]
    %v247 = vld [vmem:[%s3 + $0xb0] sm:$0xff]
    %v248 = vld [vmem:[%s3 + $0xb8] sm:$0xff]
    %v249 = vld [vmem:[%s3 + $0xc0] sm:$0xff]
    %v250 = vld [vmem:[%s3 + $0x42] sm:$0x1]
    %v252 = vsel %vm188, %v220, 0
    %v255 = vsel %vm188, %v221, 0
    %257 = vmatprep.subr.mxu0 0.0
    %258 = vmatpush1.msra.mxu0 %v234
    %259 = vmatprep.subr.mxu0 0.0
    %260 = vmatpush1.msra.mxu0 %v235
    %261 = vmatprep.subr.mxu0 0.0
    %262 = vmatpush1.msra.mxu0 %v236
    %263 = vmatprep.subr.mxu0 0.0
    %264 = vmatpush1.msra.mxu0 %v237
    %265 = vmatprep.subr.mxu0 0.0
    %266 = vmatpush1.msra.mxu0 0.0
    %267 = vmatprep.subr.mxu0 0.0
    %268 = vmatpush1.msra.mxu0 0.0
    %269 = vmatprep.subr.mxu0 0.0
    %270 = vmatpush1.msra.mxu0 0.0
    %271 = vmatprep.subr.mxu0 0.0
    %272 = vmatpush1.msra.mxu0 0.0
    %273 = vmatprep.subr.mxu0 0.0
    %274 = vmatpush1.msra.mxu0 0.0
    %275 = vmatprep.subr.mxu0 0.0
    %276 = vmatpush1.msra.mxu0 0.0
    %277 = vmatprep.subr.mxu0 0.0
    %278 = vmatpush1.msra.mxu0 0.0
    %279 = vmatprep.subr.mxu0 0.0
    %280 = vmatpush1.msra.mxu0 0.0
    %281 = vmatprep.subr.mxu0 0.0
    %282 = vmatpush1.msra.mxu0 0.0
    %283 = vmatprep.subr.mxu0 0.0
    %284 = vmatpush1.msra.mxu0 0.0
    %285 = vmatprep.subr.mxu0 0.0
    %286 = vmatpush1.msra.mxu0 0.0
    %287 = vmatprep.subr.mxu0 0.0
    %288 = vmatpush1.msra.mxu0 0.0
    %289 = vmatprep.subr.mxu0 0.0
    %290 = vmatpush1.msra.mxu0 0.0
    %291 = vmatprep.subr.mxu0 0.0
    %292 = vmatpush1.msra.mxu0 0.0
    %293 = vmatprep.subr.mxu0 0.0
    %294 = vmatpush1.msra.mxu0 0.0
    %295 = vmatprep.subr.mxu0 0.0
    %296 = vmatpush1.msra.mxu0 0.0
    %297 = vmatprep.subr.mxu0 0.0
    %298 = vmatpush1.msra.mxu0 0.0
    %299 = vmatprep.subr.mxu0 0.0
    %300 = vmatpush1.msra.mxu0 0.0
    %301 = vmatprep.subr.mxu0 0.0
    %302 = vmatpush1.msra.mxu0 0.0
    %303 = vmatprep.subr.mxu0 0.0
    %304 = vmatpush1.msra.mxu0 0.0
    %305 = vmatprep.subr.mxu0 0.0
    %306 = vmatpush1.msra.mxu0 0.0
    %307 = vmatprep.subr.mxu0 0.0
    %308 = vmatpush1.msra.mxu0 0.0
    %309 = vmatprep.subr.mxu0 0.0
    %310 = vmatpush1.msra.mxu0 0.0
    %311 = vmatprep.subr.mxu0 0.0
    %312 = vmatpush1.msra.mxu0 0.0
    %313 = vmatprep.subr.mxu0 0.0
    %314 = vmatpush1.msra.mxu0 0.0
    %315 = vmatprep.subr.mxu0 0.0
    %316 = vmatpush1.msra.mxu0 0.0
    %317 = vmatprep.subr.mxu0 0.0
    %318 = vmatpush1.msra.mxu0 0.0
    %319 = vmatprep.subr.mxu0 0.0
    %320 = vmatpush1.msra.mxu0 0.0
    %321 = vmatprep.mubr.f32.mxu0 0.0
    %322 = vmatmul.mubr.f32.gmra.mrb[0].mxu0 %v252
    %v323 = vpop.f32.mrb[0].mxu0
    %v324 = vadd.f32 0.0, %v323
    %v325 = vpop.f32.mrb[0].mxu0
    %326 = vmatprep.mubr.f32.mxu0 0.0
    %327 = vmatmul.mubr.f32.gmra.mrb[0].mxu0 %v255
    %v328 = vpop.f32.mrb[0].mxu0
    %v329 = vadd.f32 0.0, %v328
    %v330 = vpop.f32.mrb[0].mxu0
    %331 = vdwg.mxu0
    %332 = vmatprep.subr.mxu0 0.0
    %333 = vmatpush1.msra.mxu0 %v238
    %334 = vmatprep.subr.mxu0 0.0
    %335 = vmatpush1.msra.mxu0 %v239
    %336 = vmatprep.subr.mxu0 0.0
    %337 = vmatpush1.msra.mxu0 %v240
    %338 = vmatprep.subr.mxu0 0.0
    %339 = vmatpush1.msra.mxu0 %v241
    %340 = vmatprep.subr.mxu0 0.0
    %341 = vmatpush1.msra.mxu0 0.0
    %342 = vmatprep.subr.mxu0 0.0
    %343 = vmatpush1.msra.mxu0 0.0
    %344 = vmatprep.subr.mxu0 0.0
    %345 = vmatpush1.msra.mxu0 0.0
    %346 = vmatprep.subr.mxu0 0.0
    %347 = vmatpush1.msra.mxu0 0.0
    %348 = vmatprep.subr.mxu0 0.0
    %349 = vmatpush1.msra.mxu0 0.0
    %350 = vmatprep.subr.mxu0 0.0
    %351 = vmatpush1.msra.mxu0 0.0
    %352 = vmatprep.subr.mxu0 0.0
    %353 = vmatpush1.msra.mxu0 0.0
    %354 = vmatprep.subr.mxu0 0.0
    %355 = vmatpush1.msra.mxu0 0.0
    %356 = vmatprep.subr.mxu0 0.0
    %357 = vmatpush1.msra.mxu0 0.0
    %358 = vmatprep.subr.mxu0 0.0
    %359 = vmatpush1.msra.mxu0 0.0
    %360 = vmatprep.subr.mxu0 0.0
    %361 = vmatpush1.msra.mxu0 0.0
    %362 = vmatprep.subr.mxu0 0.0
    %363 = vmatpush1.msra.mxu0 0.0
    %364 = vmatprep.subr.mxu0 0.0
    %365 = vmatpush1.msra.mxu0 0.0
    %366 = vmatprep.subr.mxu0 0.0
    %367 = vmatpush1.msra.mxu0 0.0
    %368 = vmatprep.subr.mxu0 0.0
    %369 = vmatpush1.msra.mxu0 0.0
    %370 = vmatprep.subr.mxu0 0.0
    %371 = vmatpush1.msra.mxu0 0.0
    %372 = vmatprep.subr.mxu0 0.0
    %373 = vmatpush1.msra.mxu0 0.0
    %374 = vmatprep.subr.mxu0 0.0
    %375 = vmatpush1.msra.mxu0 0.0
    %376 = vmatprep.subr.mxu0 0.0
    %377 = vmatpush1.msra.mxu0 0.0
    %378 = vmatprep.subr.mxu0 0.0
    %379 = vmatpush1.msra.mxu0 0.0
    %380 = vmatprep.subr.mxu0 0.0
    %381 = vmatpush1.msra.mxu0 0.0
    %382 = vmatprep.subr.mxu0 0.0
    %383 = vmatpush1.msra.mxu0 0.0
    %384 = vmatprep.subr.mxu0 0.0
    %385 = vmatpush1.msra.mxu0 0.0
    %386 = vmatprep.subr.mxu0 0.0
    %387 = vmatpush1.msra.mxu0 0.0
    %388 = vmatprep.subr.mxu0 0.0
    %389 = vmatpush1.msra.mxu0 0.0
    %390 = vmatprep.subr.mxu0 0.0
    %391 = vmatpush1.msra.mxu0 0.0
    %392 = vmatprep.subr.mxu0 0.0
    %393 = vmatpush1.msra.mxu0 0.0
    %394 = vmatprep.subr.mxu0 0.0
    %395 = vmatpush1.msra.mxu0 0.0
    %396 = vmatprep.mubr.f32.mxu0 0.0
    %397 = vmatmul.mubr.f32.gmra.mrb[0].mxu0 %v252
    %v398 = vpop.f32.mrb[0].mxu0
    %v399 = vadd.f32 0.0, %v398
    %v400 = vpop.f32.mrb[0].mxu0
    %401 = vmatprep.mubr.f32.mxu0 0.0
    %402 = vmatmul.mubr.f32.gmra.mrb[0].mxu0 %v255
    %v403 = vpop.f32.mrb[0].mxu0
    %v404 = vadd.f32 0.0, %v403
    %v405 = vpop.f32.mrb[0].mxu0
    %406 = vdwg.mxu0
    %407 = vmatprep.subr.mxu0 0.0
    %408 = vmatpush1.msra.mxu0 %v242
    %409 = vmatprep.subr.mxu0 0.0
    %410 = vmatpush1.msra.mxu0 %v243
    %411 = vmatprep.subr.mxu0 0.0
    %412 = vmatpush1.msra.mxu0 %v244
    %413 = vmatprep.subr.mxu0 0.0
    %414 = vmatpush1.msra.mxu0 %v245
    %415 = vmatprep.subr.mxu0 0.0
    %416 = vmatpush1.msra.mxu0 0.0
    %417 = vmatprep.subr.mxu0 0.0
    %418 = vmatpush1.msra.mxu0 0.0
    %419 = vmatprep.subr.mxu0 0.0
    %420 = vmatpush1.msra.mxu0 0.0
    %421 = vmatprep.subr.mxu0 0.0
    %422 = vmatpush1.msra.mxu0 0.0
    %423 = vmatprep.subr.mxu0 0.0
    %424 = vmatpush1.msra.mxu0 0.0
    %425 = vmatprep.subr.mxu0 0.0
    %426 = vmatpush1.msra.mxu0 0.0
    %427 = vmatprep.subr.mxu0 0.0
    %428 = vmatpush1.msra.mxu0 0.0
    %429 = vmatprep.subr.mxu0 0.0
    %430 = vmatpush1.msra.mxu0 0.0
    %431 = vmatprep.subr.mxu0 0.0
    %432 = vmatpush1.msra.mxu0 0.0
    %433 = vmatprep.subr.mxu0 0.0
    %434 = vmatpush1.msra.mxu0 0.0
    %435 = vmatprep.subr.mxu0 0.0
    %436 = vmatpush1.msra.mxu0 0.0
    %437 = vmatprep.subr.mxu0 0.0
    %438 = vmatpush1.msra.mxu0 0.0
    %439 = vmatprep.subr.mxu0 0.0
    %440 = vmatpush1.msra.mxu0 0.0
    %441 = vmatprep.subr.mxu0 0.0
    %442 = vmatpush1.msra.mxu0 0.0
    %443 = vmatprep.subr.mxu0 0.0
    %444 = vmatpush1.msra.mxu0 0.0
    %445 = vmatprep.subr.mxu0 0.0
    %446 = vmatpush1.msra.mxu0 0.0
    %447 = vmatprep.subr.mxu0 0.0
    %448 = vmatpush1.msra.mxu0 0.0
    %449 = vmatprep.subr.mxu0 0.0
    %450 = vmatpush1.msra.mxu0 0.0
    %451 = vmatprep.subr.mxu0 0.0
    %452 = vmatpush1.msra.mxu0 0.0
    %453 = vmatprep.subr.mxu0 0.0
    %454 = vmatpush1.msra.mxu0 0.0
    %455 = vmatprep.subr.mxu0 0.0
    %456 = vmatpush1.msra.mxu0 0.0
    %457 = vmatprep.subr.mxu0 0.0
    %458 = vmatpush1.msra.mxu0 0.0
    %459 = vmatprep.subr.mxu0 0.0
    %460 = vmatpush1.msra.mxu0 0.0
    %461 = vmatprep.subr.mxu0 0.0
    %462 = vmatpush1.msra.mxu0 0.0
    %463 = vmatprep.subr.mxu0 0.0
    %464 = vmatpush1.msra.mxu0 0.0
    %465 = vmatprep.subr.mxu0 0.0
    %466 = vmatpush1.msra.mxu0 0.0
    %467 = vmatprep.subr.mxu0 0.0
    %468 = vmatpush1.msra.mxu0 0.0
    %469 = vmatprep.subr.mxu0 0.0
    %470 = vmatpush1.msra.mxu0 0.0
    %471 = vmatprep.mubr.f32.mxu0 0.0
    %472 = vmatmul.mubr.f32.gmra.mrb[0].mxu0 %v252
    %v473 = vpop.f32.mrb[0].mxu0
    %v474 = vadd.f32 0.0, %v473
    %v475 = vpop.f32.mrb[0].mxu0
    %476 = vmatprep.mubr.f32.mxu0 0.0
    %477 = vmatmul.mubr.f32.gmra.mrb[0].mxu0 %v255
    %v478 = vpop.f32.mrb[0].mxu0
    %v479 = vadd.f32 0.0, %v478
    %v480 = vpop.f32.mrb[0].mxu0
    %481 = vdwg.mxu0
    %484 = vrot.lane.b32.xlu0 %v324, 124
    %v485 = vpop.permute.xlu0 %484
    %486 = vrot.lane.b32.xlu0 %v329, 124
    %v487 = vpop.permute.xlu0 %486
    %490 = vrot.lane.b32.xlu0 %v324, 28
    %v491 = vpop.permute.xlu0 %490
    %492 = vrot.lane.b32.xlu0 %v329, 28
    %v493 = vpop.permute.xlu0 %492
    %vm496 = vcmask 228352
    %v497 = vsel %vm496, %v485, %v491
    %v498 = vsel %vm496, %v487, %v493
    %499 = vrot.lane.b32.xlu0 %v324, 100
    %v500 = vpop.permute.xlu0 %499
    %501 = vrot.lane.b32.xlu0 %v329, 100
    %v502 = vpop.permute.xlu0 %501
    %505 = vrot.lane.b32.xlu0 %v324, 4
    %v506 = vpop.permute.xlu0 %505
    %507 = vrot.lane.b32.xlu0 %v329, 4
    %v508 = vpop.permute.xlu0 %507
    %vm511 = vcmask 31744
    %v512 = vsel %vm511, %v500, %v506
    %v513 = vsel %vm511, %v502, %v508
    %v514 = vmul.f32 %v324, %v224
    %v515 = vmul.f32 %v329, %v225
    %v516 = vmul.f32 %v497, %v227
    %v517 = vmul.f32 %v498, %v228
    %v518 = vadd.f32 %v514, %v516
    %v519 = vadd.f32 %v515, %v517
    %v520 = vmul.f32 %v512, %v230
    %v521 = vmul.f32 %v513, %v231
    %v522 = vadd.f32 %v518, %v520
    %v523 = vadd.f32 %v519, %v521
    %526 = vrot.lane.b32.xlu0 %v399, 124
    %v527 = vpop.permute.xlu0 %526
    %528 = vrot.lane.b32.xlu0 %v404, 124
    %v529 = vpop.permute.xlu0 %528
    %532 = vrot.lane.b32.xlu0 %v399, 28
    %v533 = vpop.permute.xlu0 %532
    %534 = vrot.lane.b32.xlu0 %v404, 28
    %v535 = vpop.permute.xlu0 %534
    %v538 = vsel %vm496, %v527, %v533
    %v539 = vsel %vm496, %v529, %v535
    %540 = vrot.lane.b32.xlu0 %v399, 100
    %v541 = vpop.permute.xlu0 %540
    %542 = vrot.lane.b32.xlu0 %v404, 100
    %v543 = vpop.permute.xlu0 %542
    %546 = vrot.lane.b32.xlu0 %v399, 4
    %v547 = vpop.permute.xlu0 %546
    %548 = vrot.lane.b32.xlu0 %v404, 4
    %v549 = vpop.permute.xlu0 %548
    %v552 = vsel %vm511, %v541, %v547
    %v553 = vsel %vm511, %v543, %v549
    %v554 = vmul.f32 %v399, %v224
    %v555 = vmul.f32 %v404, %v225
    %v556 = vmul.f32 %v538, %v227
    %v557 = vmul.f32 %v539, %v228
    %v558 = vadd.f32 %v554, %v556
    %v559 = vadd.f32 %v555, %v557
    %v560 = vmul.f32 %v552, %v230
    %v561 = vmul.f32 %v553, %v231
    %v562 = vadd.f32 %v558, %v560
    %v563 = vadd.f32 %v559, %v561
    %v566 = vlaneseq
    %v567 = vshrl.u32 %v566, 7
    %v568 = vsub.s32 0, %v567
    %v569 = vrot.slane %v232, %v568
    %v570 = vlaneseq
    %v571 = vshrl.u32 %v570, 7
    %v572 = vsub.s32 0, %v571
    %v573 = vrot.slane %v233, %v572
    %vm576 = vcmask 64512
    %v578 = vsel %vm576, %v522, 0
    %v581 = vsel %vm576, %v562, 0
    %583 = vmatprep.subr.mxu0 0.0
    %584 = vmatpush1.xpose.msra.mxu0 %v581
    %585 = vmatprep.subr.mxu0 0.0
    %586 = vmatpush1.xpose.msra.mxu0 0.0
    %587 = vmatprep.subr.mxu0 0.0
    %588 = vmatpush1.xpose.msra.mxu0 0.0
    %589 = vmatprep.subr.mxu0 0.0
    %590 = vmatpush1.xpose.msra.mxu0 0.0
    %591 = vmatprep.subr.mxu0 0.0
    %592 = vmatpush1.xpose.msra.mxu0 0.0
    %593 = vmatprep.subr.mxu0 0.0
    %594 = vmatpush1.xpose.msra.mxu0 0.0
    %595 = vmatprep.subr.mxu0 0.0
    %596 = vmatpush1.xpose.msra.mxu0 0.0
    %597 = vmatprep.subr.mxu0 0.0
    %598 = vmatpush1.xpose.msra.mxu0 0.0
    %599 = vmatprep.subr.mxu0 0.0
    %600 = vmatpush1.xpose.msra.mxu0 0.0
    %601 = vmatprep.subr.mxu0 0.0
    %602 = vmatpush1.xpose.msra.mxu0 0.0
    %603 = vmatprep.subr.mxu0 0.0
    %604 = vmatpush1.xpose.msra.mxu0 0.0
    %605 = vmatprep.subr.mxu0 0.0
    %606 = vmatpush1.xpose.msra.mxu0 0.0
    %607 = vmatprep.subr.mxu0 0.0
    %608 = vmatpush1.xpose.msra.mxu0 0.0
    %609 = vmatprep.subr.mxu0 0.0
    %610 = vmatpush1.xpose.msra.mxu0 0.0
    %611 = vmatprep.subr.mxu0 0.0
    %612 = vmatpush1.xpose.msra.mxu0 0.0
    %613 = vmatprep.subr.mxu0 0.0
    %614 = vmatpush1.xpose.msra.mxu0 0.0
    %615 = vmatprep.subr.mxu0 0.0
    %616 = vmatpush1.xpose.msra.mxu0 0.0
    %617 = vmatprep.subr.mxu0 0.0
    %618 = vmatpush1.xpose.msra.mxu0 0.0
    %619 = vmatprep.subr.mxu0 0.0
    %620 = vmatpush1.xpose.msra.mxu0 0.0
    %621 = vmatprep.subr.mxu0 0.0
    %622 = vmatpush1.xpose.msra.mxu0 0.0
    %623 = vmatprep.subr.mxu0 0.0
    %624 = vmatpush1.xpose.msra.mxu0 0.0
    %625 = vmatprep.subr.mxu0 0.0
    %626 = vmatpush1.xpose.msra.mxu0 0.0
    %627 = vmatprep.subr.mxu0 0.0
    %628 = vmatpush1.xpose.msra.mxu0 0.0
    %629 = vmatprep.subr.mxu0 0.0
    %630 = vmatpush1.xpose.msra.mxu0 0.0
    %631 = vmatprep.subr.mxu0 0.0
    %632 = vmatpush1.xpose.msra.mxu0 0.0
    %633 = vmatprep.subr.mxu0 0.0
    %634 = vmatpush1.xpose.msra.mxu0 0.0
    %635 = vmatprep.subr.mxu0 0.0
    %636 = vmatpush1.xpose.msra.mxu0 0.0
    %637 = vmatprep.subr.mxu0 0.0
    %638 = vmatpush1.xpose.msra.mxu0 0.0
    %639 = vmatprep.subr.mxu0 0.0
    %640 = vmatpush1.xpose.msra.mxu0 0.0
    %641 = vmatprep.subr.mxu0 0.0
    %642 = vmatpush1.xpose.msra.mxu0 0.0
    %643 = vmatprep.subr.mxu0 0.0
    %644 = vmatpush1.xpose.msra.mxu0 0.0
    %645 = vmatprep.subr.mxu0 0.0
    %646 = vmatpush1.xpose.msra.mxu0 0.0
    %647 = vmatprep.mubr.f32.mxu0 0.0
    %648 = vmatmul.mubr.f32.gmra.mrb[0].mxu0 %v578
    %v649 = vpop.f32.mrb[0].mxu0
    %v650 = vadd.f32 %v569, %v649
    %v651 = vpop.f32.mrb[0].mxu0
    %652 = vdwg.mxu0
    %v654 = vsel %vm576, %v523, 0
    %v657 = vsel %vm576, %v563, 0
    %659 = vmatprep.subr.mxu0 0.0
    %660 = vmatpush1.xpose.msra.mxu0 %v657
    %661 = vmatprep.subr.mxu0 0.0
    %662 = vmatpush1.xpose.msra.mxu0 0.0
    %663 = vmatprep.subr.mxu0 0.0
    %664 = vmatpush1.xpose.msra.mxu0 0.0
    %665 = vmatprep.subr.mxu0 0.0
    %666 = vmatpush1.xpose.msra.mxu0 0.0
    %667 = vmatprep.subr.mxu0 0.0
    %668 = vmatpush1.xpose.msra.mxu0 0.0
    %669 = vmatprep.subr.mxu0 0.0
    %670 = vmatpush1.xpose.msra.mxu0 0.0
    %671 = vmatprep.subr.mxu0 0.0
    %672 = vmatpush1.xpose.msra.mxu0 0.0
    %673 = vmatprep.subr.mxu0 0.0
    %674 = vmatpush1.xpose.msra.mxu0 0.0
    %675 = vmatprep.subr.mxu0 0.0
    %676 = vmatpush1.xpose.msra.mxu0 0.0
    %677 = vmatprep.subr.mxu0 0.0
    %678 = vmatpush1.xpose.msra.mxu0 0.0
    %679 = vmatprep.subr.mxu0 0.0
    %680 = vmatpush1.xpose.msra.mxu0 0.0
    %681 = vmatprep.subr.mxu0 0.0
    %682 = vmatpush1.xpose.msra.mxu0 0.0
    %683 = vmatprep.subr.mxu0 0.0
    %684 = vmatpush1.xpose.msra.mxu0 0.0
    %685 = vmatprep.subr.mxu0 0.0
    %686 = vmatpush1.xpose.msra.mxu0 0.0
    %687 = vmatprep.subr.mxu0 0.0
    %688 = vmatpush1.xpose.msra.mxu0 0.0
    %689 = vmatprep.subr.mxu0 0.0
    %690 = vmatpush1.xpose.msra.mxu0 0.0
    %691 = vmatprep.subr.mxu0 0.0
    %692 = vmatpush1.xpose.msra.mxu0 0.0
    %693 = vmatprep.subr.mxu0 0.0
    %694 = vmatpush1.xpose.msra.mxu0 0.0
    %695 = vmatprep.subr.mxu0 0.0
    %696 = vmatpush1.xpose.msra.mxu0 0.0
    %697 = vmatprep.subr.mxu0 0.0
    %698 = vmatpush1.xpose.msra.mxu0 0.0
    %699 = vmatprep.subr.mxu0 0.0
    %700 = vmatpush1.xpose.msra.mxu0 0.0
    %701 = vmatprep.subr.mxu0 0.0
    %702 = vmatpush1.xpose.msra.mxu0 0.0
    %703 = vmatprep.subr.mxu0 0.0
    %704 = vmatpush1.xpose.msra.mxu0 0.0
    %705 = vmatprep.subr.mxu0 0.0
    %706 = vmatpush1.xpose.msra.mxu0 0.0
    %707 = vmatprep.subr.mxu0 0.0
    %708 = vmatpush1.xpose.msra.mxu0 0.0
    %709 = vmatprep.subr.mxu0 0.0
    %710 = vmatpush1.xpose.msra.mxu0 0.0
    %711 = vmatprep.subr.mxu0 0.0
    %712 = vmatpush1.xpose.msra.mxu0 0.0
    %713 = vmatprep.subr.mxu0 0.0
    %714 = vmatpush1.xpose.msra.mxu0 0.0
    %715 = vmatprep.subr.mxu0 0.0
    %716 = vmatpush1.xpose.msra.mxu0 0.0
    %717 = vmatprep.subr.mxu0 0.0
    %718 = vmatpush1.xpose.msra.mxu0 0.0
    %719 = vmatprep.subr.mxu0 0.0
    %720 = vmatpush1.xpose.msra.mxu0 0.0
    %721 = vmatprep.subr.mxu0 0.0
    %722 = vmatpush1.xpose.msra.mxu0 0.0
    %723 = vmatprep.mubr.f32.mxu0 0.0
    %724 = vmatmul.mubr.f32.gmra.mrb[0].mxu0 %v654
    %v725 = vpop.f32.mrb[0].mxu0
    %v726 = vadd.f32 %v573, %v725
    %v727 = vpop.f32.mrb[0].mxu0
    %728 = vdwg.mxu0
    %v729 = vsel %vm576, %v650, -inf
    %730 = vmax.xlane.f32.xlu0 %v729
    %v731 = vpop.xlane.xlu0 %730
    %v732 = vsel %vm576, %v726, -inf
    %733 = vmax.xlane.f32.xlu0 %v732
    %v734 = vpop.xlane.xlu0 %733
    %v735 = vsub.f32 %v650, %v731
    %v736 = vsub.f32 %v726, %v734
    %v737 = vmul.f32 %v735, 1.442695
    %v738 = vpow.pop %v737
    %v739 = vmul.f32 %v736, 1.442695
    %v740 = vpow.pop %v739
    %v741 = vsel %vm576, %v738, 0.0
    %742 = vadd.xlane.f32.xlu0 %v741
    %v743 = vpop.xlane.xlu0 %742
    %v744 = vsel %vm576, %v740, 0.0
    %745 = vadd.xlane.f32.xlu0 %v744
    %v746 = vpop.xlane.xlu0 %745
    %v747 = vrcp.pop %v743
    %v748 = vrcp.pop %v746
    %v749 = vmul.f32 %v738, %v747
    %v750 = vmul.f32 %v740, %v748
    %v752 = vsel %vm576, %v749, 0
    %754 = vmatprep.subr.mxu0 0.0
    %755 = vmatpush1.msra.mxu0 %v474
    %756 = vmatprep.subr.mxu0 0.0
    %757 = vmatpush1.msra.mxu0 0.0
    %758 = vmatprep.subr.mxu0 0.0
    %759 = vmatpush1.msra.mxu0 0.0
    %760 = vmatprep.subr.mxu0 0.0
    %761 = vmatpush1.msra.mxu0 0.0
    %762 = vmatprep.subr.mxu0 0.0
    %763 = vmatpush1.msra.mxu0 0.0
    %764 = vmatprep.subr.mxu0 0.0
    %765 = vmatpush1.msra.mxu0 0.0
    %766 = vmatprep.subr.mxu0 0.0
    %767 = vmatpush1.msra.mxu0 0.0
    %768 = vmatprep.subr.mxu0 0.0
    %769 = vmatpush1.msra.mxu0 0.0
    %770 = vmatprep.subr.mxu0 0.0
    %771 = vmatpush1.msra.mxu0 0.0
    %772 = vmatprep.subr.mxu0 0.0
    %773 = vmatpush1.msra.mxu0 0.0
    %774 = vmatprep.subr.mxu0 0.0
    %775 = vmatpush1.msra.mxu0 0.0
    %776 = vmatprep.subr.mxu0 0.0
    %777 = vmatpush1.msra.mxu0 0.0
    %778 = vmatprep.subr.mxu0 0.0
    %779 = vmatpush1.msra.mxu0 0.0
    %780 = vmatprep.subr.mxu0 0.0
    %781 = vmatpush1.msra.mxu0 0.0
    %782 = vmatprep.subr.mxu0 0.0
    %783 = vmatpush1.msra.mxu0 0.0
    %784 = vmatprep.subr.mxu0 0.0
    %785 = vmatpush1.msra.mxu0 0.0
    %786 = vmatprep.subr.mxu0 0.0
    %787 = vmatpush1.msra.mxu0 0.0
    %788 = vmatprep.subr.mxu0 0.0
    %789 = vmatpush1.msra.mxu0 0.0
    %790 = vmatprep.subr.mxu0 0.0
    %791 = vmatpush1.msra.mxu0 0.0
    %792 = vmatprep.subr.mxu0 0.0
    %793 = vmatpush1.msra.mxu0 0.0
    %794 = vmatprep.subr.mxu0 0.0
    %795 = vmatpush1.msra.mxu0 0.0
    %796 = vmatprep.subr.mxu0 0.0
    %797 = vmatpush1.msra.mxu0 0.0
    %798 = vmatprep.subr.mxu0 0.0
    %799 = vmatpush1.msra.mxu0 0.0
    %800 = vmatprep.subr.mxu0 0.0
    %801 = vmatpush1.msra.mxu0 0.0
    %802 = vmatprep.subr.mxu0 0.0
    %803 = vmatpush1.msra.mxu0 0.0
    %804 = vmatprep.subr.mxu0 0.0
    %805 = vmatpush1.msra.mxu0 0.0
    %806 = vmatprep.subr.mxu0 0.0
    %807 = vmatpush1.msra.mxu0 0.0
    %808 = vmatprep.subr.mxu0 0.0
    %809 = vmatpush1.msra.mxu0 0.0
    %810 = vmatprep.subr.mxu0 0.0
    %811 = vmatpush1.msra.mxu0 0.0
    %812 = vmatprep.subr.mxu0 0.0
    %813 = vmatpush1.msra.mxu0 0.0
    %814 = vmatprep.subr.mxu0 0.0
    %815 = vmatpush1.msra.mxu0 0.0
    %816 = vmatprep.subr.mxu0 0.0
    %817 = vmatpush1.msra.mxu0 0.0
    %818 = vmatprep.mubr.f32.mxu0 0.0
    %819 = vmatmul.mubr.f32.gmra.mrb[0].mxu0 %v752
    %v820 = vpop.f32.mrb[0].mxu0
    %v821 = vadd.f32 0.0, %v820
    %v822 = vpop.f32.mrb[0].mxu0
    %823 = vdwg.mxu0
    %v825 = vsel %vm576, %v750, 0
    %827 = vmatprep.subr.mxu0 0.0
    %828 = vmatpush1.msra.mxu0 %v479
    %829 = vmatprep.subr.mxu0 0.0
    %830 = vmatpush1.msra.mxu0 0.0
    %831 = vmatprep.subr.mxu0 0.0
    %832 = vmatpush1.msra.mxu0 0.0
    %833 = vmatprep.subr.mxu0 0.0
    %834 = vmatpush1.msra.mxu0 0.0
    %835 = vmatprep.subr.mxu0 0.0
    %836 = vmatpush1.msra.mxu0 0.0
    %837 = vmatprep.subr.mxu0 0.0
    %838 = vmatpush1.msra.mxu0 0.0
    %839 = vmatprep.subr.mxu0 0.0
    %840 = vmatpush1.msra.mxu0 0.0
    %841 = vmatprep.subr.mxu0 0.0
    %842 = vmatpush1.msra.mxu0 0.0
    %843 = vmatprep.subr.mxu0 0.0
    %844 = vmatpush1.msra.mxu0 0.0
    %845 = vmatprep.subr.mxu0 0.0
    %846 = vmatpush1.msra.mxu0 0.0
    %847 = vmatprep.subr.mxu0 0.0
    %848 = vmatpush1.msra.mxu0 0.0
    %849 = vmatprep.subr.mxu0 0.0
    %850 = vmatpush1.msra.mxu0 0.0
    %851 = vmatprep.subr.mxu0 0.0
    %852 = vmatpush1.msra.mxu0 0.0
    %853 = vmatprep.subr.mxu0 0.0
    %854 = vmatpush1.msra.mxu0 0.0
    %855 = vmatprep.subr.mxu0 0.0
    %856 = vmatpush1.msra.mxu0 0.0
    %857 = vmatprep.subr.mxu0 0.0
    %858 = vmatpush1.msra.mxu0 0.0
    %859 = vmatprep.subr.mxu0 0.0
    %860 = vmatpush1.msra.mxu0 0.0
    %861 = vmatprep.subr.mxu0 0.0
    %862 = vmatpush1.msra.mxu0 0.0
    %863 = vmatprep.subr.mxu0 0.0
    %864 = vmatpush1.msra.mxu0 0.0
    %865 = vmatprep.subr.mxu0 0.0
    %866 = vmatpush1.msra.mxu0 0.0
    %867 = vmatprep.subr.mxu0 0.0
    %868 = vmatpush1.msra.mxu0 0.0
    %869 = vmatprep.subr.mxu0 0.0
    %870 = vmatpush1.msra.mxu0 0.0
    %871 = vmatprep.subr.mxu0 0.0
    %872 = vmatpush1.msra.mxu0 0.0
    %873 = vmatprep.subr.mxu0 0.0
    %874 = vmatpush1.msra.mxu0 0.0
    %875 = vmatprep.subr.mxu0 0.0
    %876 = vmatpush1.msra.mxu0 0.0
    %877 = vmatprep.subr.mxu0 0.0
    %878 = vmatpush1.msra.mxu0 0.0
    %879 = vmatprep.subr.mxu0 0.0
    %880 = vmatpush1.msra.mxu0 0.0
    %881 = vmatprep.subr.mxu0 0.0
    %882 = vmatpush1.msra.mxu0 0.0
    %883 = vmatprep.subr.mxu0 0.0
    %884 = vmatpush1.msra.mxu0 0.0
    %885 = vmatprep.subr.mxu0 0.0
    %886 = vmatpush1.msra.mxu0 0.0
    %887 = vmatprep.subr.mxu0 0.0
    %888 = vmatpush1.msra.mxu0 0.0
    %889 = vmatprep.subr.mxu0 0.0
    %890 = vmatpush1.msra.mxu0 0.0
    %891 = vmatprep.mubr.f32.mxu0 0.0
    %892 = vmatmul.mubr.f32.gmra.mrb[0].mxu0 %v825
    %v893 = vpop.f32.mrb[0].mxu0
    %v894 = vadd.f32 0.0, %v893
    %v895 = vpop.f32.mrb[0].mxu0
    %896 = vdwg.mxu0
    %897 = vrot.lane.b32.xlu0 %v522, 120
    %v898 = vpop.permute.xlu0 %897
    %899 = vrot.lane.b32.xlu0 %v562, 120
    %v900 = vpop.permute.xlu0 %899
    %v901 = vsel %vm576, %v898, 0
    %v903 = vsel %vm576, %v900, 0
    %905 = vmatprep.subr.mxu0 0.0
    %906 = vmatpush1.xpose.msra.mxu0 %v903
    %907 = vmatprep.subr.mxu0 0.0
    %908 = vmatpush1.xpose.msra.mxu0 0.0
    %909 = vmatprep.subr.mxu0 0.0
    %910 = vmatpush1.xpose.msra.mxu0 0.0
    %911 = vmatprep.subr.mxu0 0.0
    %912 = vmatpush1.xpose.msra.mxu0 0.0
    %913 = vmatprep.subr.mxu0 0.0
    %914 = vmatpush1.xpose.msra.mxu0 0.0
    %915 = vmatprep.subr.mxu0 0.0
    %916 = vmatpush1.xpose.msra.mxu0 0.0
    %917 = vmatprep.subr.mxu0 0.0
    %918 = vmatpush1.xpose.msra.mxu0 0.0
    %919 = vmatprep.subr.mxu0 0.0
    %920 = vmatpush1.xpose.msra.mxu0 0.0
    %921 = vmatprep.subr.mxu0 0.0
    %922 = vmatpush1.xpose.msra.mxu0 0.0
    %923 = vmatprep.subr.mxu0 0.0
    %924 = vmatpush1.xpose.msra.mxu0 0.0
    %925 = vmatprep.subr.mxu0 0.0
    %926 = vmatpush1.xpose.msra.mxu0 0.0
    %927 = vmatprep.subr.mxu0 0.0
    %928 = vmatpush1.xpose.msra.mxu0 0.0
    %929 = vmatprep.subr.mxu0 0.0
    %930 = vmatpush1.xpose.msra.mxu0 0.0
    %931 = vmatprep.subr.mxu0 0.0
    %932 = vmatpush1.xpose.msra.mxu0 0.0
    %933 = vmatprep.subr.mxu0 0.0
    %934 = vmatpush1.xpose.msra.mxu0 0.0
    %935 = vmatprep.subr.mxu0 0.0
    %936 = vmatpush1.xpose.msra.mxu0 0.0
    %937 = vmatprep.subr.mxu0 0.0
    %938 = vmatpush1.xpose.msra.mxu0 0.0
    %939 = vmatprep.subr.mxu0 0.0
    %940 = vmatpush1.xpose.msra.mxu0 0.0
    %941 = vmatprep.subr.mxu0 0.0
    %942 = vmatpush1.xpose.msra.mxu0 0.0
    %943 = vmatprep.subr.mxu0 0.0
    %944 = vmatpush1.xpose.msra.mxu0 0.0
    %945 = vmatprep.subr.mxu0 0.0
    %946 = vmatpush1.xpose.msra.mxu0 0.0
    %947 = vmatprep.subr.mxu0 0.0
    %948 = vmatpush1.xpose.msra.mxu0 0.0
    %949 = vmatprep.subr.mxu0 0.0
    %950 = vmatpush1.xpose.msra.mxu0 0.0
    %951 = vmatprep.subr.mxu0 0.0
    %952 = vmatpush1.xpose.msra.mxu0 0.0
    %953 = vmatprep.subr.mxu0 0.0
    %954 = vmatpush1.xpose.msra.mxu0 0.0
    %955 = vmatprep.subr.mxu0 0.0
    %956 = vmatpush1.xpose.msra.mxu0 0.0
    %957 = vmatprep.subr.mxu0 0.0
    %958 = vmatpush1.xpose.msra.mxu0 0.0
    %959 = vmatprep.subr.mxu0 0.0
    %960 = vmatpush1.xpose.msra.mxu0 0.0
    %961 = vmatprep.subr.mxu0 0.0
    %962 = vmatpush1.xpose.msra.mxu0 0.0
    %963 = vmatprep.subr.mxu0 0.0
    %964 = vmatpush1.xpose.msra.mxu0 0.0
    %965 = vmatprep.subr.mxu0 0.0
    %966 = vmatpush1.xpose.msra.mxu0 0.0
    %967 = vmatprep.subr.mxu0 0.0
    %968 = vmatpush1.xpose.msra.mxu0 0.0
    %969 = vmatprep.mubr.f32.mxu0 0.0
    %970 = vmatmul.mubr.f32.gmra.mrb[0].mxu0 %v901
    %v971 = vpop.f32.mrb[0].mxu0
    %v972 = vadd.f32 %v569, %v971
    %v973 = vpop.f32.mrb[0].mxu0
    %974 = vdwg.mxu0
    %975 = vrot.lane.b32.xlu0 %v523, 120
    %v976 = vpop.permute.xlu0 %975
    %977 = vrot.lane.b32.xlu0 %v563, 120
    %v978 = vpop.permute.xlu0 %977
    %v979 = vsel %vm576, %v976, 0
    %v981 = vsel %vm576, %v978, 0
    %983 = vmatprep.subr.mxu0 0.0
    %984 = vmatpush1.xpose.msra.mxu0 %v981
    %985 = vmatprep.subr.mxu0 0.0
    %986 = vmatpush1.xpose.msra.mxu0 0.0
    %987 = vmatprep.subr.mxu0 0.0
    %988 = vmatpush1.xpose.msra.mxu0 0.0
    %989 = vmatprep.subr.mxu0 0.0
    %990 = vmatpush1.xpose.msra.mxu0 0.0
    %991 = vmatprep.subr.mxu0 0.0
    %992 = vmatpush1.xpose.msra.mxu0 0.0
    %993 = vmatprep.subr.mxu0 0.0
    %994 = vmatpush1.xpose.msra.mxu0 0.0
    %995 = vmatprep.subr.mxu0 0.0
    %996 = vmatpush1.xpose.msra.mxu0 0.0
    %997 = vmatprep.subr.mxu0 0.0
    %998 = vmatpush1.xpose.msra.mxu0 0.0
    %999 = vmatprep.subr.mxu0 0.0
    %1000 = vmatpush1.xpose.msra.mxu0 0.0
    %1001 = vmatprep.subr.mxu0 0.0
    %1002 = vmatpush1.xpose.msra.mxu0 0.0
    %1003 = vmatprep.subr.mxu0 0.0
    %1004 = vmatpush1.xpose.msra.mxu0 0.0
    %1005 = vmatprep.subr.mxu0 0.0
    %1006 = vmatpush1.xpose.msra.mxu0 0.0
    %1007 = vmatprep.subr.mxu0 0.0
    %1008 = vmatpush1.xpose.msra.mxu0 0.0
    %1009 = vmatprep.subr.mxu0 0.0
    %1010 = vmatpush1.xpose.msra.mxu0 0.0
    %1011 = vmatprep.subr.mxu0 0.0
    %1012 = vmatpush1.xpose.msra.mxu0 0.0
    %1013 = vmatprep.subr.mxu0 0.0
    %1014 = vmatpush1.xpose.msra.mxu0 0.0
    %1015 = vmatprep.subr.mxu0 0.0
    %1016 = vmatpush1.xpose.msra.mxu0 0.0
    %1017 = vmatprep.subr.mxu0 0.0
    %1018 = vmatpush1.xpose.msra.mxu0 0.0
    %1019 = vmatprep.subr.mxu0 0.0
    %1020 = vmatpush1.xpose.msra.mxu0 0.0
    %1021 = vmatprep.subr.mxu0 0.0
    %1022 = vmatpush1.xpose.msra.mxu0 0.0
    %1023 = vmatprep.subr.mxu0 0.0
    %1024 = vmatpush1.xpose.msra.mxu0 0.0
    %1025 = vmatprep.subr.mxu0 0.0
    %1026 = vmatpush1.xpose.msra.mxu0 0.0
    %1027 = vmatprep.subr.mxu0 0.0
    %1028 = vmatpush1.xpose.msra.mxu0 0.0
    %1029 = vmatprep.subr.mxu0 0.0
    %1030 = vmatpush1.xpose.msra.mxu0 0.0
    %1031 = vmatprep.subr.mxu0 0.0
    %1032 = vmatpush1.xpose.msra.mxu0 0.0
    %1033 = vmatprep.subr.mxu0 0.0
    %1034 = vmatpush1.xpose.msra.mxu0 0.0
    %1035 = vmatprep.subr.mxu0 0.0
    %1036 = vmatpush1.xpose.msra.mxu0 0.0
    %1037 = vmatprep.subr.mxu0 0.0
    %1038 = vmatpush1.xpose.msra.mxu0 0.0
    %1039 = vmatprep.subr.mxu0 0.0
    %1040 = vmatpush1.xpose.msra.mxu0 0.0
    %1041 = vmatprep.subr.mxu0 0.0
    %1042 = vmatpush1.xpose.msra.mxu0 0.0
    %1043 = vmatprep.subr.mxu0 0.0
    %1044 = vmatpush1.xpose.msra.mxu0 0.0
    %1045 = vmatprep.subr.mxu0 0.0
    %1046 = vmatpush1.xpose.msra.mxu0 0.0
    %1047 = vmatprep.mubr.f32.mxu0 0.0
    %1048 = vmatmul.mubr.f32.gmra.mrb[0].mxu0 %v979
    %v1049 = vpop.f32.mrb[0].mxu0
    %v1050 = vadd.f32 %v573, %v1049
    %v1051 = vpop.f32.mrb[0].mxu0
    %1052 = vdwg.mxu0
    %v1053 = vsel %vm576, %v972, -inf
    %1054 = vmax.xlane.f32.xlu0 %v1053
    %v1055 = vpop.xlane.xlu0 %1054
    %v1056 = vsel %vm576, %v1050, -inf
    %1057 = vmax.xlane.f32.xlu0 %v1056
    %v1058 = vpop.xlane.xlu0 %1057
    %v1059 = vsub.f32 %v972, %v1055
    %v1060 = vsub.f32 %v1050, %v1058
    %v1061 = vmul.f32 %v1059, 1.442695
    %v1062 = vpow.pop %v1061
    %v1063 = vmul.f32 %v1060, 1.442695
    %v1064 = vpow.pop %v1063
    %v1065 = vsel %vm576, %v1062, 0.0
    %1066 = vadd.xlane.f32.xlu0 %v1065
    %v1067 = vpop.xlane.xlu0 %1066
    %v1068 = vsel %vm576, %v1064, 0.0
    %1069 = vadd.xlane.f32.xlu0 %v1068
    %v1070 = vpop.xlane.xlu0 %1069
    %v1071 = vrcp.pop %v1067
    %v1072 = vrcp.pop %v1070
    %v1073 = vmul.f32 %v1062, %v1071
    %v1074 = vmul.f32 %v1064, %v1072
    %1076 = vrot.lane.b32.xlu0 %v474, 120
    %v1077 = vpop.permute.xlu0 %1076
    %v1080 = vsel %vm576, %v1073, 0
    %1082 = vmatprep.subr.mxu0 0.0
    %1083 = vmatpush1.msra.mxu0 %v1077
    %1084 = vmatprep.subr.mxu0 0.0
    %1085 = vmatpush1.msra.mxu0 0.0
    %1086 = vmatprep.subr.mxu0 0.0
    %1087 = vmatpush1.msra.mxu0 0.0
    %1088 = vmatprep.subr.mxu0 0.0
    %1089 = vmatpush1.msra.mxu0 0.0
    %1090 = vmatprep.subr.mxu0 0.0
    %1091 = vmatpush1.msra.mxu0 0.0
    %1092 = vmatprep.subr.mxu0 0.0
    %1093 = vmatpush1.msra.mxu0 0.0
    %1094 = vmatprep.subr.mxu0 0.0
    %1095 = vmatpush1.msra.mxu0 0.0
    %1096 = vmatprep.subr.mxu0 0.0
    %1097 = vmatpush1.msra.mxu0 0.0
    %1098 = vmatprep.subr.mxu0 0.0
    %1099 = vmatpush1.msra.mxu0 0.0
    %1100 = vmatprep.subr.mxu0 0.0
    %1101 = vmatpush1.msra.mxu0 0.0
    %1102 = vmatprep.subr.mxu0 0.0
    %1103 = vmatpush1.msra.mxu0 0.0
    %1104 = vmatprep.subr.mxu0 0.0
    %1105 = vmatpush1.msra.mxu0 0.0
    %1106 = vmatprep.subr.mxu0 0.0
    %1107 = vmatpush1.msra.mxu0 0.0
    %1108 = vmatprep.subr.mxu0 0.0
    %1109 = vmatpush1.msra.mxu0 0.0
    %1110 = vmatprep.subr.mxu0 0.0
    %1111 = vmatpush1.msra.mxu0 0.0
    %1112 = vmatprep.subr.mxu0 0.0
    %1113 = vmatpush1.msra.mxu0 0.0
    %1114 = vmatprep.subr.mxu0 0.0
    %1115 = vmatpush1.msra.mxu0 0.0
    %1116 = vmatprep.subr.mxu0 0.0
    %1117 = vmatpush1.msra.mxu0 0.0
    %1118 = vmatprep.subr.mxu0 0.0
    %1119 = vmatpush1.msra.mxu0 0.0
    %1120 = vmatprep.subr.mxu0 0.0
    %1121 = vmatpush1.msra.mxu0 0.0
    %1122 = vmatprep.subr.mxu0 0.0
    %1123 = vmatpush1.msra.mxu0 0.0
    %1124 = vmatprep.subr.mxu0 0.0
    %1125 = vmatpush1.msra.mxu0 0.0
    %1126 = vmatprep.subr.mxu0 0.0
    %1127 = vmatpush1.msra.mxu0 0.0
    %1128 = vmatprep.subr.mxu0 0.0
    %1129 = vmatpush1.msra.mxu0 0.0
    %1130 = vmatprep.subr.mxu0 0.0
    %1131 = vmatpush1.msra.mxu0 0.0
    %1132 = vmatprep.subr.mxu0 0.0
    %1133 = vmatpush1.msra.mxu0 0.0
    %1134 = vmatprep.subr.mxu0 0.0
    %1135 = vmatpush1.msra.mxu0 0.0
    %1136 = vmatprep.subr.mxu0 0.0
    %1137 = vmatpush1.msra.mxu0 0.0
    %1138 = vmatprep.subr.mxu0 0.0
    %1139 = vmatpush1.msra.mxu0 0.0
    %1140 = vmatprep.subr.mxu0 0.0
    %1141 = vmatpush1.msra.mxu0 0.0
    %1142 = vmatprep.subr.mxu0 0.0
    %1143 = vmatpush1.msra.mxu0 0.0
    %1144 = vmatprep.subr.mxu0 0.0
    %1145 = vmatpush1.msra.mxu0 0.0
    %1146 = vmatprep.mubr.f32.mxu0 0.0
    %1147 = vmatmul.mubr.f32.gmra.mrb[0].mxu0 %v1080
    %v1148 = vpop.f32.mrb[0].mxu0
    %v1149 = vadd.f32 0.0, %v1148
    %v1150 = vpop.f32.mrb[0].mxu0
    %1151 = vdwg.mxu0
    %1153 = vrot.lane.b32.xlu0 %v479, 120
    %v1154 = vpop.permute.xlu0 %1153
    %v1157 = vsel %vm576, %v1074, 0
    %1159 = vmatprep.subr.mxu0 0.0
    %1160 = vmatpush1.msra.mxu0 %v1154
    %1161 = vmatprep.subr.mxu0 0.0
    %1162 = vmatpush1.msra.mxu0 0.0
    %1163 = vmatprep.subr.mxu0 0.0
    %1164 = vmatpush1.msra.mxu0 0.0
    %1165 = vmatprep.subr.mxu0 0.0
    %1166 = vmatpush1.msra.mxu0 0.0
    %1167 = vmatprep.subr.mxu0 0.0
    %1168 = vmatpush1.msra.mxu0 0.0
    %1169 = vmatprep.subr.mxu0 0.0
    %1170 = vmatpush1.msra.mxu0 0.0
    %1171 = vmatprep.subr.mxu0 0.0
    %1172 = vmatpush1.msra.mxu0 0.0
    %1173 = vmatprep.subr.mxu0 0.0
    %1174 = vmatpush1.msra.mxu0 0.0
    %1175 = vmatprep.subr.mxu0 0.0
    %1176 = vmatpush1.msra.mxu0 0.0
    %1177 = vmatprep.subr.mxu0 0.0
    %1178 = vmatpush1.msra.mxu0 0.0
    %1179 = vmatprep.subr.mxu0 0.0
    %1180 = vmatpush1.msra.mxu0 0.0
    %1181 = vmatprep.subr.mxu0 0.0
    %1182 = vmatpush1.msra.mxu0 0.0
    %1183 = vmatprep.subr.mxu0 0.0
    %1184 = vmatpush1.msra.mxu0 0.0
    %1185 = vmatprep.subr.mxu0 0.0
    %1186 = vmatpush1.msra.mxu0 0.0
    %1187 = vmatprep.subr.mxu0 0.0
    %1188 = vmatpush1.msra.mxu0 0.0
    %1189 = vmatprep.subr.mxu0 0.0
    %1190 = vmatpush1.msra.mxu0 0.0
    %1191 = vmatprep.subr.mxu0 0.0
    %1192 = vmatpush1.msra.mxu0 0.0
    %1193 = vmatprep.subr.mxu0 0.0
    %1194 = vmatpush1.msra.mxu0 0.0
    %1195 = vmatprep.subr.mxu0 0.0
    %1196 = vmatpush1.msra.mxu0 0.0
    %1197 = vmatprep.subr.mxu0 0.0
    %1198 = vmatpush1.msra.mxu0 0.0
    %1199 = vmatprep.subr.mxu0 0.0
    %1200 = vmatpush1.msra.mxu0 0.0
    %1201 = vmatprep.subr.mxu0 0.0
    %1202 = vmatpush1.msra.mxu0 0.0
    %1203 = vmatprep.subr.mxu0 0.0
    %1204 = vmatpush1.msra.mxu0 0.0
    %1205 = vmatprep.subr.mxu0 0.0
    %1206 = vmatpush1.msra.mxu0 0.0
    %1207 = vmatprep.subr.mxu0 0.0
    %1208 = vmatpush1.msra.mxu0 0.0
    %1209 = vmatprep.subr.mxu0 0.0
    %1210 = vmatpush1.msra.mxu0 0.0
    %1211 = vmatprep.subr.mxu0 0.0
    %1212 = vmatpush1.msra.mxu0 0.0
    %1213 = vmatprep.subr.mxu0 0.0
    %1214 = vmatpush1.msra.mxu0 0.0
    %1215 = vmatprep.subr.mxu0 0.0
    %1216 = vmatpush1.msra.mxu0 0.0
    %1217 = vmatprep.subr.mxu0 0.0
    %1218 = vmatpush1.msra.mxu0 0.0
    %1219 = vmatprep.subr.mxu0 0.0
    %1220 = vmatpush1.msra.mxu0 0.0
    %1221 = vmatprep.subr.mxu0 0.0
    %1222 = vmatpush1.msra.mxu0 0.0
    %1223 = vmatprep.mubr.f32.mxu0 0.0
    %1224 = vmatmul.mubr.f32.gmra.mrb[0].mxu0 %v1157
    %v1225 = vpop.f32.mrb[0].mxu0
    %v1226 = vadd.f32 0.0, %v1225
    %v1227 = vpop.f32.mrb[0].mxu0
    %1228 = vdwg.mxu0
    %1229 = vrot.lane.b32.xlu0 %v522, 112
    %v1230 = vpop.permute.xlu0 %1229
    %1231 = vrot.lane.b32.xlu0 %v562, 112
    %v1232 = vpop.permute.xlu0 %1231
    %v1233 = vsel %vm576, %v1230, 0
    %v1235 = vsel %vm576, %v1232, 0
    %1237 = vmatprep.subr.mxu0 0.0
    %1238 = vmatpush1.xpose.msra.mxu0 %v1235
    %1239 = vmatprep.subr.mxu0 0.0
    %1240 = vmatpush1.xpose.msra.mxu0 0.0
    %1241 = vmatprep.subr.mxu0 0.0
    %1242 = vmatpush1.xpose.msra.mxu0 0.0
    %1243 = vmatprep.subr.mxu0 0.0
    %1244 = vmatpush1.xpose.msra.mxu0 0.0
    %1245 = vmatprep.subr.mxu0 0.0
    %1246 = vmatpush1.xpose.msra.mxu0 0.0
    %1247 = vmatprep.subr.mxu0 0.0
    %1248 = vmatpush1.xpose.msra.mxu0 0.0
    %1249 = vmatprep.subr.mxu0 0.0
    %1250 = vmatpush1.xpose.msra.mxu0 0.0
    %1251 = vmatprep.subr.mxu0 0.0
    %1252 = vmatpush1.xpose.msra.mxu0 0.0
    %1253 = vmatprep.subr.mxu0 0.0
    %1254 = vmatpush1.xpose.msra.mxu0 0.0
    %1255 = vmatprep.subr.mxu0 0.0
    %1256 = vmatpush1.xpose.msra.mxu0 0.0
    %1257 = vmatprep.subr.mxu0 0.0
    %1258 = vmatpush1.xpose.msra.mxu0 0.0
    %1259 = vmatprep.subr.mxu0 0.0
    %1260 = vmatpush1.xpose.msra.mxu0 0.0
    %1261 = vmatprep.subr.mxu0 0.0
    %1262 = vmatpush1.xpose.msra.mxu0 0.0
    %1263 = vmatprep.subr.mxu0 0.0
    %1264 = vmatpush1.xpose.msra.mxu0 0.0
    %1265 = vmatprep.subr.mxu0 0.0
    %1266 = vmatpush1.xpose.msra.mxu0 0.0
    %1267 = vmatprep.subr.mxu0 0.0
    %1268 = vmatpush1.xpose.msra.mxu0 0.0
    %1269 = vmatprep.subr.mxu0 0.0
    %1270 = vmatpush1.xpose.msra.mxu0 0.0
    %1271 = vmatprep.subr.mxu0 0.0
    %1272 = vmatpush1.xpose.msra.mxu0 0.0
    %1273 = vmatprep.subr.mxu0 0.0
    %1274 = vmatpush1.xpose.msra.mxu0 0.0
    %1275 = vmatprep.subr.mxu0 0.0
    %1276 = vmatpush1.xpose.msra.mxu0 0.0
    %1277 = vmatprep.subr.mxu0 0.0
    %1278 = vmatpush1.xpose.msra.mxu0 0.0
    %1279 = vmatprep.subr.mxu0 0.0
    %1280 = vmatpush1.xpose.msra.mxu0 0.0
    %1281 = vmatprep.subr.mxu0 0.0
    %1282 = vmatpush1.xpose.msra.mxu0 0.0
    %1283 = vmatprep.subr.mxu0 0.0
    %1284 = vmatpush1.xpose.msra.mxu0 0.0
    %1285 = vmatprep.subr.mxu0 0.0
    %1286 = vmatpush1.xpose.msra.mxu0 0.0
    %1287 = vmatprep.subr.mxu0 0.0
    %1288 = vmatpush1.xpose.msra.mxu0 0.0
    %1289 = vmatprep.subr.mxu0 0.0
    %1290 = vmatpush1.xpose.msra.mxu0 0.0
    %1291 = vmatprep.subr.mxu0 0.0
    %1292 = vmatpush1.xpose.msra.mxu0 0.0
    %1293 = vmatprep.subr.mxu0 0.0
    %1294 = vmatpush1.xpose.msra.mxu0 0.0
    %1295 = vmatprep.subr.mxu0 0.0
    %1296 = vmatpush1.xpose.msra.mxu0 0.0
    %1297 = vmatprep.subr.mxu0 0.0
    %1298 = vmatpush1.xpose.msra.mxu0 0.0
    %1299 = vmatprep.subr.mxu0 0.0
    %1300 = vmatpush1.xpose.msra.mxu0 0.0
    %1301 = vmatprep.mubr.f32.mxu0 0.0
    %1302 = vmatmul.mubr.f32.gmra.mrb[0].mxu0 %v1233
    %v1303 = vpop.f32.mrb[0].mxu0
    %v1304 = vadd.f32 %v569, %v1303
    %v1305 = vpop.f32.mrb[0].mxu0
    %1306 = vdwg.mxu0
    %1307 = vrot.lane.b32.xlu0 %v523, 112
    %v1308 = vpop.permute.xlu0 %1307
    %1309 = vrot.lane.b32.xlu0 %v563, 112
    %v1310 = vpop.permute.xlu0 %1309
    %v1311 = vsel %vm576, %v1308, 0
    %v1313 = vsel %vm576, %v1310, 0
    %1315 = vmatprep.subr.mxu0 0.0
    %1316 = vmatpush1.xpose.msra.mxu0 %v1313
    %1317 = vmatprep.subr.mxu0 0.0
    %1318 = vmatpush1.xpose.msra.mxu0 0.0
    %1319 = vmatprep.subr.mxu0 0.0
    %1320 = vmatpush1.xpose.msra.mxu0 0.0
    %1321 = vmatprep.subr.mxu0 0.0
    %1322 = vmatpush1.xpose.msra.mxu0 0.0
    %1323 = vmatprep.subr.mxu0 0.0
    %1324 = vmatpush1.xpose.msra.mxu0 0.0
    %1325 = vmatprep.subr.mxu0 0.0
    %1326 = vmatpush1.xpose.msra.mxu0 0.0
    %1327 = vmatprep.subr.mxu0 0.0
    %1328 = vmatpush1.xpose.msra.mxu0 0.0
    %1329 = vmatprep.subr.mxu0 0.0
    %1330 = vmatpush1.xpose.msra.mxu0 0.0
    %1331 = vmatprep.subr.mxu0 0.0
    %1332 = vmatpush1.xpose.msra.mxu0 0.0
    %1333 = vmatprep.subr.mxu0 0.0
    %1334 = vmatpush1.xpose.msra.mxu0 0.0
    %1335 = vmatprep.subr.mxu0 0.0
    %1336 = vmatpush1.xpose.msra.mxu0 0.0
    %1337 = vmatprep.subr.mxu0 0.0
    %1338 = vmatpush1.xpose.msra.mxu0 0.0
    %1339 = vmatprep.subr.mxu0 0.0
    %1340 = vmatpush1.xpose.msra.mxu0 0.0
    %1341 = vmatprep.subr.mxu0 0.0
    %1342 = vmatpush1.xpose.msra.mxu0 0.0
    %1343 = vmatprep.subr.mxu0 0.0
    %1344 = vmatpush1.xpose.msra.mxu0 0.0
    %1345 = vmatprep.subr.mxu0 0.0
    %1346 = vmatpush1.xpose.msra.mxu0 0.0
    %1347 = vmatprep.subr.mxu0 0.0
    %1348 = vmatpush1.xpose.msra.mxu0 0.0
    %1349 = vmatprep.subr.mxu0 0.0
    %1350 = vmatpush1.xpose.msra.mxu0 0.0
    %1351 = vmatprep.subr.mxu0 0.0
    %1352 = vmatpush1.xpose.msra.mxu0 0.0
    %1353 = vmatprep.subr.mxu0 0.0
    %1354 = vmatpush1.xpose.msra.mxu0 0.0
    %1355 = vmatprep.subr.mxu0 0.0
    %1356 = vmatpush1.xpose.msra.mxu0 0.0
    %1357 = vmatprep.subr.mxu0 0.0
    %1358 = vmatpush1.xpose.msra.mxu0 0.0
    %1359 = vmatprep.subr.mxu0 0.0
    %1360 = vmatpush1.xpose.msra.mxu0 0.0
    %1361 = vmatprep.subr.mxu0 0.0
    %1362 = vmatpush1.xpose.msra.mxu0 0.0
    %1363 = vmatprep.subr.mxu0 0.0
    %1364 = vmatpush1.xpose.msra.mxu0 0.0
    %1365 = vmatprep.subr.mxu0 0.0
    %1366 = vmatpush1.xpose.msra.mxu0 0.0
    %1367 = vmatprep.subr.mxu0 0.0
    %1368 = vmatpush1.xpose.msra.mxu0 0.0
    %1369 = vmatprep.subr.mxu0 0.0
    %1370 = vmatpush1.xpose.msra.mxu0 0.0
    %1371 = vmatprep.subr.mxu0 0.0
    %1372 = vmatpush1.xpose.msra.mxu0 0.0
    %1373 = vmatprep.subr.mxu0 0.0
    %1374 = vmatpush1.xpose.msra.mxu0 0.0
    %1375 = vmatprep.subr.mxu0 0.0
    %1376 = vmatpush1.xpose.msra.mxu0 0.0
    %1377 = vmatprep.subr.mxu0 0.0
    %1378 = vmatpush1.xpose.msra.mxu0 0.0
    %1379 = vmatprep.mubr.f32.mxu0 0.0
    %1380 = vmatmul.mubr.f32.gmra.mrb[0].mxu0 %v1311
    %v1381 = vpop.f32.mrb[0].mxu0
    %v1382 = vadd.f32 %v573, %v1381
    %v1383 = vpop.f32.mrb[0].mxu0
    %1384 = vdwg.mxu0
    %v1385 = vsel %vm576, %v1304, -inf
    %1386 = vmax.xlane.f32.xlu0 %v1385
    %v1387 = vpop.xlane.xlu0 %1386
    %v1388 = vsel %vm576, %v1382, -inf
    %1389 = vmax.xlane.f32.xlu0 %v1388
    %v1390 = vpop.xlane.xlu0 %1389
    %v1391 = vsub.f32 %v1304, %v1387
    %v1392 = vsub.f32 %v1382, %v1390
    %v1393 = vmul.f32 %v1391, 1.442695
    %v1394 = vpow.pop %v1393
    %v1395 = vmul.f32 %v1392, 1.442695
    %v1396 = vpow.pop %v1395
    %v1397 = vsel %vm576, %v1394, 0.0
    %1398 = vadd.xlane.f32.xlu0 %v1397
    %v1399 = vpop.xlane.xlu0 %1398
    %v1400 = vsel %vm576, %v1396, 0.0
    %1401 = vadd.xlane.f32.xlu0 %v1400
    %v1402 = vpop.xlane.xlu0 %1401
    %v1403 = vrcp.pop %v1399
    %v1404 = vrcp.pop %v1402
    %v1405 = vmul.f32 %v1394, %v1403
    %v1406 = vmul.f32 %v1396, %v1404
    %1407 = vrot.lane.b32.xlu0 %v474, 112
    %v1408 = vpop.permute.xlu0 %1407
    %v1411 = vsel %vm576, %v1405, 0
    %1413 = vmatprep.subr.mxu0 0.0
    %1414 = vmatpush1.msra.mxu0 %v1408
    %1415 = vmatprep.subr.mxu0 0.0
    %1416 = vmatpush1.msra.mxu0 0.0
    %1417 = vmatprep.subr.mxu0 0.0
    %1418 = vmatpush1.msra.mxu0 0.0
    %1419 = vmatprep.subr.mxu0 0.0
    %1420 = vmatpush1.msra.mxu0 0.0
    %1421 = vmatprep.subr.mxu0 0.0
    %1422 = vmatpush1.msra.mxu0 0.0
    %1423 = vmatprep.subr.mxu0 0.0
    %1424 = vmatpush1.msra.mxu0 0.0
    %1425 = vmatprep.subr.mxu0 0.0
    %1426 = vmatpush1.msra.mxu0 0.0
    %1427 = vmatprep.subr.mxu0 0.0
    %1428 = vmatpush1.msra.mxu0 0.0
    %1429 = vmatprep.subr.mxu0 0.0
    %1430 = vmatpush1.msra.mxu0 0.0
    %1431 = vmatprep.subr.mxu0 0.0
    %1432 = vmatpush1.msra.mxu0 0.0
    %1433 = vmatprep.subr.mxu0 0.0
    %1434 = vmatpush1.msra.mxu0 0.0
    %1435 = vmatprep.subr.mxu0 0.0
    %1436 = vmatpush1.msra.mxu0 0.0
    %1437 = vmatprep.subr.mxu0 0.0
    %1438 = vmatpush1.msra.mxu0 0.0
    %1439 = vmatprep.subr.mxu0 0.0
    %1440 = vmatpush1.msra.mxu0 0.0
    %1441 = vmatprep.subr.mxu0 0.0
    %1442 = vmatpush1.msra.mxu0 0.0
    %1443 = vmatprep.subr.mxu0 0.0
    %1444 = vmatpush1.msra.mxu0 0.0
    %1445 = vmatprep.subr.mxu0 0.0
    %1446 = vmatpush1.msra.mxu0 0.0
    %1447 = vmatprep.subr.mxu0 0.0
    %1448 = vmatpush1.msra.mxu0 0.0
    %1449 = vmatprep.subr.mxu0 0.0
    %1450 = vmatpush1.msra.mxu0 0.0
    %1451 = vmatprep.subr.mxu0 0.0
    %1452 = vmatpush1.msra.mxu0 0.0
    %1453 = vmatprep.subr.mxu0 0.0
    %1454 = vmatpush1.msra.mxu0 0.0
    %1455 = vmatprep.subr.mxu0 0.0
    %1456 = vmatpush1.msra.mxu0 0.0
    %1457 = vmatprep.subr.mxu0 0.0
    %1458 = vmatpush1.msra.mxu0 0.0
    %1459 = vmatprep.subr.mxu0 0.0
    %1460 = vmatpush1.msra.mxu0 0.0
    %1461 = vmatprep.subr.mxu0 0.0
    %1462 = vmatpush1.msra.mxu0 0.0
    %1463 = vmatprep.subr.mxu0 0.0
    %1464 = vmatpush1.msra.mxu0 0.0
    %1465 = vmatprep.subr.mxu0 0.0
    %1466 = vmatpush1.msra.mxu0 0.0
    %1467 = vmatprep.subr.mxu0 0.0
    %1468 = vmatpush1.msra.mxu0 0.0
    %1469 = vmatprep.subr.mxu0 0.0
    %1470 = vmatpush1.msra.mxu0 0.0
    %1471 = vmatprep.subr.mxu0 0.0
    %1472 = vmatpush1.msra.mxu0 0.0
    %1473 = vmatprep.subr.mxu0 0.0
    %1474 = vmatpush1.msra.mxu0 0.0
    %1475 = vmatprep.subr.mxu0 0.0
    %1476 = vmatpush1.msra.mxu0 0.0
    %1477 = vmatprep.mubr.f32.mxu0 0.0
    %1478 = vmatmul.mubr.f32.gmra.mrb[0].mxu0 %v1411
    %v1479 = vpop.f32.mrb[0].mxu0
    %v1480 = vadd.f32 0.0, %v1479
    %v1481 = vpop.f32.mrb[0].mxu0
    %1482 = vdwg.mxu0
    %1483 = vrot.lane.b32.xlu0 %v479, 112
    %v1484 = vpop.permute.xlu0 %1483
    %v1487 = vsel %vm576, %v1406, 0
    %1489 = vmatprep.subr.mxu0 0.0
    %1490 = vmatpush1.msra.mxu0 %v1484
    %1491 = vmatprep.subr.mxu0 0.0
    %1492 = vmatpush1.msra.mxu0 0.0
    %1493 = vmatprep.subr.mxu0 0.0
    %1494 = vmatpush1.msra.mxu0 0.0
    %1495 = vmatprep.subr.mxu0 0.0
    %1496 = vmatpush1.msra.mxu0 0.0
    %1497 = vmatprep.subr.mxu0 0.0
    %1498 = vmatpush1.msra.mxu0 0.0
    %1499 = vmatprep.subr.mxu0 0.0
    %1500 = vmatpush1.msra.mxu0 0.0
    %1501 = vmatprep.subr.mxu0 0.0
    %1502 = vmatpush1.msra.mxu0 0.0
    %1503 = vmatprep.subr.mxu0 0.0
    %1504 = vmatpush1.msra.mxu0 0.0
    %1505 = vmatprep.subr.mxu0 0.0
    %1506 = vmatpush1.msra.mxu0 0.0
    %1507 = vmatprep.subr.mxu0 0.0
    %1508 = vmatpush1.msra.mxu0 0.0
    %1509 = vmatprep.subr.mxu0 0.0
    %1510 = vmatpush1.msra.mxu0 0.0
    %1511 = vmatprep.subr.mxu0 0.0
    %1512 = vmatpush1.msra.mxu0 0.0
    %1513 = vmatprep.subr.mxu0 0.0
    %1514 = vmatpush1.msra.mxu0 0.0
    %1515 = vmatprep.subr.mxu0 0.0
    %1516 = vmatpush1.msra.mxu0 0.0
    %1517 = vmatprep.subr.mxu0 0.0
    %1518 = vmatpush1.msra.mxu0 0.0
    %1519 = vmatprep.subr.mxu0 0.0
    %1520 = vmatpush1.msra.mxu0 0.0
    %1521 = vmatprep.subr.mxu0 0.0
    %1522 = vmatpush1.msra.mxu0 0.0
    %1523 = vmatprep.subr.mxu0 0.0
    %1524 = vmatpush1.msra.mxu0 0.0
    %1525 = vmatprep.subr.mxu0 0.0
    %1526 = vmatpush1.msra.mxu0 0.0
    %1527 = vmatprep.subr.mxu0 0.0
    %1528 = vmatpush1.msra.mxu0 0.0
    %1529 = vmatprep.subr.mxu0 0.0
    %1530 = vmatpush1.msra.mxu0 0.0
    %1531 = vmatprep.subr.mxu0 0.0
    %1532 = vmatpush1.msra.mxu0 0.0
    %1533 = vmatprep.subr.mxu0 0.0
    %1534 = vmatpush1.msra.mxu0 0.0
    %1535 = vmatprep.subr.mxu0 0.0
    %1536 = vmatpush1.msra.mxu0 0.0
    %1537 = vmatprep.subr.mxu0 0.0
    %1538 = vmatpush1.msra.mxu0 0.0
    %1539 = vmatprep.subr.mxu0 0.0
    %1540 = vmatpush1.msra.mxu0 0.0
    %1541 = vmatprep.subr.mxu0 0.0
    %1542 = vmatpush1.msra.mxu0 0.0
    %1543 = vmatprep.subr.mxu0 0.0
    %1544 = vmatpush1.msra.mxu0 0.0
    %1545 = vmatprep.subr.mxu0 0.0
    %1546 = vmatpush1.msra.mxu0 0.0
    %1547 = vmatprep.subr.mxu0 0.0
    %1548 = vmatpush1.msra.mxu0 0.0
    %1549 = vmatprep.subr.mxu0 0.0
    %1550 = vmatpush1.msra.mxu0 0.0
    %1551 = vmatprep.subr.mxu0 0.0
    %1552 = vmatpush1.msra.mxu0 0.0
    %1553 = vmatprep.mubr.f32.mxu0 0.0
    %1554 = vmatmul.mubr.f32.gmra.mrb[0].mxu0 %v1487
    %v1555 = vpop.f32.mrb[0].mxu0
    %v1556 = vadd.f32 0.0, %v1555
    %v1557 = vpop.f32.mrb[0].mxu0
    %1558 = vdwg.mxu0
    %1559 = vrot.lane.b32.xlu0 %v522, 104
    %v1560 = vpop.permute.xlu0 %1559
    %1561 = vrot.lane.b32.xlu0 %v562, 104
    %v1562 = vpop.permute.xlu0 %1561
    %v1563 = vsel %vm576, %v1560, 0
    %v1565 = vsel %vm576, %v1562, 0
    %1567 = vmatprep.subr.mxu0 0.0
    %1568 = vmatpush1.xpose.msra.mxu0 %v1565
    %1569 = vmatprep.subr.mxu0 0.0
    %1570 = vmatpush1.xpose.msra.mxu0 0.0
    %1571 = vmatprep.subr.mxu0 0.0
    %1572 = vmatpush1.xpose.msra.mxu0 0.0
    %1573 = vmatprep.subr.mxu0 0.0
    %1574 = vmatpush1.xpose.msra.mxu0 0.0
    %1575 = vmatprep.subr.mxu0 0.0
    %1576 = vmatpush1.xpose.msra.mxu0 0.0
    %1577 = vmatprep.subr.mxu0 0.0
    %1578 = vmatpush1.xpose.msra.mxu0 0.0
    %1579 = vmatprep.subr.mxu0 0.0
    %1580 = vmatpush1.xpose.msra.mxu0 0.0
    %1581 = vmatprep.subr.mxu0 0.0
    %1582 = vmatpush1.xpose.msra.mxu0 0.0
    %1583 = vmatprep.subr.mxu0 0.0
    %1584 = vmatpush1.xpose.msra.mxu0 0.0
    %1585 = vmatprep.subr.mxu0 0.0
    %1586 = vmatpush1.xpose.msra.mxu0 0.0
    %1587 = vmatprep.subr.mxu0 0.0
    %1588 = vmatpush1.xpose.msra.mxu0 0.0
    %1589 = vmatprep.subr.mxu0 0.0
    %1590 = vmatpush1.xpose.msra.mxu0 0.0
    %1591 = vmatprep.subr.mxu0 0.0
    %1592 = vmatpush1.xpose.msra.mxu0 0.0
    %1593 = vmatprep.subr.mxu0 0.0
    %1594 = vmatpush1.xpose.msra.mxu0 0.0
    %1595 = vmatprep.subr.mxu0 0.0
    %1596 = vmatpush1.xpose.msra.mxu0 0.0
    %1597 = vmatprep.subr.mxu0 0.0
    %1598 = vmatpush1.xpose.msra.mxu0 0.0
    %1599 = vmatprep.subr.mxu0 0.0
    %1600 = vmatpush1.xpose.msra.mxu0 0.0
    %1601 = vmatprep.subr.mxu0 0.0
    %1602 = vmatpush1.xpose.msra.mxu0 0.0
    %1603 = vmatprep.subr.mxu0 0.0
    %1604 = vmatpush1.xpose.msra.mxu0 0.0
    %1605 = vmatprep.subr.mxu0 0.0
    %1606 = vmatpush1.xpose.msra.mxu0 0.0
    %1607 = vmatprep.subr.mxu0 0.0
    %1608 = vmatpush1.xpose.msra.mxu0 0.0
    %1609 = vmatprep.subr.mxu0 0.0
    %1610 = vmatpush1.xpose.msra.mxu0 0.0
    %1611 = vmatprep.subr.mxu0 0.0
    %1612 = vmatpush1.xpose.msra.mxu0 0.0
    %1613 = vmatprep.subr.mxu0 0.0
    %1614 = vmatpush1.xpose.msra.mxu0 0.0
    %1615 = vmatprep.subr.mxu0 0.0
    %1616 = vmatpush1.xpose.msra.mxu0 0.0
    %1617 = vmatprep.subr.mxu0 0.0
    %1618 = vmatpush1.xpose.msra.mxu0 0.0
    %1619 = vmatprep.subr.mxu0 0.0
    %1620 = vmatpush1.xpose.msra.mxu0 0.0
    %1621 = vmatprep.subr.mxu0 0.0
    %1622 = vmatpush1.xpose.msra.mxu0 0.0
    %1623 = vmatprep.subr.mxu0 0.0
    %1624 = vmatpush1.xpose.msra.mxu0 0.0
    %1625 = vmatprep.subr.mxu0 0.0
    %1626 = vmatpush1.xpose.msra.mxu0 0.0
    %1627 = vmatprep.subr.mxu0 0.0
    %1628 = vmatpush1.xpose.msra.mxu0 0.0
    %1629 = vmatprep.subr.mxu0 0.0
    %1630 = vmatpush1.xpose.msra.mxu0 0.0
    %1631 = vmatprep.mubr.f32.mxu0 0.0
    %1632 = vmatmul.mubr.f32.gmra.mrb[0].mxu0 %v1563
    %v1633 = vpop.f32.mrb[0].mxu0
    %v1634 = vadd.f32 %v569, %v1633
    %v1635 = vpop.f32.mrb[0].mxu0
    %1636 = vdwg.mxu0
    %1637 = vrot.lane.b32.xlu0 %v523, 104
    %v1638 = vpop.permute.xlu0 %1637
    %1639 = vrot.lane.b32.xlu0 %v563, 104
    %v1640 = vpop.permute.xlu0 %1639
    %v1641 = vsel %vm576, %v1638, 0
    %v1643 = vsel %vm576, %v1640, 0
    %1645 = vmatprep.subr.mxu0 0.0
    %1646 = vmatpush1.xpose.msra.mxu0 %v1643
    %1647 = vmatprep.subr.mxu0 0.0
    %1648 = vmatpush1.xpose.msra.mxu0 0.0
    %1649 = vmatprep.subr.mxu0 0.0
    %1650 = vmatpush1.xpose.msra.mxu0 0.0
    %1651 = vmatprep.subr.mxu0 0.0
    %1652 = vmatpush1.xpose.msra.mxu0 0.0
    %1653 = vmatprep.subr.mxu0 0.0
    %1654 = vmatpush1.xpose.msra.mxu0 0.0
    %1655 = vmatprep.subr.mxu0 0.0
    %1656 = vmatpush1.xpose.msra.mxu0 0.0
    %1657 = vmatprep.subr.mxu0 0.0
    %1658 = vmatpush1.xpose.msra.mxu0 0.0
    %1659 = vmatprep.subr.mxu0 0.0
    %1660 = vmatpush1.xpose.msra.mxu0 0.0
    %1661 = vmatprep.subr.mxu0 0.0
    %1662 = vmatpush1.xpose.msra.mxu0 0.0
    %1663 = vmatprep.subr.mxu0 0.0
    %1664 = vmatpush1.xpose.msra.mxu0 0.0
    %1665 = vmatprep.subr.mxu0 0.0
    %1666 = vmatpush1.xpose.msra.mxu0 0.0
    %1667 = vmatprep.subr.mxu0 0.0
    %1668 = vmatpush1.xpose.msra.mxu0 0.0
    %1669 = vmatprep.subr.mxu0 0.0
    %1670 = vmatpush1.xpose.msra.mxu0 0.0
    %1671 = vmatprep.subr.mxu0 0.0
    %1672 = vmatpush1.xpose.msra.mxu0 0.0
    %1673 = vmatprep.subr.mxu0 0.0
    %1674 = vmatpush1.xpose.msra.mxu0 0.0
    %1675 = vmatprep.subr.mxu0 0.0
    %1676 = vmatpush1.xpose.msra.mxu0 0.0
    %1677 = vmatprep.subr.mxu0 0.0
    %1678 = vmatpush1.xpose.msra.mxu0 0.0
    %1679 = vmatprep.subr.mxu0 0.0
    %1680 = vmatpush1.xpose.msra.mxu0 0.0
    %1681 = vmatprep.subr.mxu0 0.0
    %1682 = vmatpush1.xpose.msra.mxu0 0.0
    %1683 = vmatprep.subr.mxu0 0.0
    %1684 = vmatpush1.xpose.msra.mxu0 0.0
    %1685 = vmatprep.subr.mxu0 0.0
    %1686 = vmatpush1.xpose.msra.mxu0 0.0
    %1687 = vmatprep.subr.mxu0 0.0
    %1688 = vmatpush1.xpose.msra.mxu0 0.0
    %1689 = vmatprep.subr.mxu0 0.0
    %1690 = vmatpush1.xpose.msra.mxu0 0.0
    %1691 = vmatprep.subr.mxu0 0.0
    %1692 = vmatpush1.xpose.msra.mxu0 0.0
    %1693 = vmatprep.subr.mxu0 0.0
    %1694 = vmatpush1.xpose.msra.mxu0 0.0
    %1695 = vmatprep.subr.mxu0 0.0
    %1696 = vmatpush1.xpose.msra.mxu0 0.0
    %1697 = vmatprep.subr.mxu0 0.0
    %1698 = vmatpush1.xpose.msra.mxu0 0.0
    %1699 = vmatprep.subr.mxu0 0.0
    %1700 = vmatpush1.xpose.msra.mxu0 0.0
    %1701 = vmatprep.subr.mxu0 0.0
    %1702 = vmatpush1.xpose.msra.mxu0 0.0
    %1703 = vmatprep.subr.mxu0 0.0
    %1704 = vmatpush1.xpose.msra.mxu0 0.0
    %1705 = vmatprep.subr.mxu0 0.0
    %1706 = vmatpush1.xpose.msra.mxu0 0.0
    %1707 = vmatprep.subr.mxu0 0.0
    %1708 = vmatpush1.xpose.msra.mxu0 0.0
    %1709 = vmatprep.mubr.f32.mxu0 0.0
    %1710 = vmatmul.mubr.f32.gmra.mrb[0].mxu0 %v1641
    %v1711 = vpop.f32.mrb[0].mxu0
    %v1712 = vadd.f32 %v573, %v1711
    %v1713 = vpop.f32.mrb[0].mxu0
    %1714 = vdwg.mxu0
    %v1715 = vsel %vm576, %v1634, -inf
    %1716 = vmax.xlane.f32.xlu0 %v1715
    %v1717 = vpop.xlane.xlu0 %1716
    %v1718 = vsel %vm576, %v1712, -inf
    %1719 = vmax.xlane.f32.xlu0 %v1718
    %v1720 = vpop.xlane.xlu0 %1719
    %v1721 = vsub.f32 %v1634, %v1717
    %v1722 = vsub.f32 %v1712, %v1720
    %v1723 = vmul.f32 %v1721, 1.442695
    %v1724 = vpow.pop %v1723
    %v1725 = vmul.f32 %v1722, 1.442695
    %v1726 = vpow.pop %v1725
    %v1727 = vsel %vm576, %v1724, 0.0
    %1728 = vadd.xlane.f32.xlu0 %v1727
    %v1729 = vpop.xlane.xlu0 %1728
    %v1730 = vsel %vm576, %v1726, 0.0
    %1731 = vadd.xlane.f32.xlu0 %v1730
    %v1732 = vpop.xlane.xlu0 %1731
    %v1733 = vrcp.pop %v1729
    %v1734 = vrcp.pop %v1732
    %v1735 = vmul.f32 %v1724, %v1733
    %v1736 = vmul.f32 %v1726, %v1734
    %1737 = vrot.lane.b32.xlu0 %v474, 104
    %v1738 = vpop.permute.xlu0 %1737
    %v1741 = vsel %vm576, %v1735, 0
    %1743 = vmatprep.subr.mxu0 0.0
    %1744 = vmatpush1.msra.mxu0 %v1738
    %1745 = vmatprep.subr.mxu0 0.0
    %1746 = vmatpush1.msra.mxu0 0.0
    %1747 = vmatprep.subr.mxu0 0.0
    %1748 = vmatpush1.msra.mxu0 0.0
    %1749 = vmatprep.subr.mxu0 0.0
    %1750 = vmatpush1.msra.mxu0 0.0
    %1751 = vmatprep.subr.mxu0 0.0
    %1752 = vmatpush1.msra.mxu0 0.0
    %1753 = vmatprep.subr.mxu0 0.0
    %1754 = vmatpush1.msra.mxu0 0.0
    %1755 = vmatprep.subr.mxu0 0.0
    %1756 = vmatpush1.msra.mxu0 0.0
    %1757 = vmatprep.subr.mxu0 0.0
    %1758 = vmatpush1.msra.mxu0 0.0
    %1759 = vmatprep.subr.mxu0 0.0
    %1760 = vmatpush1.msra.mxu0 0.0
    %1761 = vmatprep.subr.mxu0 0.0
    %1762 = vmatpush1.msra.mxu0 0.0
    %1763 = vmatprep.subr.mxu0 0.0
    %1764 = vmatpush1.msra.mxu0 0.0
    %1765 = vmatprep.subr.mxu0 0.0
    %1766 = vmatpush1.msra.mxu0 0.0
    %1767 = vmatprep.subr.mxu0 0.0
    %1768 = vmatpush1.msra.mxu0 0.0
    %1769 = vmatprep.subr.mxu0 0.0
    %1770 = vmatpush1.msra.mxu0 0.0
    %1771 = vmatprep.subr.mxu0 0.0
    %1772 = vmatpush1.msra.mxu0 0.0
    %1773 = vmatprep.subr.mxu0 0.0
    %1774 = vmatpush1.msra.mxu0 0.0
    %1775 = vmatprep.subr.mxu0 0.0
    %1776 = vmatpush1.msra.mxu0 0.0
    %1777 = vmatprep.subr.mxu0 0.0
    %1778 = vmatpush1.msra.mxu0 0.0
    %1779 = vmatprep.subr.mxu0 0.0
    %1780 = vmatpush1.msra.mxu0 0.0
    %1781 = vmatprep.subr.mxu0 0.0
    %1782 = vmatpush1.msra.mxu0 0.0
    %1783 = vmatprep.subr.mxu0 0.0
    %1784 = vmatpush1.msra.mxu0 0.0
    %1785 = vmatprep.subr.mxu0 0.0
    %1786 = vmatpush1.msra.mxu0 0.0
    %1787 = vmatprep.subr.mxu0 0.0
    %1788 = vmatpush1.msra.mxu0 0.0
    %1789 = vmatprep.subr.mxu0 0.0
    %1790 = vmatpush1.msra.mxu0 0.0
    %1791 = vmatprep.subr.mxu0 0.0
    %1792 = vmatpush1.msra.mxu0 0.0
    %1793 = vmatprep.subr.mxu0 0.0
    %1794 = vmatpush1.msra.mxu0 0.0
    %1795 = vmatprep.subr.mxu0 0.0
    %1796 = vmatpush1.msra.mxu0 0.0
    %1797 = vmatprep.subr.mxu0 0.0
    %1798 = vmatpush1.msra.mxu0 0.0
    %1799 = vmatprep.subr.mxu0 0.0
    %1800 = vmatpush1.msra.mxu0 0.0
    %1801 = vmatprep.subr.mxu0 0.0
    %1802 = vmatpush1.msra.mxu0 0.0
    %1803 = vmatprep.subr.mxu0 0.0
    %1804 = vmatpush1.msra.mxu0 0.0
    %1805 = vmatprep.subr.mxu0 0.0
    %1806 = vmatpush1.msra.mxu0 0.0
    %1807 = vmatprep.mubr.f32.mxu0 0.0
    %1808 = vmatmul.mubr.f32.gmra.mrb[0].mxu0 %v1741
    %v1809 = vpop.f32.mrb[0].mxu0
    %v1810 = vadd.f32 0.0, %v1809
    %v1811 = vpop.f32.mrb[0].mxu0
    %1812 = vdwg.mxu0
    %1813 = vrot.lane.b32.xlu0 %v479, 104
    %v1814 = vpop.permute.xlu0 %1813
    %v1817 = vsel %vm576, %v1736, 0
    %1819 = vmatprep.subr.mxu0 0.0
    %1820 = vmatpush1.msra.mxu0 %v1814
    %1821 = vmatprep.subr.mxu0 0.0
    %1822 = vmatpush1.msra.mxu0 0.0
    %1823 = vmatprep.subr.mxu0 0.0
    %1824 = vmatpush1.msra.mxu0 0.0
    %1825 = vmatprep.subr.mxu0 0.0
    %1826 = vmatpush1.msra.mxu0 0.0
    %1827 = vmatprep.subr.mxu0 0.0
    %1828 = vmatpush1.msra.mxu0 0.0
    %1829 = vmatprep.subr.mxu0 0.0
    %1830 = vmatpush1.msra.mxu0 0.0
    %1831 = vmatprep.subr.mxu0 0.0
    %1832 = vmatpush1.msra.mxu0 0.0
    %1833 = vmatprep.subr.mxu0 0.0
    %1834 = vmatpush1.msra.mxu0 0.0
    %1835 = vmatprep.subr.mxu0 0.0
    %1836 = vmatpush1.msra.mxu0 0.0
    %1837 = vmatprep.subr.mxu0 0.0
    %1838 = vmatpush1.msra.mxu0 0.0
    %1839 = vmatprep.subr.mxu0 0.0
    %1840 = vmatpush1.msra.mxu0 0.0
    %1841 = vmatprep.subr.mxu0 0.0
    %1842 = vmatpush1.msra.mxu0 0.0
    %1843 = vmatprep.subr.mxu0 0.0
    %1844 = vmatpush1.msra.mxu0 0.0
    %1845 = vmatprep.subr.mxu0 0.0
    %1846 = vmatpush1.msra.mxu0 0.0
    %1847 = vmatprep.subr.mxu0 0.0
    %1848 = vmatpush1.msra.mxu0 0.0
    %1849 = vmatprep.subr.mxu0 0.0
    %1850 = vmatpush1.msra.mxu0 0.0
    %1851 = vmatprep.subr.mxu0 0.0
    %1852 = vmatpush1.msra.mxu0 0.0
    %1853 = vmatprep.subr.mxu0 0.0
    %1854 = vmatpush1.msra.mxu0 0.0
    %1855 = vmatprep.subr.mxu0 0.0
    %1856 = vmatpush1.msra.mxu0 0.0
    %1857 = vmatprep.subr.mxu0 0.0
    %1858 = vmatpush1.msra.mxu0 0.0
    %1859 = vmatprep.subr.mxu0 0.0
    %1860 = vmatpush1.msra.mxu0 0.0
    %1861 = vmatprep.subr.mxu0 0.0
    %1862 = vmatpush1.msra.mxu0 0.0
    %1863 = vmatprep.subr.mxu0 0.0
    %1864 = vmatpush1.msra.mxu0 0.0
    %1865 = vmatprep.subr.mxu0 0.0
    %1866 = vmatpush1.msra.mxu0 0.0
    %1867 = vmatprep.subr.mxu0 0.0
    %1868 = vmatpush1.msra.mxu0 0.0
    %1869 = vmatprep.subr.mxu0 0.0
    %1870 = vmatpush1.msra.mxu0 0.0
    %1871 = vmatprep.subr.mxu0 0.0
    %1872 = vmatpush1.msra.mxu0 0.0
    %1873 = vmatprep.subr.mxu0 0.0
    %1874 = vmatpush1.msra.mxu0 0.0
    %1875 = vmatprep.subr.mxu0 0.0
    %1876 = vmatpush1.msra.mxu0 0.0
    %1877 = vmatprep.subr.mxu0 0.0
    %1878 = vmatpush1.msra.mxu0 0.0
    %1879 = vmatprep.subr.mxu0 0.0
    %1880 = vmatpush1.msra.mxu0 0.0
    %1881 = vmatprep.subr.mxu0 0.0
    %1882 = vmatpush1.msra.mxu0 0.0
    %1883 = vmatprep.mubr.f32.mxu0 0.0
    %1884 = vmatmul.mubr.f32.gmra.mrb[0].mxu0 %v1817
    %v1885 = vpop.f32.mrb[0].mxu0
    %v1886 = vadd.f32 0.0, %v1885
    %v1887 = vpop.f32.mrb[0].mxu0
    %1888 = vdwg.mxu0
    %1891 = vrot.lane.b32.xlu0 %v1149, 8
    %v1892 = vpop.permute.xlu0 %1891
    %1893 = vrot.lane.b32.xlu0 %v1226, 8
    %v1894 = vpop.permute.xlu0 %1893
    %1899 = vrot.lane.b32.xlu0 %v1480, 16
    %v1900 = vpop.permute.xlu0 %1899
    %1901 = vrot.lane.b32.xlu0 %v1556, 16
    %v1902 = vpop.permute.xlu0 %1901
    %1907 = vrot.lane.b32.xlu0 %v1810, 24
    %v1908 = vpop.permute.xlu0 %1907
    %1909 = vrot.lane.b32.xlu0 %v1886, 24
    %v1910 = vpop.permute.xlu0 %1909
    %v1913 = vsel %vm576, %v821, %v1892
    %v1914 = vsel %vm576, %v894, %v1894
    %vm1915 = vcmask 130048
    %v1916 = vsel %vm1915, %v1913, %v1900
    %v1917 = vsel %vm1915, %v1914, %v1902
    %vm1918 = vcmask 195584
    %v1919 = vsel %vm1918, %v1916, %v1908
    %v1920 = vsel %vm1918, %v1917, %v1910
    %v1922 = vsel %vm188, %v1919, 0
    %v1925 = vsel %vm188, %v1920, 0
    %1927 = vmatprep.subr.mxu0 0.0
    %1928 = vmatpush1.msra.mxu0 %v246
    %1929 = vmatprep.subr.mxu0 0.0
    %1930 = vmatpush1.msra.mxu0 %v247
    %1931 = vmatprep.subr.mxu0 0.0
    %1932 = vmatpush1.msra.mxu0 %v248
    %1933 = vmatprep.subr.mxu0 0.0
    %1934 = vmatpush1.msra.mxu0 %v249
    %1935 = vmatprep.subr.mxu0 0.0
    %1936 = vmatpush1.msra.mxu0 0.0
    %1937 = vmatprep.subr.mxu0 0.0
    %1938 = vmatpush1.msra.mxu0 0.0
    %1939 = vmatprep.subr.mxu0 0.0
    %1940 = vmatpush1.msra.mxu0 0.0
    %1941 = vmatprep.subr.mxu0 0.0
    %1942 = vmatpush1.msra.mxu0 0.0
    %1943 = vmatprep.subr.mxu0 0.0
    %1944 = vmatpush1.msra.mxu0 0.0
    %1945 = vmatprep.subr.mxu0 0.0
    %1946 = vmatpush1.msra.mxu0 0.0
    %1947 = vmatprep.subr.mxu0 0.0
    %1948 = vmatpush1.msra.mxu0 0.0
    %1949 = vmatprep.subr.mxu0 0.0
    %1950 = vmatpush1.msra.mxu0 0.0
    %1951 = vmatprep.subr.mxu0 0.0
    %1952 = vmatpush1.msra.mxu0 0.0
    %1953 = vmatprep.subr.mxu0 0.0
    %1954 = vmatpush1.msra.mxu0 0.0
    %1955 = vmatprep.subr.mxu0 0.0
    %1956 = vmatpush1.msra.mxu0 0.0
    %1957 = vmatprep.subr.mxu0 0.0
    %1958 = vmatpush1.msra.mxu0 0.0
    %1959 = vmatprep.subr.mxu0 0.0
    %1960 = vmatpush1.msra.mxu0 0.0
    %1961 = vmatprep.subr.mxu0 0.0
    %1962 = vmatpush1.msra.mxu0 0.0
    %1963 = vmatprep.subr.mxu0 0.0
    %1964 = vmatpush1.msra.mxu0 0.0
    %1965 = vmatprep.subr.mxu0 0.0
    %1966 = vmatpush1.msra.mxu0 0.0
    %1967 = vmatprep.subr.mxu0 0.0
    %1968 = vmatpush1.msra.mxu0 0.0
    %1969 = vmatprep.subr.mxu0 0.0
    %1970 = vmatpush1.msra.mxu0 0.0
    %1971 = vmatprep.subr.mxu0 0.0
    %1972 = vmatpush1.msra.mxu0 0.0
    %1973 = vmatprep.subr.mxu0 0.0
    %1974 = vmatpush1.msra.mxu0 0.0
    %1975 = vmatprep.subr.mxu0 0.0
    %1976 = vmatpush1.msra.mxu0 0.0
    %1977 = vmatprep.subr.mxu0 0.0
    %1978 = vmatpush1.msra.mxu0 0.0
    %1979 = vmatprep.subr.mxu0 0.0
    %1980 = vmatpush1.msra.mxu0 0.0
    %1981 = vmatprep.subr.mxu0 0.0
    %1982 = vmatpush1.msra.mxu0 0.0
    %1983 = vmatprep.subr.mxu0 0.0
    %1984 = vmatpush1.msra.mxu0 0.0
    %1985 = vmatprep.subr.mxu0 0.0
    %1986 = vmatpush1.msra.mxu0 0.0
    %1987 = vmatprep.subr.mxu0 0.0
    %1988 = vmatpush1.msra.mxu0 0.0
    %1989 = vmatprep.subr.mxu0 0.0
    %1990 = vmatpush1.msra.mxu0 0.0
    %1991 = vmatprep.mubr.f32.mxu0 0.0
    %1992 = vmatmul.mubr.f32.gmra.mrb[0].mxu0 %v1922
    %v1993 = vpop.f32.mrb[0].mxu0
    %v1994 = vadd.f32 0.0, %v1993
    %v1995 = vpop.f32.mrb[0].mxu0
    %1996 = vmatprep.mubr.f32.mxu0 0.0
    %1997 = vmatmul.mubr.f32.gmra.mrb[0].mxu0 %v1925
    %v1998 = vpop.f32.mrb[0].mxu0
    %v1999 = vadd.f32 0.0, %v1998
    %v2000 = vpop.f32.mrb[0].mxu0
    %2001 = vdwg.mxu0
    %v2002 = vadd.f32 %v220, %v1994
    %v2003 = vadd.f32 %v221, %v1999
    %v2004 = vld [vmem:[#allocation2] sm:$0xff]
    %v2005 = vld [vmem:[#allocation2 + $0x8] sm:$0xff]
    %v2006 = vld [vmem:[#allocation2 + $0x10] sm:$0xff]
    %v2007 = vld [vmem:[#allocation2 + $0x18] sm:$0xff]
    %v2008 = vld [vmem:[#allocation2 + $0x20] sm:$0xff]
    %v2009 = vld [vmem:[#allocation2 + $0x28] sm:$0xff]
    %v2010 = vld [vmem:[#allocation2 + $0x30] sm:$0xff]
    %v2011 = vld [vmem:[#allocation2 + $0x38] sm:$0xff]
    %v2012 = vld [vmem:[%s3 + $0x148] sm:$0xff]
    %v2013 = vld [vmem:[%s3 + $0x150] sm:$0xff]
    %v2014 = vld [vmem:[%s3 + $0x158] sm:$0xff]
    %v2015 = vld [vmem:[%s3 + $0x160] sm:$0xff]
    %v2016 = vld [vmem:[%s3 + $0x168] sm:$0xff]
    %v2017 = vld [vmem:[%s3 + $0x170] sm:$0xff]
    %v2018 = vld [vmem:[%s3 + $0x178] sm:$0xff]
    %v2019 = vld [vmem:[%s3 + $0x180] sm:$0xff]
    %v2020 = vsel %vm188, %v2002, 0.0
    %2021 = vadd.xlane.f32.xlu0 %v2020
    %v2022 = vpop.xlane.xlu0 %2021
    %v2023 = vsel %vm188, %v2003, 0.0
    %2024 = vadd.xlane.f32.xlu0 %v2023
    %v2025 = vpop.xlane.xlu0 %2024
    %v2026 = vmul.f32 %v2022, %v195
    %v2027 = vmul.f32 %v2025, %v195
    %v2028 = vsub.f32 %v2002, %v2026
    %v2029 = vsub.f32 %v2003, %v2027
    %v2030 = vmul.f32 %v2028, %v2028
    %v2031 = vmul.f32 %v2029, %v2029
    %v2032 = vsel %vm188, %v2030, 0.0
    %2033 = vadd.xlane.f32.xlu0 %v2032
    %v2034 = vpop.xlane.xlu0 %2033
    %v2035 = vsel %vm188, %v2031, 0.0
    %2036 = vadd.xlane.f32.xlu0 %v2035
    %v2037 = vpop.xlane.xlu0 %2036
    %v2038 = vmul.f32 %v2034, %v195
    %v2039 = vmul.f32 %v2037, %v195
    %v2040 = vadd.f32 %v2038, 1e-05
    %v2041 = vadd.f32 %v2039, 1e-05
    %v2042 = vrsqrt.pop %v2040
    %v2043 = vrsqrt.pop %v2041
    %v2044 = vmul.f32 %v2028, %v2042
    %v2045 = vmul.f32 %v2029, %v2043
    %v2046 = vlaneseq
    %v2047 = vshrl.u32 %v2046, 7
    %v2048 = vsub.s32 0, %v2047
    %v2049 = vrot.slane %v250, %v2048
    %v2050 = vmul.f32 %v2044, %v2049
    %v2051 = vmul.f32 %v2045, %v2049
    %v2053 = vsel %vm188, %v2050, 0
    %v2056 = vsel %vm188, %v2051, 0
    %2058 = vmatprep.subr.mxu0 0.0
    %2059 = vmatpush1.msra.mxu0 %v2004
    %2060 = vmatprep.subr.mxu0 0.0
    %2061 = vmatpush1.msra.mxu0 %v2005
    %2062 = vmatprep.subr.mxu0 0.0
    %2063 = vmatpush1.msra.mxu0 %v2006
    %2064 = vmatprep.subr.mxu0 0.0
    %2065 = vmatpush1.msra.mxu0 %v2007
    %2066 = vmatprep.subr.mxu0 0.0
    %2067 = vmatpush1.msra.mxu0 0.0
    %2068 = vmatprep.subr.mxu0 0.0
    %2069 = vmatpush1.msra.mxu0 0.0
    %2070 = vmatprep.subr.mxu0 0.0
    %2071 = vmatpush1.msra.mxu0 0.0
    %2072 = vmatprep.subr.mxu0 0.0
    %2073 = vmatpush1.msra.mxu0 0.0
    %2074 = vmatprep.subr.mxu0 0.0
    %2075 = vmatpush1.msra.mxu0 0.0
    %2076 = vmatprep.subr.mxu0 0.0
    %2077 = vmatpush1.msra.mxu0 0.0
    %2078 = vmatprep.subr.mxu0 0.0
    %2079 = vmatpush1.msra.mxu0 0.0
    %2080 = vmatprep.subr.mxu0 0.0
    %2081 = vmatpush1.msra.mxu0 0.0
    %2082 = vmatprep.subr.mxu0 0.0
    %2083 = vmatpush1.msra.mxu0 0.0
    %2084 = vmatprep.subr.mxu0 0.0
    %2085 = vmatpush1.msra.mxu0 0.0
    %2086 = vmatprep.subr.mxu0 0.0
    %2087 = vmatpush1.msra.mxu0 0.0
    %2088 = vmatprep.subr.mxu0 0.0
    %2089 = vmatpush1.msra.mxu0 0.0
    %2090 = vmatprep.subr.mxu0 0.0
    %2091 = vmatpush1.msra.mxu0 0.0
    %2092 = vmatprep.subr.mxu0 0.0
    %2093 = vmatpush1.msra.mxu0 0.0
    %2094 = vmatprep.subr.mxu0 0.0
    %2095 = vmatpush1.msra.mxu0 0.0
    %2096 = vmatprep.subr.mxu0 0.0
    %2097 = vmatpush1.msra.mxu0 0.0
    %2098 = vmatprep.subr.mxu0 0.0
    %2099 = vmatpush1.msra.mxu0 0.0
    %2100 = vmatprep.subr.mxu0 0.0
    %2101 = vmatpush1.msra.mxu0 0.0
    %2102 = vmatprep.subr.mxu0 0.0
    %2103 = vmatpush1.msra.mxu0 0.0
    %2104 = vmatprep.subr.mxu0 0.0
    %2105 = vmatpush1.msra.mxu0 0.0
    %2106 = vmatprep.subr.mxu0 0.0
    %2107 = vmatpush1.msra.mxu0 0.0
    %2108 = vmatprep.subr.mxu0 0.0
    %2109 = vmatpush1.msra.mxu0 0.0
    %2110 = vmatprep.subr.mxu0 0.0
    %2111 = vmatpush1.msra.mxu0 0.0
    %2112 = vmatprep.subr.mxu0 0.0
    %2113 = vmatpush1.msra.mxu0 0.0
    %2114 = vmatprep.subr.mxu0 0.0
    %2115 = vmatpush1.msra.mxu0 0.0
    %2116 = vmatprep.subr.mxu0 0.0
    %2117 = vmatpush1.msra.mxu0 0.0
    %2118 = vmatprep.subr.mxu0 0.0
    %2119 = vmatpush1.msra.mxu0 0.0
    %2120 = vmatprep.subr.mxu0 0.0
    %2121 = vmatpush1.msra.mxu0 0.0
    %2122 = vmatprep.mubr.f32.mxu0 0.0
    %2123 = vmatmul.mubr.f32.gmra.mrb[0].mxu0 %v2053
    %v2124 = vpop.f32.mrb[0].mxu0
    %v2125 = vadd.f32 0.0, %v2124
    %v2126 = vpop.f32.mrb[0].mxu0
    %2127 = vmatprep.mubr.f32.mxu0 0.0
    %2128 = vmatmul.mubr.f32.gmra.mrb[0].mxu0 %v2056
    %v2129 = vpop.f32.mrb[0].mxu0
    %v2130 = vadd.f32 0.0, %v2129
    %v2131 = vpop.f32.mrb[0].mxu0
    %2132 = vdwg.mxu0
    %2133 = vmatprep.subr.mxu0 0.0
    %2134 = vmatpush1.msra.mxu0 %v2008
    %2135 = vmatprep.subr.mxu0 0.0
    %2136 = vmatpush1.msra.mxu0 %v2009
    %2137 = vmatprep.subr.mxu0 0.0
    %2138 = vmatpush1.msra.mxu0 %v2010
    %2139 = vmatprep.subr.mxu0 0.0
    %2140 = vmatpush1.msra.mxu0 %v2011
    %2141 = vmatprep.subr.mxu0 0.0
    %2142 = vmatpush1.msra.mxu0 0.0
    %2143 = vmatprep.subr.mxu0 0.0
    %2144 = vmatpush1.msra.mxu0 0.0
    %2145 = vmatprep.subr.mxu0 0.0
    %2146 = vmatpush1.msra.mxu0 0.0
    %2147 = vmatprep.subr.mxu0 0.0
    %2148 = vmatpush1.msra.mxu0 0.0
    %2149 = vmatprep.subr.mxu0 0.0
    %2150 = vmatpush1.msra.mxu0 0.0
    %2151 = vmatprep.subr.mxu0 0.0
    %2152 = vmatpush1.msra.mxu0 0.0
    %2153 = vmatprep.subr.mxu0 0.0
    %2154 = vmatpush1.msra.mxu0 0.0
    %2155 = vmatprep.subr.mxu0 0.0
    %2156 = vmatpush1.msra.mxu0 0.0
    %2157 = vmatprep.subr.mxu0 0.0
    %2158 = vmatpush1.msra.mxu0 0.0
    %2159 = vmatprep.subr.mxu0 0.0
    %2160 = vmatpush1.msra.mxu0 0.0
    %2161 = vmatprep.subr.mxu0 0.0
    %2162 = vmatpush1.msra.mxu0 0.0
    %2163 = vmatprep.subr.mxu0 0.0
    %2164 = vmatpush1.msra.mxu0 0.0
    %2165 = vmatprep.subr.mxu0 0.0
    %2166 = vmatpush1.msra.mxu0 0.0
    %2167 = vmatprep.subr.mxu0 0.0
    %2168 = vmatpush1.msra.mxu0 0.0
    %2169 = vmatprep.subr.mxu0 0.0
    %2170 = vmatpush1.msra.mxu0 0.0
    %2171 = vmatprep.subr.mxu0 0.0
    %2172 = vmatpush1.msra.mxu0 0.0
    %2173 = vmatprep.subr.mxu0 0.0
    %2174 = vmatpush1.msra.mxu0 0.0
    %2175 = vmatprep.subr.mxu0 0.0
    %2176 = vmatpush1.msra.mxu0 0.0
    %2177 = vmatprep.subr.mxu0 0.0
    %2178 = vmatpush1.msra.mxu0 0.0
    %2179 = vmatprep.subr.mxu0 0.0
    %2180 = vmatpush1.msra.mxu0 0.0
    %2181 = vmatprep.subr.mxu0 0.0
    %2182 = vmatpush1.msra.mxu0 0.0
    %2183 = vmatprep.subr.mxu0 0.0
    %2184 = vmatpush1.msra.mxu0 0.0
    %2185 = vmatprep.subr.mxu0 0.0
    %2186 = vmatpush1.msra.mxu0 0.0
    %2187 = vmatprep.subr.mxu0 0.0
    %2188 = vmatpush1.msra.mxu0 0.0
    %2189 = vmatprep.subr.mxu0 0.0
    %2190 = vmatpush1.msra.mxu0 0.0
    %2191 = vmatprep.subr.mxu0 0.0
    %2192 = vmatpush1.msra.mxu0 0.0
    %2193 = vmatprep.subr.mxu0 0.0
    %2194 = vmatpush1.msra.mxu0 0.0
    %2195 = vmatprep.subr.mxu0 0.0
    %2196 = vmatpush1.msra.mxu0 0.0
    %2197 = vmatprep.mubr.f32.mxu0 0.0
    %2198 = vmatmul.mubr.f32.gmra.mrb[0].mxu0 %v2053
    %v2199 = vpop.f32.mrb[0].mxu0
    %v2200 = vadd.f32 0.0, %v2199
    %v2201 = vpop.f32.mrb[0].mxu0
    %2202 = vmatprep.mubr.f32.mxu0 0.0
    %2203 = vmatmul.mubr.f32.gmra.mrb[0].mxu0 %v2056
    %v2204 = vpop.f32.mrb[0].mxu0
    %v2205 = vadd.f32 0.0, %v2204
    %v2206 = vpop.f32.mrb[0].mxu0
    %2207 = vdwg.mxu0
    %v2208 = vmul.f32 %v2125, 0.5
    %v2209 = vmul.f32 %v2130, 0.5
    %v2210 = vmul.f32 %v2125, 0.70710677
    %v2211 = vmul.f32 %v2130, 0.70710677
    %vm2212 = vcmp.ge.f32.partialorder %v2210, 0.0
    %vm2213 = vcmp.ge.f32.partialorder %v2211, 0.0
    %v2214 = vsel %vm2212, 1.0, -1.0
    %v2215 = vsel %vm2213, 1.0, -1.0
    %v2216 = vand.u32 2147483647, %v2210
    %v2217 = vand.u32 2147483647, %v2211
    %v2218 = vmul.f32 %v2216, 0.3275911
    %v2219 = vmul.f32 %v2217, 0.3275911
    %v2220 = vadd.f32 %v2218, 1.0
    %v2221 = vadd.f32 %v2219, 1.0
    %v2222 = vrcp.pop %v2220
    %v2223 = vmul.f32 1.0, %v2222
    %v2224 = vrcp.pop %v2221
    %v2225 = vmul.f32 1.0, %v2224
    %v2226 = vmul.f32 %v2223, 1.0614054
    %v2227 = vmul.f32 %v2225, 1.0614054
    %v2228 = vadd.f32 %v2226, -1.4531521
    %v2229 = vadd.f32 %v2227, -1.4531521
    %v2230 = vmul.f32 %v2228, %v2223
    %v2231 = vmul.f32 %v2229, %v2225
    %v2232 = vadd.f32 %v2230, 1.4214138
    %v2233 = vadd.f32 %v2231, 1.4214138
    %v2234 = vmul.f32 %v2232, %v2223
    %v2235 = vmul.f32 %v2233, %v2225
    %v2236 = vadd.f32 %v2234, -0.28449672
    %v2237 = vadd.f32 %v2235, -0.28449672
    %v2238 = vmul.f32 %v2236, %v2223
    %v2239 = vmul.f32 %v2237, %v2225
    %v2240 = vadd.f32 %v2238, 0.2548296
    %v2241 = vadd.f32 %v2239, 0.2548296
    %v2242 = vmul.f32 %v2240, %v2223
    %v2243 = vmul.f32 %v2241, %v2225
    %v2244 = vsub.f32 0.0, %v2216
    %v2245 = vsub.f32 0.0, %v2217
    %v2246 = vmul.f32 %v2244, %v2216
    %v2247 = vmul.f32 %v2245, %v2217
    %v2248 = vmul.f32 %v2246, 1.442695
    %v2249 = vpow.pop %v2248
    %v2250 = vmul.f32 %v2247, 1.442695
    %v2251 = vpow.pop %v2250
    %v2252 = vmul.f32 %v2242, %v2249
    %v2253 = vmul.f32 %v2243, %v2251
    %v2254 = vsub.f32 1.0, %v2252
    %v2255 = vsub.f32 1.0, %v2253
    %v2256 = vmul.f32 %v2214, %v2254
    %v2257 = vmul.f32 %v2215, %v2255
    %v2258 = vadd.f32 %v2256, 1.0
    %v2259 = vadd.f32 %v2257, 1.0
    %v2260 = vmul.f32 %v2208, %v2258
    %v2261 = vmul.f32 %v2209, %v2259
    %v2262 = vmul.f32 %v2260, %v2200
    %v2263 = vmul.f32 %v2261, %v2205
    %v2265 = vsel %vm105, %v2262, 0
    %v2268 = vsel %vm105, %v2263, 0
    %2270 = vmatprep.subr.mxu0 0.0
    %2271 = vmatpush1.msra.mxu0 %v2012
    %2272 = vmatprep.subr.mxu0 0.0
    %2273 = vmatpush1.msra.mxu0 %v2013
    %2274 = vmatprep.subr.mxu0 0.0
    %2275 = vmatpush1.msra.mxu0 %v2014
    %2276 = vmatprep.subr.mxu0 0.0
    %2277 = vmatpush1.msra.mxu0 %v2015
    %2278 = vmatprep.subr.mxu0 0.0
    %2279 = vmatpush1.msra.mxu0 %v2016
    %2280 = vmatprep.subr.mxu0 0.0
    %2281 = vmatpush1.msra.mxu0 %v2017
    %2282 = vmatprep.subr.mxu0 0.0
    %2283 = vmatpush1.msra.mxu0 %v2018
    %2284 = vmatprep.subr.mxu0 0.0
    %2285 = vmatpush1.msra.mxu0 %v2019
    %2286 = vmatprep.subr.mxu0 0.0
    %2287 = vmatpush1.msra.mxu0 0.0
    %2288 = vmatprep.subr.mxu0 0.0
    %2289 = vmatpush1.msra.mxu0 0.0
    %2290 = vmatprep.subr.mxu0 0.0
    %2291 = vmatpush1.msra.mxu0 0.0
    %2292 = vmatprep.subr.mxu0 0.0
    %2293 = vmatpush1.msra.mxu0 0.0
    %2294 = vmatprep.subr.mxu0 0.0
    %2295 = vmatpush1.msra.mxu0 0.0
    %2296 = vmatprep.subr.mxu0 0.0
    %2297 = vmatpush1.msra.mxu0 0.0
    %2298 = vmatprep.subr.mxu0 0.0
    %2299 = vmatpush1.msra.mxu0 0.0
    %2300 = vmatprep.subr.mxu0 0.0
    %2301 = vmatpush1.msra.mxu0 0.0
    %2302 = vmatprep.subr.mxu0 0.0
    %2303 = vmatpush1.msra.mxu0 0.0
    %2304 = vmatprep.subr.mxu0 0.0
    %2305 = vmatpush1.msra.mxu0 0.0
    %2306 = vmatprep.subr.mxu0 0.0
    %2307 = vmatpush1.msra.mxu0 0.0
    %2308 = vmatprep.subr.mxu0 0.0
    %2309 = vmatpush1.msra.mxu0 0.0
    %2310 = vmatprep.subr.mxu0 0.0
    %2311 = vmatpush1.msra.mxu0 0.0
    %2312 = vmatprep.subr.mxu0 0.0
    %2313 = vmatpush1.msra.mxu0 0.0
    %2314 = vmatprep.subr.mxu0 0.0
    %2315 = vmatpush1.msra.mxu0 0.0
    %2316 = vmatprep.subr.mxu0 0.0
    %2317 = vmatpush1.msra.mxu0 0.0
    %2318 = vmatprep.subr.mxu0 0.0
    %2319 = vmatpush1.msra.mxu0 0.0
    %2320 = vmatprep.subr.mxu0 0.0
    %2321 = vmatpush1.msra.mxu0 0.0
    %2322 = vmatprep.subr.mxu0 0.0
    %2323 = vmatpush1.msra.mxu0 0.0
    %2324 = vmatprep.subr.mxu0 0.0
    %2325 = vmatpush1.msra.mxu0 0.0
    %2326 = vmatprep.subr.mxu0 0.0
    %2327 = vmatpush1.msra.mxu0 0.0
    %2328 = vmatprep.subr.mxu0 0.0
    %2329 = vmatpush1.msra.mxu0 0.0
    %2330 = vmatprep.subr.mxu0 0.0
    %2331 = vmatpush1.msra.mxu0 0.0
    %2332 = vmatprep.subr.mxu0 0.0
    %2333 = vmatpush1.msra.mxu0 0.0
    %2334 = vmatprep.mubr.f32.mxu0 0.0
    %2335 = vmatmul.mubr.f32.gmra.mrb[0].mxu0 %v2265
    %v2336 = vpop.f32.mrb[0].mxu0
    %v2337 = vadd.f32 0.0, %v2336
    %v2338 = vpop.f32.mrb[0].mxu0
    %2339 = vmatprep.mubr.f32.mxu0 0.0
    %2340 = vmatmul.mubr.f32.gmra.mrb[0].mxu0 %v2268
    %v2341 = vpop.f32.mrb[0].mxu0
    %v2342 = vadd.f32 0.0, %v2341
    %v2343 = vpop.f32.mrb[0].mxu0
    %2344 = vdwg.mxu0
    %v2345 = vadd.f32 %v2002, %v2337
    %v2346 = vadd.f32 %v2003, %v2342
    %s2347 = scalar_lea.vmem %s5, 16
    %2348 = vst.msk [vmem:[%s2347] sm:$0xff] %vm188, %v2345
    %2349 = vst.msk [vmem:[%s2347 + $0x8] sm:$0xff] %vm188, %v2346
    %v2350 = vld [vmem:[%s3 + $0xc8] sm:$0xff]
    %v2351 = vld [vmem:[%s3 + $0xd0] sm:$0xff]
    %v2352 = vld [vmem:[%s3 + $0xd8] sm:$0xff]
    %v2353 = vld [vmem:[%s3 + $0xe0] sm:$0xff]
    %v2354 = vld [vmem:[%s3 + $0xe8] sm:$0xff]
    %v2355 = vld [vmem:[%s3 + $0xf0] sm:$0xff]
    %v2356 = vld [vmem:[%s3 + $0xf8] sm:$0xff]
    %v2357 = vld [vmem:[%s3 + $0x100] sm:$0xff]
    %v2358 = vld [vmem:[%s3 + $0x108] sm:$0xff]
    %v2359 = vld [vmem:[%s3 + $0x110] sm:$0xff]
    %v2360 = vld [vmem:[%s3 + $0x118] sm:$0xff]
    %v2361 = vld [vmem:[%s3 + $0x120] sm:$0xff]
    %v2362 = vld [vmem:[%s3 + $0x128] sm:$0xff]
    %v2363 = vld [vmem:[%s3 + $0x130] sm:$0xff]
    %v2364 = vld [vmem:[%s3 + $0x138] sm:$0xff]
    %v2365 = vld [vmem:[%s3 + $0x140] sm:$0xff]
    %v2366 = vld [vmem:[%s3 + $0x43] sm:$0x1]
    %v2367 = vld [vmem:[%s3 + $0x44] sm:$0x1]
    %v2368 = vsel %vm188, %v2345, 0.0
    %2369 = vadd.xlane.f32.xlu0 %v2368
    %v2370 = vpop.xlane.xlu0 %2369
    %v2371 = vsel %vm188, %v2346, 0.0
    %2372 = vadd.xlane.f32.xlu0 %v2371
    %v2373 = vpop.xlane.xlu0 %2372
    %v2374 = vmul.f32 %v2370, %v195
    %v2375 = vmul.f32 %v2373, %v195
    %v2376 = vsub.f32 %v2345, %v2374
    %v2377 = vsub.f32 %v2346, %v2375
    %v2378 = vmul.f32 %v2376, %v2376
    %v2379 = vmul.f32 %v2377, %v2377
    %v2380 = vsel %vm188, %v2378, 0.0
    %2381 = vadd.xlane.f32.xlu0 %v2380
    %v2382 = vpop.xlane.xlu0 %2381
    %v2383 = vsel %vm188, %v2379, 0.0
    %2384 = vadd.xlane.f32.xlu0 %v2383
    %v2385 = vpop.xlane.xlu0 %2384
    %v2386 = vmul.f32 %v2382, %v195
    %v2387 = vmul.f32 %v2385, %v195
    %v2388 = vadd.f32 %v2386, 1e-05
    %v2389 = vadd.f32 %v2387, 1e-05
    %v2390 = vrsqrt.pop %v2388
    %v2391 = vrsqrt.pop %v2389
    %v2392 = vmul.f32 %v2376, %v2390
    %v2393 = vmul.f32 %v2377, %v2391
    %v2394 = vlaneseq
    %v2395 = vshrl.u32 %v2394, 7
    %v2396 = vsub.s32 0, %v2395
    %v2397 = vrot.slane %v2366, %v2396
    %v2398 = vmul.f32 %v2392, %v2397
    %v2399 = vmul.f32 %v2393, %v2397
    %v2401 = vsel %vm188, %v2398, 0
    %v2404 = vsel %vm188, %v2399, 0
    %2406 = vmatprep.subr.mxu0 0.0
    %2407 = vmatpush1.msra.mxu0 %v2350
    %2408 = vmatprep.subr.mxu0 0.0
    %2409 = vmatpush1.msra.mxu0 %v2351
    %2410 = vmatprep.subr.mxu0 0.0
    %2411 = vmatpush1.msra.mxu0 %v2352
    %2412 = vmatprep.subr.mxu0 0.0
    %2413 = vmatpush1.msra.mxu0 %v2353
    %2414 = vmatprep.subr.mxu0 0.0
    %2415 = vmatpush1.msra.mxu0 0.0
    %2416 = vmatprep.subr.mxu0 0.0
    %2417 = vmatpush1.msra.mxu0 0.0
    %2418 = vmatprep.subr.mxu0 0.0
    %2419 = vmatpush1.msra.mxu0 0.0
    %2420 = vmatprep.subr.mxu0 0.0
    %2421 = vmatpush1.msra.mxu0 0.0
    %2422 = vmatprep.subr.mxu0 0.0
    %2423 = vmatpush1.msra.mxu0 0.0
    %2424 = vmatprep.subr.mxu0 0.0
    %2425 = vmatpush1.msra.mxu0 0.0
    %2426 = vmatprep.subr.mxu0 0.0
    %2427 = vmatpush1.msra.mxu0 0.0
    %2428 = vmatprep.subr.mxu0 0.0
    %2429 = vmatpush1.msra.mxu0 0.0
    %2430 = vmatprep.subr.mxu0 0.0
    %2431 = vmatpush1.msra.mxu0 0.0
    %2432 = vmatprep.subr.mxu0 0.0
    %2433 = vmatpush1.msra.mxu0 0.0
    %2434 = vmatprep.subr.mxu0 0.0
    %2435 = vmatpush1.msra.mxu0 0.0
    %2436 = vmatprep.subr.mxu0 0.0
    %2437 = vmatpush1.msra.mxu0 0.0
    %2438 = vmatprep.subr.mxu0 0.0
    %2439 = vmatpush1.msra.mxu0 0.0
    %2440 = vmatprep.subr.mxu0 0.0
    %2441 = vmatpush1.msra.mxu0 0.0
    %2442 = vmatprep.subr.mxu0 0.0
    %2443 = vmatpush1.msra.mxu0 0.0
    %2444 = vmatprep.subr.mxu0 0.0
    %2445 = vmatpush1.msra.mxu0 0.0
    %2446 = vmatprep.subr.mxu0 0.0
    %2447 = vmatpush1.msra.mxu0 0.0
    %2448 = vmatprep.subr.mxu0 0.0
    %2449 = vmatpush1.msra.mxu0 0.0
    %2450 = vmatprep.subr.mxu0 0.0
    %2451 = vmatpush1.msra.mxu0 0.0
    %2452 = vmatprep.subr.mxu0 0.0
    %2453 = vmatpush1.msra.mxu0 0.0
    %2454 = vmatprep.subr.mxu0 0.0
    %2455 = vmatpush1.msra.mxu0 0.0
    %2456 = vmatprep.subr.mxu0 0.0
    %2457 = vmatpush1.msra.mxu0 0.0
    %2458 = vmatprep.subr.mxu0 0.0
    %2459 = vmatpush1.msra.mxu0 0.0
    %2460 = vmatprep.subr.mxu0 0.0
    %2461 = vmatpush1.msra.mxu0 0.0
    %2462 = vmatprep.subr.mxu0 0.0
    %2463 = vmatpush1.msra.mxu0 0.0
    %2464 = vmatprep.subr.mxu0 0.0
    %2465 = vmatpush1.msra.mxu0 0.0
    %2466 = vmatprep.subr.mxu0 0.0
    %2467 = vmatpush1.msra.mxu0 0.0
    %2468 = vmatprep.subr.mxu0 0.0
    %2469 = vmatpush1.msra.mxu0 0.0
    %2470 = vmatprep.mubr.f32.mxu0 0.0
    %2471 = vmatmul.mubr.f32.gmra.mrb[0].mxu0 %v2401
    %v2472 = vpop.f32.mrb[0].mxu0
    %v2473 = vadd.f32 0.0, %v2472
    %v2474 = vpop.f32.mrb[0].mxu0
    %2475 = vmatprep.mubr.f32.mxu0 0.0
    %2476 = vmatmul.mubr.f32.gmra.mrb[0].mxu0 %v2404
    %v2477 = vpop.f32.mrb[0].mxu0
    %v2478 = vadd.f32 0.0, %v2477
    %v2479 = vpop.f32.mrb[0].mxu0
    %2480 = vdwg.mxu0
    %2481 = vmatprep.subr.mxu0 0.0
    %2482 = vmatpush1.msra.mxu0 %v2354
    %2483 = vmatprep.subr.mxu0 0.0
    %2484 = vmatpush1.msra.mxu0 %v2355
    %2485 = vmatprep.subr.mxu0 0.0
    %2486 = vmatpush1.msra.mxu0 %v2356
    %2487 = vmatprep.subr.mxu0 0.0
    %2488 = vmatpush1.msra.mxu0 %v2357
    %2489 = vmatprep.subr.mxu0 0.0
    %2490 = vmatpush1.msra.mxu0 0.0
    %2491 = vmatprep.subr.mxu0 0.0
    %2492 = vmatpush1.msra.mxu0 0.0
    %2493 = vmatprep.subr.mxu0 0.0
    %2494 = vmatpush1.msra.mxu0 0.0
    %2495 = vmatprep.subr.mxu0 0.0
    %2496 = vmatpush1.msra.mxu0 0.0
    %2497 = vmatprep.subr.mxu0 0.0
    %2498 = vmatpush1.msra.mxu0 0.0
    %2499 = vmatprep.subr.mxu0 0.0
    %2500 = vmatpush1.msra.mxu0 0.0
    %2501 = vmatprep.subr.mxu0 0.0
    %2502 = vmatpush1.msra.mxu0 0.0
    %2503 = vmatprep.subr.mxu0 0.0
    %2504 = vmatpush1.msra.mxu0 0.0
    %2505 = vmatprep.subr.mxu0 0.0
    %2506 = vmatpush1.msra.mxu0 0.0
    %2507 = vmatprep.subr.mxu0 0.0
    %2508 = vmatpush1.msra.mxu0 0.0
    %2509 = vmatprep.subr.mxu0 0.0
    %2510 = vmatpush1.msra.mxu0 0.0
    %2511 = vmatprep.subr.mxu0 0.0
    %2512 = vmatpush1.msra.mxu0 0.0
    %2513 = vmatprep.subr.mxu0 0.0
    %2514 = vmatpush1.msra.mxu0 0.0
    %2515 = vmatprep.subr.mxu0 0.0
    %2516 = vmatpush1.msra.mxu0 0.0
    %2517 = vmatprep.subr.mxu0 0.0
    %2518 = vmatpush1.msra.mxu0 0.0
    %2519 = vmatprep.subr.mxu0 0.0
    %2520 = vmatpush1.msra.mxu0 0.0
    %2521 = vmatprep.subr.mxu0 0.0
    %2522 = vmatpush1.msra.mxu0 0.0
    %2523 = vmatprep.subr.mxu0 0.0
    %2524 = vmatpush1.msra.mxu0 0.0
    %2525 = vmatprep.subr.mxu0 0.0
    %2526 = vmatpush1.msra.mxu0 0.0
    %2527 = vmatprep.subr.mxu0 0.0
    %2528 = vmatpush1.msra.mxu0 0.0
    %2529 = vmatprep.subr.mxu0 0.0
    %2530 = vmatpush1.msra.mxu0 0.0
    %2531 = vmatprep.subr.mxu0 0.0
    %2532 = vmatpush1.msra.mxu0 0.0
    %2533 = vmatprep.subr.mxu0 0.0
    %2534 = vmatpush1.msra.mxu0 0.0
    %2535 = vmatprep.subr.mxu0 0.0
    %2536 = vmatpush1.msra.mxu0 0.0
    %2537 = vmatprep.subr.mxu0 0.0
    %2538 = vmatpush1.msra.mxu0 0.0
    %2539 = vmatprep.subr.mxu0 0.0
    %2540 = vmatpush1.msra.mxu0 0.0
    %2541 = vmatprep.subr.mxu0 0.0
    %2542 = vmatpush1.msra.mxu0 0.0
    %2543 = vmatprep.subr.mxu0 0.0
    %2544 = vmatpush1.msra.mxu0 0.0
    %2545 = vmatprep.mubr.f32.mxu0 0.0
    %2546 = vmatmul.mubr.f32.gmra.mrb[0].mxu0 %v2401
    %v2547 = vpop.f32.mrb[0].mxu0
    %v2548 = vadd.f32 0.0, %v2547
    %v2549 = vpop.f32.mrb[0].mxu0
    %2550 = vmatprep.mubr.f32.mxu0 0.0
    %2551 = vmatmul.mubr.f32.gmra.mrb[0].mxu0 %v2404
    %v2552 = vpop.f32.mrb[0].mxu0
    %v2553 = vadd.f32 0.0, %v2552
    %v2554 = vpop.f32.mrb[0].mxu0
    %2555 = vdwg.mxu0
    %2556 = vmatprep.subr.mxu0 0.0
    %2557 = vmatpush1.msra.mxu0 %v2358
    %2558 = vmatprep.subr.mxu0 0.0
    %2559 = vmatpush1.msra.mxu0 %v2359
    %2560 = vmatprep.subr.mxu0 0.0
    %2561 = vmatpush1.msra.mxu0 %v2360
    %2562 = vmatprep.subr.mxu0 0.0
    %2563 = vmatpush1.msra.mxu0 %v2361
    %2564 = vmatprep.subr.mxu0 0.0
    %2565 = vmatpush1.msra.mxu0 0.0
    %2566 = vmatprep.subr.mxu0 0.0
    %2567 = vmatpush1.msra.mxu0 0.0
    %2568 = vmatprep.subr.mxu0 0.0
    %2569 = vmatpush1.msra.mxu0 0.0
    %2570 = vmatprep.subr.mxu0 0.0
    %2571 = vmatpush1.msra.mxu0 0.0
    %2572 = vmatprep.subr.mxu0 0.0
    %2573 = vmatpush1.msra.mxu0 0.0
    %2574 = vmatprep.subr.mxu0 0.0
    %2575 = vmatpush1.msra.mxu0 0.0
    %2576 = vmatprep.subr.mxu0 0.0
    %2577 = vmatpush1.msra.mxu0 0.0
    %2578 = vmatprep.subr.mxu0 0.0
    %2579 = vmatpush1.msra.mxu0 0.0
    %2580 = vmatprep.subr.mxu0 0.0
    %2581 = vmatpush1.msra.mxu0 0.0
    %2582 = vmatprep.subr.mxu0 0.0
    %2583 = vmatpush1.msra.mxu0 0.0
    %2584 = vmatprep.subr.mxu0 0.0
    %2585 = vmatpush1.msra.mxu0 0.0
    %2586 = vmatprep.subr.mxu0 0.0
    %2587 = vmatpush1.msra.mxu0 0.0
    %2588 = vmatprep.subr.mxu0 0.0
    %2589 = vmatpush1.msra.mxu0 0.0
    %2590 = vmatprep.subr.mxu0 0.0
    %2591 = vmatpush1.msra.mxu0 0.0
    %2592 = vmatprep.subr.mxu0 0.0
    %2593 = vmatpush1.msra.mxu0 0.0
    %2594 = vmatprep.subr.mxu0 0.0
    %2595 = vmatpush1.msra.mxu0 0.0
    %2596 = vmatprep.subr.mxu0 0.0
    %2597 = vmatpush1.msra.mxu0 0.0
    %2598 = vmatprep.subr.mxu0 0.0
    %2599 = vmatpush1.msra.mxu0 0.0
    %2600 = vmatprep.subr.mxu0 0.0
    %2601 = vmatpush1.msra.mxu0 0.0
    %2602 = vmatprep.subr.mxu0 0.0
    %2603 = vmatpush1.msra.mxu0 0.0
    %2604 = vmatprep.subr.mxu0 0.0
    %2605 = vmatpush1.msra.mxu0 0.0
    %2606 = vmatprep.subr.mxu0 0.0
    %2607 = vmatpush1.msra.mxu0 0.0
    %2608 = vmatprep.subr.mxu0 0.0
    %2609 = vmatpush1.msra.mxu0 0.0
    %2610 = vmatprep.subr.mxu0 0.0
    %2611 = vmatpush1.msra.mxu0 0.0
    %2612 = vmatprep.subr.mxu0 0.0
    %2613 = vmatpush1.msra.mxu0 0.0
    %2614 = vmatprep.subr.mxu0 0.0
    %2615 = vmatpush1.msra.mxu0 0.0
    %2616 = vmatprep.subr.mxu0 0.0
    %2617 = vmatpush1.msra.mxu0 0.0
    %2618 = vmatprep.subr.mxu0 0.0
    %2619 = vmatpush1.msra.mxu0 0.0
    %2620 = vmatprep.mubr.f32.mxu0 0.0
    %2621 = vmatmul.mubr.f32.gmra.mrb[0].mxu0 %v2401
    %v2622 = vpop.f32.mrb[0].mxu0
    %v2623 = vadd.f32 0.0, %v2622
    %v2624 = vpop.f32.mrb[0].mxu0
    %2625 = vmatprep.mubr.f32.mxu0 0.0
    %2626 = vmatmul.mubr.f32.gmra.mrb[0].mxu0 %v2404
    %v2627 = vpop.f32.mrb[0].mxu0
    %v2628 = vadd.f32 0.0, %v2627
    %v2629 = vpop.f32.mrb[0].mxu0
    %2630 = vdwg.mxu0
    %2633 = vrot.lane.b32.xlu0 %v2473, 124
    %v2634 = vpop.permute.xlu0 %2633
    %2635 = vrot.lane.b32.xlu0 %v2478, 124
    %v2636 = vpop.permute.xlu0 %2635
    %2639 = vrot.lane.b32.xlu0 %v2473, 28
    %v2640 = vpop.permute.xlu0 %2639
    %2641 = vrot.lane.b32.xlu0 %v2478, 28
    %v2642 = vpop.permute.xlu0 %2641
    %v2645 = vsel %vm496, %v2634, %v2640
    %v2646 = vsel %vm496, %v2636, %v2642
    %2647 = vrot.lane.b32.xlu0 %v2473, 100
    %v2648 = vpop.permute.xlu0 %2647
    %2649 = vrot.lane.b32.xlu0 %v2478, 100
    %v2650 = vpop.permute.xlu0 %2649
    %2653 = vrot.lane.b32.xlu0 %v2473, 4
    %v2654 = vpop.permute.xlu0 %2653
    %2655 = vrot.lane.b32.xlu0 %v2478, 4
    %v2656 = vpop.permute.xlu0 %2655
    %v2659 = vsel %vm511, %v2648, %v2654
    %v2660 = vsel %vm511, %v2650, %v2656
    %v2661 = vmul.f32 %v2473, %v224
    %v2662 = vmul.f32 %v2478, %v225
    %v2663 = vmul.f32 %v2645, %v227
    %v2664 = vmul.f32 %v2646, %v228
    %v2665 = vadd.f32 %v2661, %v2663
    %v2666 = vadd.f32 %v2662, %v2664
    %v2667 = vmul.f32 %v2659, %v230
    %v2668 = vmul.f32 %v2660, %v231
    %v2669 = vadd.f32 %v2665, %v2667
    %v2670 = vadd.f32 %v2666, %v2668
    %2673 = vrot.lane.b32.xlu0 %v2548, 124
    %v2674 = vpop.permute.xlu0 %2673
    %2675 = vrot.lane.b32.xlu0 %v2553, 124
    %v2676 = vpop.permute.xlu0 %2675
    %2679 = vrot.lane.b32.xlu0 %v2548, 28
    %v2680 = vpop.permute.xlu0 %2679
    %2681 = vrot.lane.b32.xlu0 %v2553, 28
    %v2682 = vpop.permute.xlu0 %2681
    %v2685 = vsel %vm496, %v2674, %v2680
    %v2686 = vsel %vm496, %v2676, %v2682
    %2687 = vrot.lane.b32.xlu0 %v2548, 100
    %v2688 = vpop.permute.xlu0 %2687
    %2689 = vrot.lane.b32.xlu0 %v2553, 100
    %v2690 = vpop.permute.xlu0 %2689
    %2693 = vrot.lane.b32.xlu0 %v2548, 4
    %v2694 = vpop.permute.xlu0 %2693
    %2695 = vrot.lane.b32.xlu0 %v2553, 4
    %v2696 = vpop.permute.xlu0 %2695
    %v2699 = vsel %vm511, %v2688, %v2694
    %v2700 = vsel %vm511, %v2690, %v2696
    %v2701 = vmul.f32 %v2548, %v224
    %v2702 = vmul.f32 %v2553, %v225
    %v2703 = vmul.f32 %v2685, %v227
    %v2704 = vmul.f32 %v2686, %v228
    %v2705 = vadd.f32 %v2701, %v2703
    %v2706 = vadd.f32 %v2702, %v2704
    %v2707 = vmul.f32 %v2699, %v230
    %v2708 = vmul.f32 %v2700, %v231
    %v2709 = vadd.f32 %v2705, %v2707
    %v2710 = vadd.f32 %v2706, %v2708
    %v2712 = vsel %vm576, %v2669, 0
    %v2715 = vsel %vm576, %v2709, 0
    %2717 = vmatprep.subr.mxu0 0.0
    %2718 = vmatpush1.xpose.msra.mxu0 %v2715
    %2719 = vmatprep.subr.mxu0 0.0
    %2720 = vmatpush1.xpose.msra.mxu0 0.0
    %2721 = vmatprep.subr.mxu0 0.0
    %2722 = vmatpush1.xpose.msra.mxu0 0.0
    %2723 = vmatprep.subr.mxu0 0.0
    %2724 = vmatpush1.xpose.msra.mxu0 0.0
    %2725 = vmatprep.subr.mxu0 0.0
    %2726 = vmatpush1.xpose.msra.mxu0 0.0
    %2727 = vmatprep.subr.mxu0 0.0
    %2728 = vmatpush1.xpose.msra.mxu0 0.0
    %2729 = vmatprep.subr.mxu0 0.0
    %2730 = vmatpush1.xpose.msra.mxu0 0.0
    %2731 = vmatprep.subr.mxu0 0.0
    %2732 = vmatpush1.xpose.msra.mxu0 0.0
    %2733 = vmatprep.subr.mxu0 0.0
    %2734 = vmatpush1.xpose.msra.mxu0 0.0
    %2735 = vmatprep.subr.mxu0 0.0
    %2736 = vmatpush1.xpose.msra.mxu0 0.0
    %2737 = vmatprep.subr.mxu0 0.0
    %2738 = vmatpush1.xpose.msra.mxu0 0.0
    %2739 = vmatprep.subr.mxu0 0.0
    %2740 = vmatpush1.xpose.msra.mxu0 0.0
    %2741 = vmatprep.subr.mxu0 0.0
    %2742 = vmatpush1.xpose.msra.mxu0 0.0
    %2743 = vmatprep.subr.mxu0 0.0
    %2744 = vmatpush1.xpose.msra.mxu0 0.0
    %2745 = vmatprep.subr.mxu0 0.0
    %2746 = vmatpush1.xpose.msra.mxu0 0.0
    %2747 = vmatprep.subr.mxu0 0.0
    %2748 = vmatpush1.xpose.msra.mxu0 0.0
    %2749 = vmatprep.subr.mxu0 0.0
    %2750 = vmatpush1.xpose.msra.mxu0 0.0
    %2751 = vmatprep.subr.mxu0 0.0
    %2752 = vmatpush1.xpose.msra.mxu0 0.0
    %2753 = vmatprep.subr.mxu0 0.0
    %2754 = vmatpush1.xpose.msra.mxu0 0.0
    %2755 = vmatprep.subr.mxu0 0.0
    %2756 = vmatpush1.xpose.msra.mxu0 0.0
    %2757 = vmatprep.subr.mxu0 0.0
    %2758 = vmatpush1.xpose.msra.mxu0 0.0
    %2759 = vmatprep.subr.mxu0 0.0
    %2760 = vmatpush1.xpose.msra.mxu0 0.0
    %2761 = vmatprep.subr.mxu0 0.0
    %2762 = vmatpush1.xpose.msra.mxu0 0.0
    %2763 = vmatprep.subr.mxu0 0.0
    %2764 = vmatpush1.xpose.msra.mxu0 0.0
    %2765 = vmatprep.subr.mxu0 0.0
    %2766 = vmatpush1.xpose.msra.mxu0 0.0
    %2767 = vmatprep.subr.mxu0 0.0
    %2768 = vmatpush1.xpose.msra.mxu0 0.0
    %2769 = vmatprep.subr.mxu0 0.0
    %2770 = vmatpush1.xpose.msra.mxu0 0.0
    %2771 = vmatprep.subr.mxu0 0.0
    %2772 = vmatpush1.xpose.msra.mxu0 0.0
    %2773 = vmatprep.subr.mxu0 0.0
    %2774 = vmatpush1.xpose.msra.mxu0 0.0
    %2775 = vmatprep.subr.mxu0 0.0
    %2776 = vmatpush1.xpose.msra.mxu0 0.0
    %2777 = vmatprep.subr.mxu0 0.0
    %2778 = vmatpush1.xpose.msra.mxu0 0.0
    %2779 = vmatprep.subr.mxu0 0.0
    %2780 = vmatpush1.xpose.msra.mxu0 0.0
    %2781 = vmatprep.mubr.f32.mxu0 0.0
    %2782 = vmatmul.mubr.f32.gmra.mrb[0].mxu0 %v2712
    %v2783 = vpop.f32.mrb[0].mxu0
    %v2784 = vadd.f32 %v569, %v2783
    %v2785 = vpop.f32.mrb[0].mxu0
    %2786 = vdwg.mxu0
    %v2788 = vsel %vm576, %v2670, 0
    %v2791 = vsel %vm576, %v2710, 0
    %2793 = vmatprep.subr.mxu0 0.0
    %2794 = vmatpush1.xpose.msra.mxu0 %v2791
    %2795 = vmatprep.subr.mxu0 0.0
    %2796 = vmatpush1.xpose.msra.mxu0 0.0
    %2797 = vmatprep.subr.mxu0 0.0
    %2798 = vmatpush1.xpose.msra.mxu0 0.0
    %2799 = vmatprep.subr.mxu0 0.0
    %2800 = vmatpush1.xpose.msra.mxu0 0.0
    %2801 = vmatprep.subr.mxu0 0.0
    %2802 = vmatpush1.xpose.msra.mxu0 0.0
    %2803 = vmatprep.subr.mxu0 0.0
    %2804 = vmatpush1.xpose.msra.mxu0 0.0
    %2805 = vmatprep.subr.mxu0 0.0
    %2806 = vmatpush1.xpose.msra.mxu0 0.0
    %2807 = vmatprep.subr.mxu0 0.0
    %2808 = vmatpush1.xpose.msra.mxu0 0.0
    %2809 = vmatprep.subr.mxu0 0.0
    %2810 = vmatpush1.xpose.msra.mxu0 0.0
    %2811 = vmatprep.subr.mxu0 0.0
    %2812 = vmatpush1.xpose.msra.mxu0 0.0
    %2813 = vmatprep.subr.mxu0 0.0
    %2814 = vmatpush1.xpose.msra.mxu0 0.0
    %2815 = vmatprep.subr.mxu0 0.0
    %2816 = vmatpush1.xpose.msra.mxu0 0.0
    %2817 = vmatprep.subr.mxu0 0.0
    %2818 = vmatpush1.xpose.msra.mxu0 0.0
    %2819 = vmatprep.subr.mxu0 0.0
    %2820 = vmatpush1.xpose.msra.mxu0 0.0
    %2821 = vmatprep.subr.mxu0 0.0
    %2822 = vmatpush1.xpose.msra.mxu0 0.0
    %2823 = vmatprep.subr.mxu0 0.0
    %2824 = vmatpush1.xpose.msra.mxu0 0.0
    %2825 = vmatprep.subr.mxu0 0.0
    %2826 = vmatpush1.xpose.msra.mxu0 0.0
    %2827 = vmatprep.subr.mxu0 0.0
    %2828 = vmatpush1.xpose.msra.mxu0 0.0
    %2829 = vmatprep.subr.mxu0 0.0
    %2830 = vmatpush1.xpose.msra.mxu0 0.0
    %2831 = vmatprep.subr.mxu0 0.0
    %2832 = vmatpush1.xpose.msra.mxu0 0.0
    %2833 = vmatprep.subr.mxu0 0.0
    %2834 = vmatpush1.xpose.msra.mxu0 0.0
    %2835 = vmatprep.subr.mxu0 0.0
    %2836 = vmatpush1.xpose.msra.mxu0 0.0
    %2837 = vmatprep.subr.mxu0 0.0
    %2838 = vmatpush1.xpose.msra.mxu0 0.0
    %2839 = vmatprep.subr.mxu0 0.0
    %2840 = vmatpush1.xpose.msra.mxu0 0.0
    %2841 = vmatprep.subr.mxu0 0.0
    %2842 = vmatpush1.xpose.msra.mxu0 0.0
    %2843 = vmatprep.subr.mxu0 0.0
    %2844 = vmatpush1.xpose.msra.mxu0 0.0
    %2845 = vmatprep.subr.mxu0 0.0
    %2846 = vmatpush1.xpose.msra.mxu0 0.0
    %2847 = vmatprep.subr.mxu0 0.0
    %2848 = vmatpush1.xpose.msra.mxu0 0.0
    %2849 = vmatprep.subr.mxu0 0.0
    %2850 = vmatpush1.xpose.msra.mxu0 0.0
    %2851 = vmatprep.subr.mxu0 0.0
    %2852 = vmatpush1.xpose.msra.mxu0 0.0
    %2853 = vmatprep.subr.mxu0 0.0
    %2854 = vmatpush1.xpose.msra.mxu0 0.0
    %2855 = vmatprep.subr.mxu0 0.0
    %2856 = vmatpush1.xpose.msra.mxu0 0.0
    %2857 = vmatprep.mubr.f32.mxu0 0.0
    %2858 = vmatmul.mubr.f32.gmra.mrb[0].mxu0 %v2788
    %v2859 = vpop.f32.mrb[0].mxu0
    %v2860 = vadd.f32 %v573, %v2859
    %v2861 = vpop.f32.mrb[0].mxu0
    %2862 = vdwg.mxu0
    %v2863 = vsel %vm576, %v2784, -inf
    %2864 = vmax.xlane.f32.xlu0 %v2863
    %v2865 = vpop.xlane.xlu0 %2864
    %v2866 = vsel %vm576, %v2860, -inf
    %2867 = vmax.xlane.f32.xlu0 %v2866
    %v2868 = vpop.xlane.xlu0 %2867
    %v2869 = vsub.f32 %v2784, %v2865
    %v2870 = vsub.f32 %v2860, %v2868
    %v2871 = vmul.f32 %v2869, 1.442695
    %v2872 = vpow.pop %v2871
    %v2873 = vmul.f32 %v2870, 1.442695
    %v2874 = vpow.pop %v2873
    %v2875 = vsel %vm576, %v2872, 0.0
    %2876 = vadd.xlane.f32.xlu0 %v2875
    %v2877 = vpop.xlane.xlu0 %2876
    %v2878 = vsel %vm576, %v2874, 0.0
    %2879 = vadd.xlane.f32.xlu0 %v2878
    %v2880 = vpop.xlane.xlu0 %2879
    %v2881 = vrcp.pop %v2877
    %v2882 = vrcp.pop %v2880
    %v2883 = vmul.f32 %v2872, %v2881
    %v2884 = vmul.f32 %v2874, %v2882
    %v2886 = vsel %vm576, %v2883, 0
    %2888 = vmatprep.subr.mxu0 0.0
    %2889 = vmatpush1.msra.mxu0 %v2623
    %2890 = vmatprep.subr.mxu0 0.0
    %2891 = vmatpush1.msra.mxu0 0.0
    %2892 = vmatprep.subr.mxu0 0.0
    %2893 = vmatpush1.msra.mxu0 0.0
    %2894 = vmatprep.subr.mxu0 0.0
    %2895 = vmatpush1.msra.mxu0 0.0
    %2896 = vmatprep.subr.mxu0 0.0
    %2897 = vmatpush1.msra.mxu0 0.0
    %2898 = vmatprep.subr.mxu0 0.0
    %2899 = vmatpush1.msra.mxu0 0.0
    %2900 = vmatprep.subr.mxu0 0.0
    %2901 = vmatpush1.msra.mxu0 0.0
    %2902 = vmatprep.subr.mxu0 0.0
    %2903 = vmatpush1.msra.mxu0 0.0
    %2904 = vmatprep.subr.mxu0 0.0
    %2905 = vmatpush1.msra.mxu0 0.0
    %2906 = vmatprep.subr.mxu0 0.0
    %2907 = vmatpush1.msra.mxu0 0.0
    %2908 = vmatprep.subr.mxu0 0.0
    %2909 = vmatpush1.msra.mxu0 0.0
    %2910 = vmatprep.subr.mxu0 0.0
    %2911 = vmatpush1.msra.mxu0 0.0
    %2912 = vmatprep.subr.mxu0 0.0
    %2913 = vmatpush1.msra.mxu0 0.0
    %2914 = vmatprep.subr.mxu0 0.0
    %2915 = vmatpush1.msra.mxu0 0.0
    %2916 = vmatprep.subr.mxu0 0.0
    %2917 = vmatpush1.msra.mxu0 0.0
    %2918 = vmatprep.subr.mxu0 0.0
    %2919 = vmatpush1.msra.mxu0 0.0
    %2920 = vmatprep.subr.mxu0 0.0
    %2921 = vmatpush1.msra.mxu0 0.0
    %2922 = vmatprep.subr.mxu0 0.0
    %2923 = vmatpush1.msra.mxu0 0.0
    %2924 = vmatprep.subr.mxu0 0.0
    %2925 = vmatpush1.msra.mxu0 0.0
    %2926 = vmatprep.subr.mxu0 0.0
    %2927 = vmatpush1.msra.mxu0 0.0
    %2928 = vmatprep.subr.mxu0 0.0
    %2929 = vmatpush1.msra.mxu0 0.0
    %2930 = vmatprep.subr.mxu0 0.0
    %2931 = vmatpush1.msra.mxu0 0.0
    %2932 = vmatprep.subr.mxu0 0.0
    %2933 = vmatpush1.msra.mxu0 0.0
    %2934 = vmatprep.subr.mxu0 0.0
    %2935 = vmatpush1.msra.mxu0 0.0
    %2936 = vmatprep.subr.mxu0 0.0
    %2937 = vmatpush1.msra.mxu0 0.0
    %2938 = vmatprep.subr.mxu0 0.0
    %2939 = vmatpush1.msra.mxu0 0.0
    %2940 = vmatprep.subr.mxu0 0.0
    %2941 = vmatpush1.msra.mxu0 0.0
    %2942 = vmatprep.subr.mxu0 0.0
    %2943 = vmatpush1.msra.mxu0 0.0
    %2944 = vmatprep.subr.mxu0 0.0
    %2945 = vmatpush1.msra.mxu0 0.0
    %2946 = vmatprep.subr.mxu0 0.0
    %2947 = vmatpush1.msra.mxu0 0.0
    %2948 = vmatprep.subr.mxu0 0.0
    %2949 = vmatpush1.msra.mxu0 0.0
    %2950 = vmatprep.subr.mxu0 0.0
    %2951 = vmatpush1.msra.mxu0 0.0
    %2952 = vmatprep.mubr.f32.mxu0 0.0
    %2953 = vmatmul.mubr.f32.gmra.mrb[0].mxu0 %v2886
    %v2954 = vpop.f32.mrb[0].mxu0
    %v2955 = vadd.f32 0.0, %v2954
    %v2956 = vpop.f32.mrb[0].mxu0
    %2957 = vdwg.mxu0
    %v2959 = vsel %vm576, %v2884, 0
    %2961 = vmatprep.subr.mxu0 0.0
    %2962 = vmatpush1.msra.mxu0 %v2628
    %2963 = vmatprep.subr.mxu0 0.0
    %2964 = vmatpush1.msra.mxu0 0.0
    %2965 = vmatprep.subr.mxu0 0.0
    %2966 = vmatpush1.msra.mxu0 0.0
    %2967 = vmatprep.subr.mxu0 0.0
    %2968 = vmatpush1.msra.mxu0 0.0
    %2969 = vmatprep.subr.mxu0 0.0
    %2970 = vmatpush1.msra.mxu0 0.0
    %2971 = vmatprep.subr.mxu0 0.0
    %2972 = vmatpush1.msra.mxu0 0.0
    %2973 = vmatprep.subr.mxu0 0.0
    %2974 = vmatpush1.msra.mxu0 0.0
    %2975 = vmatprep.subr.mxu0 0.0
    %2976 = vmatpush1.msra.mxu0 0.0
    %2977 = vmatprep.subr.mxu0 0.0
    %2978 = vmatpush1.msra.mxu0 0.0
    %2979 = vmatprep.subr.mxu0 0.0
    %2980 = vmatpush1.msra.mxu0 0.0
    %2981 = vmatprep.subr.mxu0 0.0
    %2982 = vmatpush1.msra.mxu0 0.0
    %2983 = vmatprep.subr.mxu0 0.0
    %2984 = vmatpush1.msra.mxu0 0.0
    %2985 = vmatprep.subr.mxu0 0.0
    %2986 = vmatpush1.msra.mxu0 0.0
    %2987 = vmatprep.subr.mxu0 0.0
    %2988 = vmatpush1.msra.mxu0 0.0
    %2989 = vmatprep.subr.mxu0 0.0
    %2990 = vmatpush1.msra.mxu0 0.0
    %2991 = vmatprep.subr.mxu0 0.0
    %2992 = vmatpush1.msra.mxu0 0.0
    %2993 = vmatprep.subr.mxu0 0.0
    %2994 = vmatpush1.msra.mxu0 0.0
    %2995 = vmatprep.subr.mxu0 0.0
    %2996 = vmatpush1.msra.mxu0 0.0
    %2997 = vmatprep.subr.mxu0 0.0
    %2998 = vmatpush1.msra.mxu0 0.0
    %2999 = vmatprep.subr.mxu0 0.0
    %3000 = vmatpush1.msra.mxu0 0.0
    %3001 = vmatprep.subr.mxu0 0.0
    %3002 = vmatpush1.msra.mxu0 0.0
    %3003 = vmatprep.subr.mxu0 0.0
    %3004 = vmatpush1.msra.mxu0 0.0
    %3005 = vmatprep.subr.mxu0 0.0
    %3006 = vmatpush1.msra.mxu0 0.0
    %3007 = vmatprep.subr.mxu0 0.0
    %3008 = vmatpush1.msra.mxu0 0.0
    %3009 = vmatprep.subr.mxu0 0.0
    %3010 = vmatpush1.msra.mxu0 0.0
    %3011 = vmatprep.subr.mxu0 0.0
    %3012 = vmatpush1.msra.mxu0 0.0
    %3013 = vmatprep.subr.mxu0 0.0
    %3014 = vmatpush1.msra.mxu0 0.0
    %3015 = vmatprep.subr.mxu0 0.0
    %3016 = vmatpush1.msra.mxu0 0.0
    %3017 = vmatprep.subr.mxu0 0.0
    %3018 = vmatpush1.msra.mxu0 0.0
    %3019 = vmatprep.subr.mxu0 0.0
    %3020 = vmatpush1.msra.mxu0 0.0
    %3021 = vmatprep.subr.mxu0 0.0
    %3022 = vmatpush1.msra.mxu0 0.0
    %3023 = vmatprep.subr.mxu0 0.0
    %3024 = vmatpush1.msra.mxu0 0.0
    %3025 = vmatprep.mubr.f32.mxu0 0.0
    %3026 = vmatmul.mubr.f32.gmra.mrb[0].mxu0 %v2959
    %v3027 = vpop.f32.mrb[0].mxu0
    %v3028 = vadd.f32 0.0, %v3027
    %v3029 = vpop.f32.mrb[0].mxu0
    %3030 = vdwg.mxu0
    %3031 = vrot.lane.b32.xlu0 %v2669, 120
    %v3032 = vpop.permute.xlu0 %3031
    %3033 = vrot.lane.b32.xlu0 %v2709, 120
    %v3034 = vpop.permute.xlu0 %3033
    %v3035 = vsel %vm576, %v3032, 0
    %v3037 = vsel %vm576, %v3034, 0
    %3039 = vmatprep.subr.mxu0 0.0
    %3040 = vmatpush1.xpose.msra.mxu0 %v3037
    %3041 = vmatprep.subr.mxu0 0.0
    %3042 = vmatpush1.xpose.msra.mxu0 0.0
    %3043 = vmatprep.subr.mxu0 0.0
    %3044 = vmatpush1.xpose.msra.mxu0 0.0
    %3045 = vmatprep.subr.mxu0 0.0
    %3046 = vmatpush1.xpose.msra.mxu0 0.0
    %3047 = vmatprep.subr.mxu0 0.0
    %3048 = vmatpush1.xpose.msra.mxu0 0.0
    %3049 = vmatprep.subr.mxu0 0.0
    %3050 = vmatpush1.xpose.msra.mxu0 0.0
    %3051 = vmatprep.subr.mxu0 0.0
    %3052 = vmatpush1.xpose.msra.mxu0 0.0
    %3053 = vmatprep.subr.mxu0 0.0
    %3054 = vmatpush1.xpose.msra.mxu0 0.0
    %3055 = vmatprep.subr.mxu0 0.0
    %3056 = vmatpush1.xpose.msra.mxu0 0.0
    %3057 = vmatprep.subr.mxu0 0.0
    %3058 = vmatpush1.xpose.msra.mxu0 0.0
    %3059 = vmatprep.subr.mxu0 0.0
    %3060 = vmatpush1.xpose.msra.mxu0 0.0
    %3061 = vmatprep.subr.mxu0 0.0
    %3062 = vmatpush1.xpose.msra.mxu0 0.0
    %3063 = vmatprep.subr.mxu0 0.0
    %3064 = vmatpush1.xpose.msra.mxu0 0.0
    %3065 = vmatprep.subr.mxu0 0.0
    %3066 = vmatpush1.xpose.msra.mxu0 0.0
    %3067 = vmatprep.subr.mxu0 0.0
    %3068 = vmatpush1.xpose.msra.mxu0 0.0
    %3069 = vmatprep.subr.mxu0 0.0
    %3070 = vmatpush1.xpose.msra.mxu0 0.0
    %3071 = vmatprep.subr.mxu0 0.0
    %3072 = vmatpush1.xpose.msra.mxu0 0.0
    %3073 = vmatprep.subr.mxu0 0.0
    %3074 = vmatpush1.xpose.msra.mxu0 0.0
    %3075 = vmatprep.subr.mxu0 0.0
    %3076 = vmatpush1.xpose.msra.mxu0 0.0
    %3077 = vmatprep.subr.mxu0 0.0
    %3078 = vmatpush1.xpose.msra.mxu0 0.0
    %3079 = vmatprep.subr.mxu0 0.0
    %3080 = vmatpush1.xpose.msra.mxu0 0.0
    %3081 = vmatprep.subr.mxu0 0.0
    %3082 = vmatpush1.xpose.msra.mxu0 0.0
    %3083 = vmatprep.subr.mxu0 0.0
    %3084 = vmatpush1.xpose.msra.mxu0 0.0
    %3085 = vmatprep.subr.mxu0 0.0
    %3086 = vmatpush1.xpose.msra.mxu0 0.0
    %3087 = vmatprep.subr.mxu0 0.0
    %3088 = vmatpush1.xpose.msra.mxu0 0.0
    %3089 = vmatprep.subr.mxu0 0.0
    %3090 = vmatpush1.xpose.msra.mxu0 0.0
    %3091 = vmatprep.subr.mxu0 0.0
    %3092 = vmatpush1.xpose.msra.mxu0 0.0
    %3093 = vmatprep.subr.mxu0 0.0
    %3094 = vmatpush1.xpose.msra.mxu0 0.0
    %3095 = vmatprep.subr.mxu0 0.0
    %3096 = vmatpush1.xpose.msra.mxu0 0.0
    %3097 = vmatprep.subr.mxu0 0.0
    %3098 = vmatpush1.xpose.msra.mxu0 0.0
    %3099 = vmatprep.subr.mxu0 0.0
    %3100 = vmatpush1.xpose.msra.mxu0 0.0
    %3101 = vmatprep.subr.mxu0 0.0
    %3102 = vmatpush1.xpose.msra.mxu0 0.0
    %3103 = vmatprep.mubr.f32.mxu0 0.0
    %3104 = vmatmul.mubr.f32.gmra.mrb[0].mxu0 %v3035
    %v3105 = vpop.f32.mrb[0].mxu0
    %v3106 = vadd.f32 %v569, %v3105
    %v3107 = vpop.f32.mrb[0].mxu0
    %3108 = vdwg.mxu0
    %3109 = vrot.lane.b32.xlu0 %v2670, 120
    %v3110 = vpop.permute.xlu0 %3109
    %3111 = vrot.lane.b32.xlu0 %v2710, 120
    %v3112 = vpop.permute.xlu0 %3111
    %v3113 = vsel %vm576, %v3110, 0
    %v3115 = vsel %vm576, %v3112, 0
    %3117 = vmatprep.subr.mxu0 0.0
    %3118 = vmatpush1.xpose.msra.mxu0 %v3115
    %3119 = vmatprep.subr.mxu0 0.0
    %3120 = vmatpush1.xpose.msra.mxu0 0.0
    %3121 = vmatprep.subr.mxu0 0.0
    %3122 = vmatpush1.xpose.msra.mxu0 0.0
    %3123 = vmatprep.subr.mxu0 0.0
    %3124 = vmatpush1.xpose.msra.mxu0 0.0
    %3125 = vmatprep.subr.mxu0 0.0
    %3126 = vmatpush1.xpose.msra.mxu0 0.0
    %3127 = vmatprep.subr.mxu0 0.0
    %3128 = vmatpush1.xpose.msra.mxu0 0.0
    %3129 = vmatprep.subr.mxu0 0.0
    %3130 = vmatpush1.xpose.msra.mxu0 0.0
    %3131 = vmatprep.subr.mxu0 0.0
    %3132 = vmatpush1.xpose.msra.mxu0 0.0
    %3133 = vmatprep.subr.mxu0 0.0
    %3134 = vmatpush1.xpose.msra.mxu0 0.0
    %3135 = vmatprep.subr.mxu0 0.0
    %3136 = vmatpush1.xpose.msra.mxu0 0.0
    %3137 = vmatprep.subr.mxu0 0.0
    %3138 = vmatpush1.xpose.msra.mxu0 0.0
    %3139 = vmatprep.subr.mxu0 0.0
    %3140 = vmatpush1.xpose.msra.mxu0 0.0
    %3141 = vmatprep.subr.mxu0 0.0
    %3142 = vmatpush1.xpose.msra.mxu0 0.0
    %3143 = vmatprep.subr.mxu0 0.0
    %3144 = vmatpush1.xpose.msra.mxu0 0.0
    %3145 = vmatprep.subr.mxu0 0.0
    %3146 = vmatpush1.xpose.msra.mxu0 0.0
    %3147 = vmatprep.subr.mxu0 0.0
    %3148 = vmatpush1.xpose.msra.mxu0 0.0
    %3149 = vmatprep.subr.mxu0 0.0
    %3150 = vmatpush1.xpose.msra.mxu0 0.0
    %3151 = vmatprep.subr.mxu0 0.0
    %3152 = vmatpush1.xpose.msra.mxu0 0.0
    %3153 = vmatprep.subr.mxu0 0.0
    %3154 = vmatpush1.xpose.msra.mxu0 0.0
    %3155 = vmatprep.subr.mxu0 0.0
    %3156 = vmatpush1.xpose.msra.mxu0 0.0
    %3157 = vmatprep.subr.mxu0 0.0
    %3158 = vmatpush1.xpose.msra.mxu0 0.0
    %3159 = vmatprep.subr.mxu0 0.0
    %3160 = vmatpush1.xpose.msra.mxu0 0.0
    %3161 = vmatprep.subr.mxu0 0.0
    %3162 = vmatpush1.xpose.msra.mxu0 0.0
    %3163 = vmatprep.subr.mxu0 0.0
    %3164 = vmatpush1.xpose.msra.mxu0 0.0
    %3165 = vmatprep.subr.mxu0 0.0
    %3166 = vmatpush1.xpose.msra.mxu0 0.0
    %3167 = vmatprep.subr.mxu0 0.0
    %3168 = vmatpush1.xpose.msra.mxu0 0.0
    %3169 = vmatprep.subr.mxu0 0.0
    %3170 = vmatpush1.xpose.msra.mxu0 0.0
    %3171 = vmatprep.subr.mxu0 0.0
    %3172 = vmatpush1.xpose.msra.mxu0 0.0
    %3173 = vmatprep.subr.mxu0 0.0
    %3174 = vmatpush1.xpose.msra.mxu0 0.0
    %3175 = vmatprep.subr.mxu0 0.0
    %3176 = vmatpush1.xpose.msra.mxu0 0.0
    %3177 = vmatprep.subr.mxu0 0.0
    %3178 = vmatpush1.xpose.msra.mxu0 0.0
    %3179 = vmatprep.subr.mxu0 0.0
    %3180 = vmatpush1.xpose.msra.mxu0 0.0
    %3181 = vmatprep.mubr.f32.mxu0 0.0
    %3182 = vmatmul.mubr.f32.gmra.mrb[0].mxu0 %v3113
    %v3183 = vpop.f32.mrb[0].mxu0
    %v3184 = vadd.f32 %v573, %v3183
    %v3185 = vpop.f32.mrb[0].mxu0
    %3186 = vdwg.mxu0
    %v3187 = vsel %vm576, %v3106, -inf
    %3188 = vmax.xlane.f32.xlu0 %v3187
    %v3189 = vpop.xlane.xlu0 %3188
    %v3190 = vsel %vm576, %v3184, -inf
    %3191 = vmax.xlane.f32.xlu0 %v3190
    %v3192 = vpop.xlane.xlu0 %3191
    %v3193 = vsub.f32 %v3106, %v3189
    %v3194 = vsub.f32 %v3184, %v3192
    %v3195 = vmul.f32 %v3193, 1.442695
    %v3196 = vpow.pop %v3195
    %v3197 = vmul.f32 %v3194, 1.442695
    %v3198 = vpow.pop %v3197
    %v3199 = vsel %vm576, %v3196, 0.0
    %3200 = vadd.xlane.f32.xlu0 %v3199
    %v3201 = vpop.xlane.xlu0 %3200
    %v3202 = vsel %vm576, %v3198, 0.0
    %3203 = vadd.xlane.f32.xlu0 %v3202
    %v3204 = vpop.xlane.xlu0 %3203
    %v3205 = vrcp.pop %v3201
    %v3206 = vrcp.pop %v3204
    %v3207 = vmul.f32 %v3196, %v3205
    %v3208 = vmul.f32 %v3198, %v3206
    %3210 = vrot.lane.b32.xlu0 %v2623, 120
    %v3211 = vpop.permute.xlu0 %3210
    %v3214 = vsel %vm576, %v3207, 0
    %3216 = vmatprep.subr.mxu0 0.0
    %3217 = vmatpush1.msra.mxu0 %v3211
    %3218 = vmatprep.subr.mxu0 0.0
    %3219 = vmatpush1.msra.mxu0 0.0
    %3220 = vmatprep.subr.mxu0 0.0
    %3221 = vmatpush1.msra.mxu0 0.0
    %3222 = vmatprep.subr.mxu0 0.0
    %3223 = vmatpush1.msra.mxu0 0.0
    %3224 = vmatprep.subr.mxu0 0.0
    %3225 = vmatpush1.msra.mxu0 0.0
    %3226 = vmatprep.subr.mxu0 0.0
    %3227 = vmatpush1.msra.mxu0 0.0
    %3228 = vmatprep.subr.mxu0 0.0
    %3229 = vmatpush1.msra.mxu0 0.0
    %3230 = vmatprep.subr.mxu0 0.0
    %3231 = vmatpush1.msra.mxu0 0.0
    %3232 = vmatprep.subr.mxu0 0.0
    %3233 = vmatpush1.msra.mxu0 0.0
    %3234 = vmatprep.subr.mxu0 0.0
    %3235 = vmatpush1.msra.mxu0 0.0
    %3236 = vmatprep.subr.mxu0 0.0
    %3237 = vmatpush1.msra.mxu0 0.0
    %3238 = vmatprep.subr.mxu0 0.0
    %3239 = vmatpush1.msra.mxu0 0.0
    %3240 = vmatprep.subr.mxu0 0.0
    %3241 = vmatpush1.msra.mxu0 0.0
    %3242 = vmatprep.subr.mxu0 0.0
    %3243 = vmatpush1.msra.mxu0 0.0
    %3244 = vmatprep.subr.mxu0 0.0
    %3245 = vmatpush1.msra.mxu0 0.0
    %3246 = vmatprep.subr.mxu0 0.0
    %3247 = vmatpush1.msra.mxu0 0.0
    %3248 = vmatprep.subr.mxu0 0.0
    %3249 = vmatpush1.msra.mxu0 0.0
    %3250 = vmatprep.subr.mxu0 0.0
    %3251 = vmatpush1.msra.mxu0 0.0
    %3252 = vmatprep.subr.mxu0 0.0
    %3253 = vmatpush1.msra.mxu0 0.0
    %3254 = vmatprep.subr.mxu0 0.0
    %3255 = vmatpush1.msra.mxu0 0.0
    %3256 = vmatprep.subr.mxu0 0.0
    %3257 = vmatpush1.msra.mxu0 0.0
    %3258 = vmatprep.subr.mxu0 0.0
    %3259 = vmatpush1.msra.mxu0 0.0
    %3260 = vmatprep.subr.mxu0 0.0
    %3261 = vmatpush1.msra.mxu0 0.0
    %3262 = vmatprep.subr.mxu0 0.0
    %3263 = vmatpush1.msra.mxu0 0.0
    %3264 = vmatprep.subr.mxu0 0.0
    %3265 = vmatpush1.msra.mxu0 0.0
    %3266 = vmatprep.subr.mxu0 0.0
    %3267 = vmatpush1.msra.mxu0 0.0
    %3268 = vmatprep.subr.mxu0 0.0
    %3269 = vmatpush1.msra.mxu0 0.0
    %3270 = vmatprep.subr.mxu0 0.0
    %3271 = vmatpush1.msra.mxu0 0.0
    %3272 = vmatprep.subr.mxu0 0.0
    %3273 = vmatpush1.msra.mxu0 0.0
    %3274 = vmatprep.subr.mxu0 0.0
    %3275 = vmatpush1.msra.mxu0 0.0
    %3276 = vmatprep.subr.mxu0 0.0
    %3277 = vmatpush1.msra.mxu0 0.0
    %3278 = vmatprep.subr.mxu0 0.0
    %3279 = vmatpush1.msra.mxu0 0.0
    %3280 = vmatprep.mubr.f32.mxu0 0.0
    %3281 = vmatmul.mubr.f32.gmra.mrb[0].mxu0 %v3214
    %v3282 = vpop.f32.mrb[0].mxu0
    %v3283 = vadd.f32 0.0, %v3282
    %v3284 = vpop.f32.mrb[0].mxu0
    %3285 = vdwg.mxu0
    %3287 = vrot.lane.b32.xlu0 %v2628, 120
    %v3288 = vpop.permute.xlu0 %3287
    %v3291 = vsel %vm576, %v3208, 0
    %3293 = vmatprep.subr.mxu0 0.0
    %3294 = vmatpush1.msra.mxu0 %v3288
    %3295 = vmatprep.subr.mxu0 0.0
    %3296 = vmatpush1.msra.mxu0 0.0
    %3297 = vmatprep.subr.mxu0 0.0
    %3298 = vmatpush1.msra.mxu0 0.0
    %3299 = vmatprep.subr.mxu0 0.0
    %3300 = vmatpush1.msra.mxu0 0.0
    %3301 = vmatprep.subr.mxu0 0.0
    %3302 = vmatpush1.msra.mxu0 0.0
    %3303 = vmatprep.subr.mxu0 0.0
    %3304 = vmatpush1.msra.mxu0 0.0
    %3305 = vmatprep.subr.mxu0 0.0
    %3306 = vmatpush1.msra.mxu0 0.0
    %3307 = vmatprep.subr.mxu0 0.0
    %3308 = vmatpush1.msra.mxu0 0.0
    %3309 = vmatprep.subr.mxu0 0.0
    %3310 = vmatpush1.msra.mxu0 0.0
    %3311 = vmatprep.subr.mxu0 0.0
    %3312 = vmatpush1.msra.mxu0 0.0
    %3313 = vmatprep.subr.mxu0 0.0
    %3314 = vmatpush1.msra.mxu0 0.0
    %3315 = vmatprep.subr.mxu0 0.0
    %3316 = vmatpush1.msra.mxu0 0.0
    %3317 = vmatprep.subr.mxu0 0.0
    %3318 = vmatpush1.msra.mxu0 0.0
    %3319 = vmatprep.subr.mxu0 0.0
    %3320 = vmatpush1.msra.mxu0 0.0
    %3321 = vmatprep.subr.mxu0 0.0
    %3322 = vmatpush1.msra.mxu0 0.0
    %3323 = vmatprep.subr.mxu0 0.0
    %3324 = vmatpush1.msra.mxu0 0.0
    %3325 = vmatprep.subr.mxu0 0.0
    %3326 = vmatpush1.msra.mxu0 0.0
    %3327 = vmatprep.subr.mxu0 0.0
    %3328 = vmatpush1.msra.mxu0 0.0
    %3329 = vmatprep.subr.mxu0 0.0
    %3330 = vmatpush1.msra.mxu0 0.0
    %3331 = vmatprep.subr.mxu0 0.0
    %3332 = vmatpush1.msra.mxu0 0.0
    %3333 = vmatprep.subr.mxu0 0.0
    %3334 = vmatpush1.msra.mxu0 0.0
    %3335 = vmatprep.subr.mxu0 0.0
    %3336 = vmatpush1.msra.mxu0 0.0
    %3337 = vmatprep.subr.mxu0 0.0
    %3338 = vmatpush1.msra.mxu0 0.0
    %3339 = vmatprep.subr.mxu0 0.0
    %3340 = vmatpush1.msra.mxu0 0.0
    %3341 = vmatprep.subr.mxu0 0.0
    %3342 = vmatpush1.msra.mxu0 0.0
    %3343 = vmatprep.subr.mxu0 0.0
    %3344 = vmatpush1.msra.mxu0 0.0
    %3345 = vmatprep.subr.mxu0 0.0
    %3346 = vmatpush1.msra.mxu0 0.0
    %3347 = vmatprep.subr.mxu0 0.0
    %3348 = vmatpush1.msra.mxu0 0.0
    %3349 = vmatprep.subr.mxu0 0.0
    %3350 = vmatpush1.msra.mxu0 0.0
    %3351 = vmatprep.subr.mxu0 0.0
    %3352 = vmatpush1.msra.mxu0 0.0
    %3353 = vmatprep.subr.mxu0 0.0
    %3354 = vmatpush1.msra.mxu0 0.0
    %3355 = vmatprep.subr.mxu0 0.0
    %3356 = vmatpush1.msra.mxu0 0.0
    %3357 = vmatprep.mubr.f32.mxu0 0.0
    %3358 = vmatmul.mubr.f32.gmra.mrb[0].mxu0 %v3291
    %v3359 = vpop.f32.mrb[0].mxu0
    %v3360 = vadd.f32 0.0, %v3359
    %v3361 = vpop.f32.mrb[0].mxu0
    %3362 = vdwg.mxu0
    %3363 = vrot.lane.b32.xlu0 %v2669, 112
    %v3364 = vpop.permute.xlu0 %3363
    %3365 = vrot.lane.b32.xlu0 %v2709, 112
    %v3366 = vpop.permute.xlu0 %3365
    %v3367 = vsel %vm576, %v3364, 0
    %v3369 = vsel %vm576, %v3366, 0
    %3371 = vmatprep.subr.mxu0 0.0
    %3372 = vmatpush1.xpose.msra.mxu0 %v3369
    %3373 = vmatprep.subr.mxu0 0.0
    %3374 = vmatpush1.xpose.msra.mxu0 0.0
    %3375 = vmatprep.subr.mxu0 0.0
    %3376 = vmatpush1.xpose.msra.mxu0 0.0
    %3377 = vmatprep.subr.mxu0 0.0
    %3378 = vmatpush1.xpose.msra.mxu0 0.0
    %3379 = vmatprep.subr.mxu0 0.0
    %3380 = vmatpush1.xpose.msra.mxu0 0.0
    %3381 = vmatprep.subr.mxu0 0.0
    %3382 = vmatpush1.xpose.msra.mxu0 0.0
    %3383 = vmatprep.subr.mxu0 0.0
    %3384 = vmatpush1.xpose.msra.mxu0 0.0
    %3385 = vmatprep.subr.mxu0 0.0
    %3386 = vmatpush1.xpose.msra.mxu0 0.0
    %3387 = vmatprep.subr.mxu0 0.0
    %3388 = vmatpush1.xpose.msra.mxu0 0.0
    %3389 = vmatprep.subr.mxu0 0.0
    %3390 = vmatpush1.xpose.msra.mxu0 0.0
    %3391 = vmatprep.subr.mxu0 0.0
    %3392 = vmatpush1.xpose.msra.mxu0 0.0
    %3393 = vmatprep.subr.mxu0 0.0
    %3394 = vmatpush1.xpose.msra.mxu0 0.0
    %3395 = vmatprep.subr.mxu0 0.0
    %3396 = vmatpush1.xpose.msra.mxu0 0.0
    %3397 = vmatprep.subr.mxu0 0.0
    %3398 = vmatpush1.xpose.msra.mxu0 0.0
    %3399 = vmatprep.subr.mxu0 0.0
    %3400 = vmatpush1.xpose.msra.mxu0 0.0
    %3401 = vmatprep.subr.mxu0 0.0
    %3402 = vmatpush1.xpose.msra.mxu0 0.0
    %3403 = vmatprep.subr.mxu0 0.0
    %3404 = vmatpush1.xpose.msra.mxu0 0.0
    %3405 = vmatprep.subr.mxu0 0.0
    %3406 = vmatpush1.xpose.msra.mxu0 0.0
    %3407 = vmatprep.subr.mxu0 0.0
    %3408 = vmatpush1.xpose.msra.mxu0 0.0
    %3409 = vmatprep.subr.mxu0 0.0
    %3410 = vmatpush1.xpose.msra.mxu0 0.0
    %3411 = vmatprep.subr.mxu0 0.0
    %3412 = vmatpush1.xpose.msra.mxu0 0.0
    %3413 = vmatprep.subr.mxu0 0.0
    %3414 = vmatpush1.xpose.msra.mxu0 0.0
    %3415 = vmatprep.subr.mxu0 0.0
    %3416 = vmatpush1.xpose.msra.mxu0 0.0
    %3417 = vmatprep.subr.mxu0 0.0
    %3418 = vmatpush1.xpose.msra.mxu0 0.0
    %3419 = vmatprep.subr.mxu0 0.0
    %3420 = vmatpush1.xpose.msra.mxu0 0.0
    %3421 = vmatprep.subr.mxu0 0.0
    %3422 = vmatpush1.xpose.msra.mxu0 0.0
    %3423 = vmatprep.subr.mxu0 0.0
    %3424 = vmatpush1.xpose.msra.mxu0 0.0
    %3425 = vmatprep.subr.mxu0 0.0
    %3426 = vmatpush1.xpose.msra.mxu0 0.0
    %3427 = vmatprep.subr.mxu0 0.0
    %3428 = vmatpush1.xpose.msra.mxu0 0.0
    %3429 = vmatprep.subr.mxu0 0.0
    %3430 = vmatpush1.xpose.msra.mxu0 0.0
    %3431 = vmatprep.subr.mxu0 0.0
    %3432 = vmatpush1.xpose.msra.mxu0 0.0
    %3433 = vmatprep.subr.mxu0 0.0
    %3434 = vmatpush1.xpose.msra.mxu0 0.0
    %3435 = vmatprep.mubr.f32.mxu0 0.0
    %3436 = vmatmul.mubr.f32.gmra.mrb[0].mxu0 %v3367
    %v3437 = vpop.f32.mrb[0].mxu0
    %v3438 = vadd.f32 %v569, %v3437
    %v3439 = vpop.f32.mrb[0].mxu0
    %3440 = vdwg.mxu0
    %3441 = vrot.lane.b32.xlu0 %v2670, 112
    %v3442 = vpop.permute.xlu0 %3441
    %3443 = vrot.lane.b32.xlu0 %v2710, 112
    %v3444 = vpop.permute.xlu0 %3443
    %v3445 = vsel %vm576, %v3442, 0
    %v3447 = vsel %vm576, %v3444, 0
    %3449 = vmatprep.subr.mxu0 0.0
    %3450 = vmatpush1.xpose.msra.mxu0 %v3447
    %3451 = vmatprep.subr.mxu0 0.0
    %3452 = vmatpush1.xpose.msra.mxu0 0.0
    %3453 = vmatprep.subr.mxu0 0.0
    %3454 = vmatpush1.xpose.msra.mxu0 0.0
    %3455 = vmatprep.subr.mxu0 0.0
    %3456 = vmatpush1.xpose.msra.mxu0 0.0
    %3457 = vmatprep.subr.mxu0 0.0
    %3458 = vmatpush1.xpose.msra.mxu0 0.0
    %3459 = vmatprep.subr.mxu0 0.0
    %3460 = vmatpush1.xpose.msra.mxu0 0.0
    %3461 = vmatprep.subr.mxu0 0.0
    %3462 = vmatpush1.xpose.msra.mxu0 0.0
    %3463 = vmatprep.subr.mxu0 0.0
    %3464 = vmatpush1.xpose.msra.mxu0 0.0
    %3465 = vmatprep.subr.mxu0 0.0
    %3466 = vmatpush1.xpose.msra.mxu0 0.0
    %3467 = vmatprep.subr.mxu0 0.0
    %3468 = vmatpush1.xpose.msra.mxu0 0.0
    %3469 = vmatprep.subr.mxu0 0.0
    %3470 = vmatpush1.xpose.msra.mxu0 0.0
    %3471 = vmatprep.subr.mxu0 0.0
    %3472 = vmatpush1.xpose.msra.mxu0 0.0
    %3473 = vmatprep.subr.mxu0 0.0
    %3474 = vmatpush1.xpose.msra.mxu0 0.0
    %3475 = vmatprep.subr.mxu0 0.0
    %3476 = vmatpush1.xpose.msra.mxu0 0.0
    %3477 = vmatprep.subr.mxu0 0.0
    %3478 = vmatpush1.xpose.msra.mxu0 0.0
    %3479 = vmatprep.subr.mxu0 0.0
    %3480 = vmatpush1.xpose.msra.mxu0 0.0
    %3481 = vmatprep.subr.mxu0 0.0
    %3482 = vmatpush1.xpose.msra.mxu0 0.0
    %3483 = vmatprep.subr.mxu0 0.0
    %3484 = vmatpush1.xpose.msra.mxu0 0.0
    %3485 = vmatprep.subr.mxu0 0.0
    %3486 = vmatpush1.xpose.msra.mxu0 0.0
    %3487 = vmatprep.subr.mxu0 0.0
    %3488 = vmatpush1.xpose.msra.mxu0 0.0
    %3489 = vmatprep.subr.mxu0 0.0
    %3490 = vmatpush1.xpose.msra.mxu0 0.0
    %3491 = vmatprep.subr.mxu0 0.0
    %3492 = vmatpush1.xpose.msra.mxu0 0.0
    %3493 = vmatprep.subr.mxu0 0.0
    %3494 = vmatpush1.xpose.msra.mxu0 0.0
    %3495 = vmatprep.subr.mxu0 0.0
    %3496 = vmatpush1.xpose.msra.mxu0 0.0
    %3497 = vmatprep.subr.mxu0 0.0
    %3498 = vmatpush1.xpose.msra.mxu0 0.0
    %3499 = vmatprep.subr.mxu0 0.0
    %3500 = vmatpush1.xpose.msra.mxu0 0.0
    %3501 = vmatprep.subr.mxu0 0.0
    %3502 = vmatpush1.xpose.msra.mxu0 0.0
    %3503 = vmatprep.subr.mxu0 0.0
    %3504 = vmatpush1.xpose.msra.mxu0 0.0
    %3505 = vmatprep.subr.mxu0 0.0
    %3506 = vmatpush1.xpose.msra.mxu0 0.0
    %3507 = vmatprep.subr.mxu0 0.0
    %3508 = vmatpush1.xpose.msra.mxu0 0.0
    %3509 = vmatprep.subr.mxu0 0.0
    %3510 = vmatpush1.xpose.msra.mxu0 0.0
    %3511 = vmatprep.subr.mxu0 0.0
    %3512 = vmatpush1.xpose.msra.mxu0 0.0
    %3513 = vmatprep.mubr.f32.mxu0 0.0
    %3514 = vmatmul.mubr.f32.gmra.mrb[0].mxu0 %v3445
    %v3515 = vpop.f32.mrb[0].mxu0
    %v3516 = vadd.f32 %v573, %v3515
    %v3517 = vpop.f32.mrb[0].mxu0
    %3518 = vdwg.mxu0
    %v3519 = vsel %vm576, %v3438, -inf
    %3520 = vmax.xlane.f32.xlu0 %v3519
    %v3521 = vpop.xlane.xlu0 %3520
    %v3522 = vsel %vm576, %v3516, -inf
    %3523 = vmax.xlane.f32.xlu0 %v3522
    %v3524 = vpop.xlane.xlu0 %3523
    %v3525 = vsub.f32 %v3438, %v3521
    %v3526 = vsub.f32 %v3516, %v3524
    %v3527 = vmul.f32 %v3525, 1.442695
    %v3528 = vpow.pop %v3527
    %v3529 = vmul.f32 %v3526, 1.442695
    %v3530 = vpow.pop %v3529
    %v3531 = vsel %vm576, %v3528, 0.0
    %3532 = vadd.xlane.f32.xlu0 %v3531
    %v3533 = vpop.xlane.xlu0 %3532
    %v3534 = vsel %vm576, %v3530, 0.0
    %3535 = vadd.xlane.f32.xlu0 %v3534
    %v3536 = vpop.xlane.xlu0 %3535
    %v3537 = vrcp.pop %v3533
    %v3538 = vrcp.pop %v3536
    %v3539 = vmul.f32 %v3528, %v3537
    %v3540 = vmul.f32 %v3530, %v3538
    %3541 = vrot.lane.b32.xlu0 %v2623, 112
    %v3542 = vpop.permute.xlu0 %3541
    %v3545 = vsel %vm576, %v3539, 0
    %3547 = vmatprep.subr.mxu0 0.0
    %3548 = vmatpush1.msra.mxu0 %v3542
    %3549 = vmatprep.subr.mxu0 0.0
    %3550 = vmatpush1.msra.mxu0 0.0
    %3551 = vmatprep.subr.mxu0 0.0
    %3552 = vmatpush1.msra.mxu0 0.0
    %3553 = vmatprep.subr.mxu0 0.0
    %3554 = vmatpush1.msra.mxu0 0.0
    %3555 = vmatprep.subr.mxu0 0.0
    %3556 = vmatpush1.msra.mxu0 0.0
    %3557 = vmatprep.subr.mxu0 0.0
    %3558 = vmatpush1.msra.mxu0 0.0
    %3559 = vmatprep.subr.mxu0 0.0
    %3560 = vmatpush1.msra.mxu0 0.0
    %3561 = vmatprep.subr.mxu0 0.0
    %3562 = vmatpush1.msra.mxu0 0.0
    %3563 = vmatprep.subr.mxu0 0.0
    %3564 = vmatpush1.msra.mxu0 0.0
    %3565 = vmatprep.subr.mxu0 0.0
    %3566 = vmatpush1.msra.mxu0 0.0
    %3567 = vmatprep.subr.mxu0 0.0
    %3568 = vmatpush1.msra.mxu0 0.0
    %3569 = vmatprep.subr.mxu0 0.0
    %3570 = vmatpush1.msra.mxu0 0.0
    %3571 = vmatprep.subr.mxu0 0.0
    %3572 = vmatpush1.msra.mxu0 0.0
    %3573 = vmatprep.subr.mxu0 0.0
    %3574 = vmatpush1.msra.mxu0 0.0
    %3575 = vmatprep.subr.mxu0 0.0
    %3576 = vmatpush1.msra.mxu0 0.0
    %3577 = vmatprep.subr.mxu0 0.0
    %3578 = vmatpush1.msra.mxu0 0.0
    %3579 = vmatprep.subr.mxu0 0.0
    %3580 = vmatpush1.msra.mxu0 0.0
    %3581 = vmatprep.subr.mxu0 0.0
    %3582 = vmatpush1.msra.mxu0 0.0
    %3583 = vmatprep.subr.mxu0 0.0
    %3584 = vmatpush1.msra.mxu0 0.0
    %3585 = vmatprep.subr.mxu0 0.0
    %3586 = vmatpush1.msra.mxu0 0.0
    %3587 = vmatprep.subr.mxu0 0.0
    %3588 = vmatpush1.msra.mxu0 0.0
    %3589 = vmatprep.subr.mxu0 0.0
    %3590 = vmatpush1.msra.mxu0 0.0
    %3591 = vmatprep.subr.mxu0 0.0
    %3592 = vmatpush1.msra.mxu0 0.0
    %3593 = vmatprep.subr.mxu0 0.0
    %3594 = vmatpush1.msra.mxu0 0.0
    %3595 = vmatprep.subr.mxu0 0.0
    %3596 = vmatpush1.msra.mxu0 0.0
    %3597 = vmatprep.subr.mxu0 0.0
    %3598 = vmatpush1.msra.mxu0 0.0
    %3599 = vmatprep.subr.mxu0 0.0
    %3600 = vmatpush1.msra.mxu0 0.0
    %3601 = vmatprep.subr.mxu0 0.0
    %3602 = vmatpush1.msra.mxu0 0.0
    %3603 = vmatprep.subr.mxu0 0.0
    %3604 = vmatpush1.msra.mxu0 0.0
    %3605 = vmatprep.subr.mxu0 0.0
    %3606 = vmatpush1.msra.mxu0 0.0
    %3607 = vmatprep.subr.mxu0 0.0
    %3608 = vmatpush1.msra.mxu0 0.0
    %3609 = vmatprep.subr.mxu0 0.0
    %3610 = vmatpush1.msra.mxu0 0.0
    %3611 = vmatprep.mubr.f32.mxu0 0.0
    %3612 = vmatmul.mubr.f32.gmra.mrb[0].mxu0 %v3545
    %v3613 = vpop.f32.mrb[0].mxu0
    %v3614 = vadd.f32 0.0, %v3613
    %v3615 = vpop.f32.mrb[0].mxu0
    %3616 = vdwg.mxu0
    %3617 = vrot.lane.b32.xlu0 %v2628, 112
    %v3618 = vpop.permute.xlu0 %3617
    %v3621 = vsel %vm576, %v3540, 0
    %3623 = vmatprep.subr.mxu0 0.0
    %3624 = vmatpush1.msra.mxu0 %v3618
    %3625 = vmatprep.subr.mxu0 0.0
    %3626 = vmatpush1.msra.mxu0 0.0
    %3627 = vmatprep.subr.mxu0 0.0
    %3628 = vmatpush1.msra.mxu0 0.0
    %3629 = vmatprep.subr.mxu0 0.0
    %3630 = vmatpush1.msra.mxu0 0.0
    %3631 = vmatprep.subr.mxu0 0.0
    %3632 = vmatpush1.msra.mxu0 0.0
    %3633 = vmatprep.subr.mxu0 0.0
    %3634 = vmatpush1.msra.mxu0 0.0
    %3635 = vmatprep.subr.mxu0 0.0
    %3636 = vmatpush1.msra.mxu0 0.0
    %3637 = vmatprep.subr.mxu0 0.0
    %3638 = vmatpush1.msra.mxu0 0.0
    %3639 = vmatprep.subr.mxu0 0.0
    %3640 = vmatpush1.msra.mxu0 0.0
    %3641 = vmatprep.subr.mxu0 0.0
    %3642 = vmatpush1.msra.mxu0 0.0
    %3643 = vmatprep.subr.mxu0 0.0
    %3644 = vmatpush1.msra.mxu0 0.0
    %3645 = vmatprep.subr.mxu0 0.0
    %3646 = vmatpush1.msra.mxu0 0.0
    %3647 = vmatprep.subr.mxu0 0.0
    %3648 = vmatpush1.msra.mxu0 0.0
    %3649 = vmatprep.subr.mxu0 0.0
    %3650 = vmatpush1.msra.mxu0 0.0
    %3651 = vmatprep.subr.mxu0 0.0
    %3652 = vmatpush1.msra.mxu0 0.0
    %3653 = vmatprep.subr.mxu0 0.0
    %3654 = vmatpush1.msra.mxu0 0.0
    %3655 = vmatprep.subr.mxu0 0.0
    %3656 = vmatpush1.msra.mxu0 0.0
    %3657 = vmatprep.subr.mxu0 0.0
    %3658 = vmatpush1.msra.mxu0 0.0
    %3659 = vmatprep.subr.mxu0 0.0
    %3660 = vmatpush1.msra.mxu0 0.0
    %3661 = vmatprep.subr.mxu0 0.0
    %3662 = vmatpush1.msra.mxu0 0.0
    %3663 = vmatprep.subr.mxu0 0.0
    %3664 = vmatpush1.msra.mxu0 0.0
    %3665 = vmatprep.subr.mxu0 0.0
    %3666 = vmatpush1.msra.mxu0 0.0
    %3667 = vmatprep.subr.mxu0 0.0
    %3668 = vmatpush1.msra.mxu0 0.0
    %3669 = vmatprep.subr.mxu0 0.0
    %3670 = vmatpush1.msra.mxu0 0.0
    %3671 = vmatprep.subr.mxu0 0.0
    %3672 = vmatpush1.msra.mxu0 0.0
    %3673 = vmatprep.subr.mxu0 0.0
    %3674 = vmatpush1.msra.mxu0 0.0
    %3675 = vmatprep.subr.mxu0 0.0
    %3676 = vmatpush1.msra.mxu0 0.0
    %3677 = vmatprep.subr.mxu0 0.0
    %3678 = vmatpush1.msra.mxu0 0.0
    %3679 = vmatprep.subr.mxu0 0.0
    %3680 = vmatpush1.msra.mxu0 0.0
    %3681 = vmatprep.subr.mxu0 0.0
    %3682 = vmatpush1.msra.mxu0 0.0
    %3683 = vmatprep.subr.mxu0 0.0
    %3684 = vmatpush1.msra.mxu0 0.0
    %3685 = vmatprep.subr.mxu0 0.0
    %3686 = vmatpush1.msra.mxu0 0.0
    %3687 = vmatprep.mubr.f32.mxu0 0.0
    %3688 = vmatmul.mubr.f32.gmra.mrb[0].mxu0 %v3621
    %v3689 = vpop.f32.mrb[0].mxu0
    %v3690 = vadd.f32 0.0, %v3689
    %v3691 = vpop.f32.mrb[0].mxu0
    %3692 = vdwg.mxu0
    %3693 = vrot.lane.b32.xlu0 %v2669, 104
    %v3694 = vpop.permute.xlu0 %3693
    %3695 = vrot.lane.b32.xlu0 %v2709, 104
    %v3696 = vpop.permute.xlu0 %3695
    %v3697 = vsel %vm576, %v3694, 0
    %v3699 = vsel %vm576, %v3696, 0
    %3701 = vmatprep.subr.mxu0 0.0
    %3702 = vmatpush1.xpose.msra.mxu0 %v3699
    %3703 = vmatprep.subr.mxu0 0.0
    %3704 = vmatpush1.xpose.msra.mxu0 0.0
    %3705 = vmatprep.subr.mxu0 0.0
    %3706 = vmatpush1.xpose.msra.mxu0 0.0
    %3707 = vmatprep.subr.mxu0 0.0
    %3708 = vmatpush1.xpose.msra.mxu0 0.0
    %3709 = vmatprep.subr.mxu0 0.0
    %3710 = vmatpush1.xpose.msra.mxu0 0.0
    %3711 = vmatprep.subr.mxu0 0.0
    %3712 = vmatpush1.xpose.msra.mxu0 0.0
    %3713 = vmatprep.subr.mxu0 0.0
    %3714 = vmatpush1.xpose.msra.mxu0 0.0
    %3715 = vmatprep.subr.mxu0 0.0
    %3716 = vmatpush1.xpose.msra.mxu0 0.0
    %3717 = vmatprep.subr.mxu0 0.0
    %3718 = vmatpush1.xpose.msra.mxu0 0.0
    %3719 = vmatprep.subr.mxu0 0.0
    %3720 = vmatpush1.xpose.msra.mxu0 0.0
    %3721 = vmatprep.subr.mxu0 0.0
    %3722 = vmatpush1.xpose.msra.mxu0 0.0
    %3723 = vmatprep.subr.mxu0 0.0
    %3724 = vmatpush1.xpose.msra.mxu0 0.0
    %3725 = vmatprep.subr.mxu0 0.0
    %3726 = vmatpush1.xpose.msra.mxu0 0.0
    %3727 = vmatprep.subr.mxu0 0.0
    %3728 = vmatpush1.xpose.msra.mxu0 0.0
    %3729 = vmatprep.subr.mxu0 0.0
    %3730 = vmatpush1.xpose.msra.mxu0 0.0
    %3731 = vmatprep.subr.mxu0 0.0
    %3732 = vmatpush1.xpose.msra.mxu0 0.0
    %3733 = vmatprep.subr.mxu0 0.0
    %3734 = vmatpush1.xpose.msra.mxu0 0.0
    %3735 = vmatprep.subr.mxu0 0.0
    %3736 = vmatpush1.xpose.msra.mxu0 0.0
    %3737 = vmatprep.subr.mxu0 0.0
    %3738 = vmatpush1.xpose.msra.mxu0 0.0
    %3739 = vmatprep.subr.mxu0 0.0
    %3740 = vmatpush1.xpose.msra.mxu0 0.0
    %3741 = vmatprep.subr.mxu0 0.0
    %3742 = vmatpush1.xpose.msra.mxu0 0.0
    %3743 = vmatprep.subr.mxu0 0.0
    %3744 = vmatpush1.xpose.msra.mxu0 0.0
    %3745 = vmatprep.subr.mxu0 0.0
    %3746 = vmatpush1.xpose.msra.mxu0 0.0
    %3747 = vmatprep.subr.mxu0 0.0
    %3748 = vmatpush1.xpose.msra.mxu0 0.0
    %3749 = vmatprep.subr.mxu0 0.0
    %3750 = vmatpush1.xpose.msra.mxu0 0.0
    %3751 = vmatprep.subr.mxu0 0.0
    %3752 = vmatpush1.xpose.msra.mxu0 0.0
    %3753 = vmatprep.subr.mxu0 0.0
    %3754 = vmatpush1.xpose.msra.mxu0 0.0
    %3755 = vmatprep.subr.mxu0 0.0
    %3756 = vmatpush1.xpose.msra.mxu0 0.0
    %3757 = vmatprep.subr.mxu0 0.0
    %3758 = vmatpush1.xpose.msra.mxu0 0.0
    %3759 = vmatprep.subr.mxu0 0.0
    %3760 = vmatpush1.xpose.msra.mxu0 0.0
    %3761 = vmatprep.subr.mxu0 0.0
    %3762 = vmatpush1.xpose.msra.mxu0 0.0
    %3763 = vmatprep.subr.mxu0 0.0
    %3764 = vmatpush1.xpose.msra.mxu0 0.0
    %3765 = vmatprep.mubr.f32.mxu0 0.0
    %3766 = vmatmul.mubr.f32.gmra.mrb[0].mxu0 %v3697
    %v3767 = vpop.f32.mrb[0].mxu0
    %v3768 = vadd.f32 %v569, %v3767
    %v3769 = vpop.f32.mrb[0].mxu0
    %3770 = vdwg.mxu0
    %3771 = vrot.lane.b32.xlu0 %v2670, 104
    %v3772 = vpop.permute.xlu0 %3771
    %3773 = vrot.lane.b32.xlu0 %v2710, 104
    %v3774 = vpop.permute.xlu0 %3773
    %v3775 = vsel %vm576, %v3772, 0
    %v3777 = vsel %vm576, %v3774, 0
    %3779 = vmatprep.subr.mxu0 0.0
    %3780 = vmatpush1.xpose.msra.mxu0 %v3777
    %3781 = vmatprep.subr.mxu0 0.0
    %3782 = vmatpush1.xpose.msra.mxu0 0.0
    %3783 = vmatprep.subr.mxu0 0.0
    %3784 = vmatpush1.xpose.msra.mxu0 0.0
    %3785 = vmatprep.subr.mxu0 0.0
    %3786 = vmatpush1.xpose.msra.mxu0 0.0
    %3787 = vmatprep.subr.mxu0 0.0
    %3788 = vmatpush1.xpose.msra.mxu0 0.0
    %3789 = vmatprep.subr.mxu0 0.0
    %3790 = vmatpush1.xpose.msra.mxu0 0.0
    %3791 = vmatprep.subr.mxu0 0.0
    %3792 = vmatpush1.xpose.msra.mxu0 0.0
    %3793 = vmatprep.subr.mxu0 0.0
    %3794 = vmatpush1.xpose.msra.mxu0 0.0
    %3795 = vmatprep.subr.mxu0 0.0
    %3796 = vmatpush1.xpose.msra.mxu0 0.0
    %3797 = vmatprep.subr.mxu0 0.0
    %3798 = vmatpush1.xpose.msra.mxu0 0.0
    %3799 = vmatprep.subr.mxu0 0.0
    %3800 = vmatpush1.xpose.msra.mxu0 0.0
    %3801 = vmatprep.subr.mxu0 0.0
    %3802 = vmatpush1.xpose.msra.mxu0 0.0
    %3803 = vmatprep.subr.mxu0 0.0
    %3804 = vmatpush1.xpose.msra.mxu0 0.0
    %3805 = vmatprep.subr.mxu0 0.0
    %3806 = vmatpush1.xpose.msra.mxu0 0.0
    %3807 = vmatprep.subr.mxu0 0.0
    %3808 = vmatpush1.xpose.msra.mxu0 0.0
    %3809 = vmatprep.subr.mxu0 0.0
    %3810 = vmatpush1.xpose.msra.mxu0 0.0
    %3811 = vmatprep.subr.mxu0 0.0
    %3812 = vmatpush1.xpose.msra.mxu0 0.0
    %3813 = vmatprep.subr.mxu0 0.0
    %3814 = vmatpush1.xpose.msra.mxu0 0.0
    %3815 = vmatprep.subr.mxu0 0.0
    %3816 = vmatpush1.xpose.msra.mxu0 0.0
    %3817 = vmatprep.subr.mxu0 0.0
    %3818 = vmatpush1.xpose.msra.mxu0 0.0
    %3819 = vmatprep.subr.mxu0 0.0
    %3820 = vmatpush1.xpose.msra.mxu0 0.0
    %3821 = vmatprep.subr.mxu0 0.0
    %3822 = vmatpush1.xpose.msra.mxu0 0.0
    %3823 = vmatprep.subr.mxu0 0.0
    %3824 = vmatpush1.xpose.msra.mxu0 0.0
    %3825 = vmatprep.subr.mxu0 0.0
    %3826 = vmatpush1.xpose.msra.mxu0 0.0
    %3827 = vmatprep.subr.mxu0 0.0
    %3828 = vmatpush1.xpose.msra.mxu0 0.0
    %3829 = vmatprep.subr.mxu0 0.0
    %3830 = vmatpush1.xpose.msra.mxu0 0.0
    %3831 = vmatprep.subr.mxu0 0.0
    %3832 = vmatpush1.xpose.msra.mxu0 0.0
    %3833 = vmatprep.subr.mxu0 0.0
    %3834 = vmatpush1.xpose.msra.mxu0 0.0
    %3835 = vmatprep.subr.mxu0 0.0
    %3836 = vmatpush1.xpose.msra.mxu0 0.0
    %3837 = vmatprep.subr.mxu0 0.0
    %3838 = vmatpush1.xpose.msra.mxu0 0.0
    %3839 = vmatprep.subr.mxu0 0.0
    %3840 = vmatpush1.xpose.msra.mxu0 0.0
    %3841 = vmatprep.subr.mxu0 0.0
    %3842 = vmatpush1.xpose.msra.mxu0 0.0
    %3843 = vmatprep.mubr.f32.mxu0 0.0
    %3844 = vmatmul.mubr.f32.gmra.mrb[0].mxu0 %v3775
    %v3845 = vpop.f32.mrb[0].mxu0
    %v3846 = vadd.f32 %v573, %v3845
    %v3847 = vpop.f32.mrb[0].mxu0
    %3848 = vdwg.mxu0
    %v3849 = vsel %vm576, %v3768, -inf
    %3850 = vmax.xlane.f32.xlu0 %v3849
    %v3851 = vpop.xlane.xlu0 %3850
    %v3852 = vsel %vm576, %v3846, -inf
    %3853 = vmax.xlane.f32.xlu0 %v3852
    %v3854 = vpop.xlane.xlu0 %3853
    %v3855 = vsub.f32 %v3768, %v3851
    %v3856 = vsub.f32 %v3846, %v3854
    %v3857 = vmul.f32 %v3855, 1.442695
    %v3858 = vpow.pop %v3857
    %v3859 = vmul.f32 %v3856, 1.442695
    %v3860 = vpow.pop %v3859
    %v3861 = vsel %vm576, %v3858, 0.0
    %3862 = vadd.xlane.f32.xlu0 %v3861
    %v3863 = vpop.xlane.xlu0 %3862
    %v3864 = vsel %vm576, %v3860, 0.0
    %3865 = vadd.xlane.f32.xlu0 %v3864
    %v3866 = vpop.xlane.xlu0 %3865
    %v3867 = vrcp.pop %v3863
    %v3868 = vrcp.pop %v3866
    %v3869 = vmul.f32 %v3858, %v3867
    %v3870 = vmul.f32 %v3860, %v3868
    %3871 = vrot.lane.b32.xlu0 %v2623, 104
    %v3872 = vpop.permute.xlu0 %3871
    %v3875 = vsel %vm576, %v3869, 0
    %3877 = vmatprep.subr.mxu0 0.0
    %3878 = vmatpush1.msra.mxu0 %v3872
    %3879 = vmatprep.subr.mxu0 0.0
    %3880 = vmatpush1.msra.mxu0 0.0
    %3881 = vmatprep.subr.mxu0 0.0
    %3882 = vmatpush1.msra.mxu0 0.0
    %3883 = vmatprep.subr.mxu0 0.0
    %3884 = vmatpush1.msra.mxu0 0.0
    %3885 = vmatprep.subr.mxu0 0.0
    %3886 = vmatpush1.msra.mxu0 0.0
    %3887 = vmatprep.subr.mxu0 0.0
    %3888 = vmatpush1.msra.mxu0 0.0
    %3889 = vmatprep.subr.mxu0 0.0
    %3890 = vmatpush1.msra.mxu0 0.0
    %3891 = vmatprep.subr.mxu0 0.0
    %3892 = vmatpush1.msra.mxu0 0.0
    %3893 = vmatprep.subr.mxu0 0.0
    %3894 = vmatpush1.msra.mxu0 0.0
    %3895 = vmatprep.subr.mxu0 0.0
    %3896 = vmatpush1.msra.mxu0 0.0
    %3897 = vmatprep.subr.mxu0 0.0
    %3898 = vmatpush1.msra.mxu0 0.0
    %3899 = vmatprep.subr.mxu0 0.0
    %3900 = vmatpush1.msra.mxu0 0.0
    %3901 = vmatprep.subr.mxu0 0.0
    %3902 = vmatpush1.msra.mxu0 0.0
    %3903 = vmatprep.subr.mxu0 0.0
    %3904 = vmatpush1.msra.mxu0 0.0
    %3905 = vmatprep.subr.mxu0 0.0
    %3906 = vmatpush1.msra.mxu0 0.0
    %3907 = vmatprep.subr.mxu0 0.0
    %3908 = vmatpush1.msra.mxu0 0.0
    %3909 = vmatprep.subr.mxu0 0.0
    %3910 = vmatpush1.msra.mxu0 0.0
    %3911 = vmatprep.subr.mxu0 0.0
    %3912 = vmatpush1.msra.mxu0 0.0
    %3913 = vmatprep.subr.mxu0 0.0
    %3914 = vmatpush1.msra.mxu0 0.0
    %3915 = vmatprep.subr.mxu0 0.0
    %3916 = vmatpush1.msra.mxu0 0.0
    %3917 = vmatprep.subr.mxu0 0.0
    %3918 = vmatpush1.msra.mxu0 0.0
    %3919 = vmatprep.subr.mxu0 0.0
    %3920 = vmatpush1.msra.mxu0 0.0
    %3921 = vmatprep.subr.mxu0 0.0
    %3922 = vmatpush1.msra.mxu0 0.0
    %3923 = vmatprep.subr.mxu0 0.0
    %3924 = vmatpush1.msra.mxu0 0.0
    %3925 = vmatprep.subr.mxu0 0.0
    %3926 = vmatpush1.msra.mxu0 0.0
    %3927 = vmatprep.subr.mxu0 0.0
    %3928 = vmatpush1.msra.mxu0 0.0
    %3929 = vmatprep.subr.mxu0 0.0
    %3930 = vmatpush1.msra.mxu0 0.0
    %3931 = vmatprep.subr.mxu0 0.0
    %3932 = vmatpush1.msra.mxu0 0.0
    %3933 = vmatprep.subr.mxu0 0.0
    %3934 = vmatpush1.msra.mxu0 0.0
    %3935 = vmatprep.subr.mxu0 0.0
    %3936 = vmatpush1.msra.mxu0 0.0
    %3937 = vmatprep.subr.mxu0 0.0
    %3938 = vmatpush1.msra.mxu0 0.0
    %3939 = vmatprep.subr.mxu0 0.0
    %3940 = vmatpush1.msra.mxu0 0.0
    %3941 = vmatprep.mubr.f32.mxu0 0.0
    %3942 = vmatmul.mubr.f32.gmra.mrb[0].mxu0 %v3875
    %v3943 = vpop.f32.mrb[0].mxu0
    %v3944 = vadd.f32 0.0, %v3943
    %v3945 = vpop.f32.mrb[0].mxu0
    %3946 = vdwg.mxu0
    %3947 = vrot.lane.b32.xlu0 %v2628, 104
    %v3948 = vpop.permute.xlu0 %3947
    %v3951 = vsel %vm576, %v3870, 0
    %3953 = vmatprep.subr.mxu0 0.0
    %3954 = vmatpush1.msra.mxu0 %v3948
    %3955 = vmatprep.subr.mxu0 0.0
    %3956 = vmatpush1.msra.mxu0 0.0
    %3957 = vmatprep.subr.mxu0 0.0
    %3958 = vmatpush1.msra.mxu0 0.0
    %3959 = vmatprep.subr.mxu0 0.0
    %3960 = vmatpush1.msra.mxu0 0.0
    %3961 = vmatprep.subr.mxu0 0.0
    %3962 = vmatpush1.msra.mxu0 0.0
    %3963 = vmatprep.subr.mxu0 0.0
    %3964 = vmatpush1.msra.mxu0 0.0
    %3965 = vmatprep.subr.mxu0 0.0
    %3966 = vmatpush1.msra.mxu0 0.0
    %3967 = vmatprep.subr.mxu0 0.0
    %3968 = vmatpush1.msra.mxu0 0.0
    %3969 = vmatprep.subr.mxu0 0.0
    %3970 = vmatpush1.msra.mxu0 0.0
    %3971 = vmatprep.subr.mxu0 0.0
    %3972 = vmatpush1.msra.mxu0 0.0
    %3973 = vmatprep.subr.mxu0 0.0
    %3974 = vmatpush1.msra.mxu0 0.0
    %3975 = vmatprep.subr.mxu0 0.0
    %3976 = vmatpush1.msra.mxu0 0.0
    %3977 = vmatprep.subr.mxu0 0.0
    %3978 = vmatpush1.msra.mxu0 0.0
    %3979 = vmatprep.subr.mxu0 0.0
    %3980 = vmatpush1.msra.mxu0 0.0
    %3981 = vmatprep.subr.mxu0 0.0
    %3982 = vmatpush1.msra.mxu0 0.0
    %3983 = vmatprep.subr.mxu0 0.0
    %3984 = vmatpush1.msra.mxu0 0.0
    %3985 = vmatprep.subr.mxu0 0.0
    %3986 = vmatpush1.msra.mxu0 0.0
    %3987 = vmatprep.subr.mxu0 0.0
    %3988 = vmatpush1.msra.mxu0 0.0
    %3989 = vmatprep.subr.mxu0 0.0
    %3990 = vmatpush1.msra.mxu0 0.0
    %3991 = vmatprep.subr.mxu0 0.0
    %3992 = vmatpush1.msra.mxu0 0.0
    %3993 = vmatprep.subr.mxu0 0.0
    %3994 = vmatpush1.msra.mxu0 0.0
    %3995 = vmatprep.subr.mxu0 0.0
    %3996 = vmatpush1.msra.mxu0 0.0
    %3997 = vmatprep.subr.mxu0 0.0
    %3998 = vmatpush1.msra.mxu0 0.0
    %3999 = vmatprep.subr.mxu0 0.0
    %4000 = vmatpush1.msra.mxu0 0.0
    %4001 = vmatprep.subr.mxu0 0.0
    %4002 = vmatpush1.msra.mxu0 0.0
    %4003 = vmatprep.subr.mxu0 0.0
    %4004 = vmatpush1.msra.mxu0 0.0
    %4005 = vmatprep.subr.mxu0 0.0
    %4006 = vmatpush1.msra.mxu0 0.0
    %4007 = vmatprep.subr.mxu0 0.0
    %4008 = vmatpush1.msra.mxu0 0.0
    %4009 = vmatprep.subr.mxu0 0.0
    %4010 = vmatpush1.msra.mxu0 0.0
    %4011 = vmatprep.subr.mxu0 0.0
    %4012 = vmatpush1.msra.mxu0 0.0
    %4013 = vmatprep.subr.mxu0 0.0
    %4014 = vmatpush1.msra.mxu0 0.0
    %4015 = vmatprep.subr.mxu0 0.0
    %4016 = vmatpush1.msra.mxu0 0.0
    %4017 = vmatprep.mubr.f32.mxu0 0.0
    %4018 = vmatmul.mubr.f32.gmra.mrb[0].mxu0 %v3951
    %v4019 = vpop.f32.mrb[0].mxu0
    %v4020 = vadd.f32 0.0, %v4019
    %v4021 = vpop.f32.mrb[0].mxu0
    %4022 = vdwg.mxu0
    %4025 = vrot.lane.b32.xlu0 %v3283, 8
    %v4026 = vpop.permute.xlu0 %4025
    %4027 = vrot.lane.b32.xlu0 %v3360, 8
    %v4028 = vpop.permute.xlu0 %4027
    %4033 = vrot.lane.b32.xlu0 %v3614, 16
    %v4034 = vpop.permute.xlu0 %4033
    %4035 = vrot.lane.b32.xlu0 %v3690, 16
    %v4036 = vpop.permute.xlu0 %4035
    %4041 = vrot.lane.b32.xlu0 %v3944, 24
    %v4042 = vpop.permute.xlu0 %4041
    %4043 = vrot.lane.b32.xlu0 %v4020, 24
    %v4044 = vpop.permute.xlu0 %4043
    %v4047 = vsel %vm576, %v2955, %v4026
    %v4048 = vsel %vm576, %v3028, %v4028
    %v4049 = vsel %vm1915, %v4047, %v4034
    %v4050 = vsel %vm1915, %v4048, %v4036
    %v4051 = vsel %vm1918, %v4049, %v4042
    %v4052 = vsel %vm1918, %v4050, %v4044
    %v4054 = vsel %vm188, %v4051, 0
    %v4057 = vsel %vm188, %v4052, 0
    %4059 = vmatprep.subr.mxu0 0.0
    %4060 = vmatpush1.msra.mxu0 %v2362
    %4061 = vmatprep.subr.mxu0 0.0
    %4062 = vmatpush1.msra.mxu0 %v2363
    %4063 = vmatprep.subr.mxu0 0.0
    %4064 = vmatpush1.msra.mxu0 %v2364
    %4065 = vmatprep.subr.mxu0 0.0
    %4066 = vmatpush1.msra.mxu0 %v2365
    %4067 = vmatprep.subr.mxu0 0.0
    %4068 = vmatpush1.msra.mxu0 0.0
    %4069 = vmatprep.subr.mxu0 0.0
    %4070 = vmatpush1.msra.mxu0 0.0
    %4071 = vmatprep.subr.mxu0 0.0
    %4072 = vmatpush1.msra.mxu0 0.0
    %4073 = vmatprep.subr.mxu0 0.0
    %4074 = vmatpush1.msra.mxu0 0.0
    %4075 = vmatprep.subr.mxu0 0.0
    %4076 = vmatpush1.msra.mxu0 0.0
    %4077 = vmatprep.subr.mxu0 0.0
    %4078 = vmatpush1.msra.mxu0 0.0
    %4079 = vmatprep.subr.mxu0 0.0
    %4080 = vmatpush1.msra.mxu0 0.0
    %4081 = vmatprep.subr.mxu0 0.0
    %4082 = vmatpush1.msra.mxu0 0.0
    %4083 = vmatprep.subr.mxu0 0.0
    %4084 = vmatpush1.msra.mxu0 0.0
    %4085 = vmatprep.subr.mxu0 0.0
    %4086 = vmatpush1.msra.mxu0 0.0
    %4087 = vmatprep.subr.mxu0 0.0
    %4088 = vmatpush1.msra.mxu0 0.0
    %4089 = vmatprep.subr.mxu0 0.0
    %4090 = vmatpush1.msra.mxu0 0.0
    %4091 = vmatprep.subr.mxu0 0.0
    %4092 = vmatpush1.msra.mxu0 0.0
    %4093 = vmatprep.subr.mxu0 0.0
    %4094 = vmatpush1.msra.mxu0 0.0
    %4095 = vmatprep.subr.mxu0 0.0
    %4096 = vmatpush1.msra.mxu0 0.0
    %4097 = vmatprep.subr.mxu0 0.0
    %4098 = vmatpush1.msra.mxu0 0.0
    %4099 = vmatprep.subr.mxu0 0.0
    %4100 = vmatpush1.msra.mxu0 0.0
    %4101 = vmatprep.subr.mxu0 0.0
    %4102 = vmatpush1.msra.mxu0 0.0
    %4103 = vmatprep.subr.mxu0 0.0
    %4104 = vmatpush1.msra.mxu0 0.0
    %4105 = vmatprep.subr.mxu0 0.0
    %4106 = vmatpush1.msra.mxu0 0.0
    %4107 = vmatprep.subr.mxu0 0.0
    %4108 = vmatpush1.msra.mxu0 0.0
    %4109 = vmatprep.subr.mxu0 0.0
    %4110 = vmatpush1.msra.mxu0 0.0
    %4111 = vmatprep.subr.mxu0 0.0
    %4112 = vmatpush1.msra.mxu0 0.0
    %4113 = vmatprep.subr.mxu0 0.0
    %4114 = vmatpush1.msra.mxu0 0.0
    %4115 = vmatprep.subr.mxu0 0.0
    %4116 = vmatpush1.msra.mxu0 0.0
    %4117 = vmatprep.subr.mxu0 0.0
    %4118 = vmatpush1.msra.mxu0 0.0
    %4119 = vmatprep.subr.mxu0 0.0
    %4120 = vmatpush1.msra.mxu0 0.0
    %4121 = vmatprep.subr.mxu0 0.0
    %4122 = vmatpush1.msra.mxu0 0.0
    %4123 = vmatprep.mubr.f32.mxu0 0.0
    %4124 = vmatmul.mubr.f32.gmra.mrb[0].mxu0 %v4054
    %v4125 = vpop.f32.mrb[0].mxu0
    %v4126 = vadd.f32 0.0, %v4125
    %v4127 = vpop.f32.mrb[0].mxu0
    %4128 = vmatprep.mubr.f32.mxu0 0.0
    %4129 = vmatmul.mubr.f32.gmra.mrb[0].mxu0 %v4057
    %v4130 = vpop.f32.mrb[0].mxu0
    %v4131 = vadd.f32 0.0, %v4130
    %v4132 = vpop.f32.mrb[0].mxu0
    %4133 = vdwg.mxu0
    %v4134 = vadd.f32 %v2345, %v4126
    %v4135 = vadd.f32 %v2346, %v4131
    %v4136 = vld [vmem:[#allocation2 + $0x40] sm:$0xff]
    %v4137 = vld [vmem:[#allocation2 + $0x48] sm:$0xff]
    %v4138 = vld [vmem:[#allocation2 + $0x50] sm:$0xff]
    %v4139 = vld [vmem:[#allocation2 + $0x58] sm:$0xff]
    %v4140 = vld [vmem:[#allocation2 + $0x60] sm:$0xff]
    %v4141 = vld [vmem:[#allocation2 + $0x68] sm:$0xff]
    %v4142 = vld [vmem:[#allocation2 + $0x70] sm:$0xff]
    %v4143 = vld [vmem:[#allocation2 + $0x78] sm:$0xff]
    %v4144 = vld [vmem:[%s3 + $0x188] sm:$0xff]
    %v4145 = vld [vmem:[%s3 + $0x190] sm:$0xff]
    %v4146 = vld [vmem:[%s3 + $0x198] sm:$0xff]
    %v4147 = vld [vmem:[%s3 + $0x1a0] sm:$0xff]
    %v4148 = vld [vmem:[%s3 + $0x1a8] sm:$0xff]
    %v4149 = vld [vmem:[%s3 + $0x1b0] sm:$0xff]
    %v4150 = vld [vmem:[%s3 + $0x1b8] sm:$0xff]
    %v4151 = vld [vmem:[%s3 + $0x1c0] sm:$0xff]
    %v4152 = vsel %vm188, %v4134, 0.0
    %4153 = vadd.xlane.f32.xlu0 %v4152
    %v4154 = vpop.xlane.xlu0 %4153
    %v4155 = vsel %vm188, %v4135, 0.0
    %4156 = vadd.xlane.f32.xlu0 %v4155
    %v4157 = vpop.xlane.xlu0 %4156
    %v4158 = vmul.f32 %v4154, %v195
    %v4159 = vmul.f32 %v4157, %v195
    %v4160 = vsub.f32 %v4134, %v4158
    %v4161 = vsub.f32 %v4135, %v4159
    %v4162 = vmul.f32 %v4160, %v4160
    %v4163 = vmul.f32 %v4161, %v4161
    %v4164 = vsel %vm188, %v4162, 0.0
    %4165 = vadd.xlane.f32.xlu0 %v4164
    %v4166 = vpop.xlane.xlu0 %4165
    %v4167 = vsel %vm188, %v4163, 0.0
    %4168 = vadd.xlane.f32.xlu0 %v4167
    %v4169 = vpop.xlane.xlu0 %4168
    %v4170 = vmul.f32 %v4166, %v195
    %v4171 = vmul.f32 %v4169, %v195
    %v4172 = vadd.f32 %v4170, 1e-05
    %v4173 = vadd.f32 %v4171, 1e-05
    %v4174 = vrsqrt.pop %v4172
    %v4175 = vrsqrt.pop %v4173
    %v4176 = vmul.f32 %v4160, %v4174
    %v4177 = vmul.f32 %v4161, %v4175
    %v4178 = vlaneseq
    %v4179 = vshrl.u32 %v4178, 7
    %v4180 = vsub.s32 0, %v4179
    %v4181 = vrot.slane %v2367, %v4180
    %v4182 = vmul.f32 %v4176, %v4181
    %v4183 = vmul.f32 %v4177, %v4181
    %v4185 = vsel %vm188, %v4182, 0
    %v4188 = vsel %vm188, %v4183, 0
    %4190 = vmatprep.subr.mxu0 0.0
    %4191 = vmatpush1.msra.mxu0 %v4136
    %4192 = vmatprep.subr.mxu0 0.0
    %4193 = vmatpush1.msra.mxu0 %v4137
    %4194 = vmatprep.subr.mxu0 0.0
    %4195 = vmatpush1.msra.mxu0 %v4138
    %4196 = vmatprep.subr.mxu0 0.0
    %4197 = vmatpush1.msra.mxu0 %v4139
    %4198 = vmatprep.subr.mxu0 0.0
    %4199 = vmatpush1.msra.mxu0 0.0
    %4200 = vmatprep.subr.mxu0 0.0
    %4201 = vmatpush1.msra.mxu0 0.0
    %4202 = vmatprep.subr.mxu0 0.0
    %4203 = vmatpush1.msra.mxu0 0.0
    %4204 = vmatprep.subr.mxu0 0.0
    %4205 = vmatpush1.msra.mxu0 0.0
    %4206 = vmatprep.subr.mxu0 0.0
    %4207 = vmatpush1.msra.mxu0 0.0
    %4208 = vmatprep.subr.mxu0 0.0
    %4209 = vmatpush1.msra.mxu0 0.0
    %4210 = vmatprep.subr.mxu0 0.0
    %4211 = vmatpush1.msra.mxu0 0.0
    %4212 = vmatprep.subr.mxu0 0.0
    %4213 = vmatpush1.msra.mxu0 0.0
    %4214 = vmatprep.subr.mxu0 0.0
    %4215 = vmatpush1.msra.mxu0 0.0
    %4216 = vmatprep.subr.mxu0 0.0
    %4217 = vmatpush1.msra.mxu0 0.0
    %4218 = vmatprep.subr.mxu0 0.0
    %4219 = vmatpush1.msra.mxu0 0.0
    %4220 = vmatprep.subr.mxu0 0.0
    %4221 = vmatpush1.msra.mxu0 0.0
    %4222 = vmatprep.subr.mxu0 0.0
    %4223 = vmatpush1.msra.mxu0 0.0
    %4224 = vmatprep.subr.mxu0 0.0
    %4225 = vmatpush1.msra.mxu0 0.0
    %4226 = vmatprep.subr.mxu0 0.0
    %4227 = vmatpush1.msra.mxu0 0.0
    %4228 = vmatprep.subr.mxu0 0.0
    %4229 = vmatpush1.msra.mxu0 0.0
    %4230 = vmatprep.subr.mxu0 0.0
    %4231 = vmatpush1.msra.mxu0 0.0
    %4232 = vmatprep.subr.mxu0 0.0
    %4233 = vmatpush1.msra.mxu0 0.0
    %4234 = vmatprep.subr.mxu0 0.0
    %4235 = vmatpush1.msra.mxu0 0.0
    %4236 = vmatprep.subr.mxu0 0.0
    %4237 = vmatpush1.msra.mxu0 0.0
    %4238 = vmatprep.subr.mxu0 0.0
    %4239 = vmatpush1.msra.mxu0 0.0
    %4240 = vmatprep.subr.mxu0 0.0
    %4241 = vmatpush1.msra.mxu0 0.0
    %4242 = vmatprep.subr.mxu0 0.0
    %4243 = vmatpush1.msra.mxu0 0.0
    %4244 = vmatprep.subr.mxu0 0.0
    %4245 = vmatpush1.msra.mxu0 0.0
    %4246 = vmatprep.subr.mxu0 0.0
    %4247 = vmatpush1.msra.mxu0 0.0
    %4248 = vmatprep.subr.mxu0 0.0
    %4249 = vmatpush1.msra.mxu0 0.0
    %4250 = vmatprep.subr.mxu0 0.0
    %4251 = vmatpush1.msra.mxu0 0.0
    %4252 = vmatprep.subr.mxu0 0.0
    %4253 = vmatpush1.msra.mxu0 0.0
    %4254 = vmatprep.mubr.f32.mxu0 0.0
    %4255 = vmatmul.mubr.f32.gmra.mrb[0].mxu0 %v4185
    %v4256 = vpop.f32.mrb[0].mxu0
    %v4257 = vadd.f32 0.0, %v4256
    %v4258 = vpop.f32.mrb[0].mxu0
    %4259 = vmatprep.mubr.f32.mxu0 0.0
    %4260 = vmatmul.mubr.f32.gmra.mrb[0].mxu0 %v4188
    %v4261 = vpop.f32.mrb[0].mxu0
    %v4262 = vadd.f32 0.0, %v4261
    %v4263 = vpop.f32.mrb[0].mxu0
    %4264 = vdwg.mxu0
    %4265 = vmatprep.subr.mxu0 0.0
    %4266 = vmatpush1.msra.mxu0 %v4140
    %4267 = vmatprep.subr.mxu0 0.0
    %4268 = vmatpush1.msra.mxu0 %v4141
    %4269 = vmatprep.subr.mxu0 0.0
    %4270 = vmatpush1.msra.mxu0 %v4142
    %4271 = vmatprep.subr.mxu0 0.0
    %4272 = vmatpush1.msra.mxu0 %v4143
    %4273 = vmatprep.subr.mxu0 0.0
    %4274 = vmatpush1.msra.mxu0 0.0
    %4275 = vmatprep.subr.mxu0 0.0
    %4276 = vmatpush1.msra.mxu0 0.0
    %4277 = vmatprep.subr.mxu0 0.0
    %4278 = vmatpush1.msra.mxu0 0.0
    %4279 = vmatprep.subr.mxu0 0.0
    %4280 = vmatpush1.msra.mxu0 0.0
    %4281 = vmatprep.subr.mxu0 0.0
    %4282 = vmatpush1.msra.mxu0 0.0
    %4283 = vmatprep.subr.mxu0 0.0
    %4284 = vmatpush1.msra.mxu0 0.0
    %4285 = vmatprep.subr.mxu0 0.0
    %4286 = vmatpush1.msra.mxu0 0.0
    %4287 = vmatprep.subr.mxu0 0.0
    %4288 = vmatpush1.msra.mxu0 0.0
    %4289 = vmatprep.subr.mxu0 0.0
    %4290 = vmatpush1.msra.mxu0 0.0
    %4291 = vmatprep.subr.mxu0 0.0
    %4292 = vmatpush1.msra.mxu0 0.0
    %4293 = vmatprep.subr.mxu0 0.0
    %4294 = vmatpush1.msra.mxu0 0.0
    %4295 = vmatprep.subr.mxu0 0.0
    %4296 = vmatpush1.msra.mxu0 0.0
    %4297 = vmatprep.subr.mxu0 0.0
    %4298 = vmatpush1.msra.mxu0 0.0
    %4299 = vmatprep.subr.mxu0 0.0
    %4300 = vmatpush1.msra.mxu0 0.0
    %4301 = vmatprep.subr.mxu0 0.0
    %4302 = vmatpush1.msra.mxu0 0.0
    %4303 = vmatprep.subr.mxu0 0.0
    %4304 = vmatpush1.msra.mxu0 0.0
    %4305 = vmatprep.subr.mxu0 0.0
    %4306 = vmatpush1.msra.mxu0 0.0
    %4307 = vmatprep.subr.mxu0 0.0
    %4308 = vmatpush1.msra.mxu0 0.0
    %4309 = vmatprep.subr.mxu0 0.0
    %4310 = vmatpush1.msra.mxu0 0.0
    %4311 = vmatprep.subr.mxu0 0.0
    %4312 = vmatpush1.msra.mxu0 0.0
    %4313 = vmatprep.subr.mxu0 0.0
    %4314 = vmatpush1.msra.mxu0 0.0
    %4315 = vmatprep.subr.mxu0 0.0
    %4316 = vmatpush1.msra.mxu0 0.0
    %4317 = vmatprep.subr.mxu0 0.0
    %4318 = vmatpush1.msra.mxu0 0.0
    %4319 = vmatprep.subr.mxu0 0.0
    %4320 = vmatpush1.msra.mxu0 0.0
    %4321 = vmatprep.subr.mxu0 0.0
    %4322 = vmatpush1.msra.mxu0 0.0
    %4323 = vmatprep.subr.mxu0 0.0
    %4324 = vmatpush1.msra.mxu0 0.0
    %4325 = vmatprep.subr.mxu0 0.0
    %4326 = vmatpush1.msra.mxu0 0.0
    %4327 = vmatprep.subr.mxu0 0.0
    %4328 = vmatpush1.msra.mxu0 0.0
    %4329 = vmatprep.mubr.f32.mxu0 0.0
    %4330 = vmatmul.mubr.f32.gmra.mrb[0].mxu0 %v4185
    %v4331 = vpop.f32.mrb[0].mxu0
    %v4332 = vadd.f32 0.0, %v4331
    %v4333 = vpop.f32.mrb[0].mxu0
    %4334 = vmatprep.mubr.f32.mxu0 0.0
    %4335 = vmatmul.mubr.f32.gmra.mrb[0].mxu0 %v4188
    %v4336 = vpop.f32.mrb[0].mxu0
    %v4337 = vadd.f32 0.0, %v4336
    %v4338 = vpop.f32.mrb[0].mxu0
    %4339 = vdwg.mxu0
    %v4340 = vmul.f32 %v4257, 0.5
    %v4341 = vmul.f32 %v4262, 0.5
    %v4342 = vmul.f32 %v4257, 0.70710677
    %v4343 = vmul.f32 %v4262, 0.70710677
    %vm4344 = vcmp.ge.f32.partialorder %v4342, 0.0
    %vm4345 = vcmp.ge.f32.partialorder %v4343, 0.0
    %v4346 = vsel %vm4344, 1.0, -1.0
    %v4347 = vsel %vm4345, 1.0, -1.0
    %v4348 = vand.u32 2147483647, %v4342
    %v4349 = vand.u32 2147483647, %v4343
    %v4350 = vmul.f32 %v4348, 0.3275911
    %v4351 = vmul.f32 %v4349, 0.3275911
    %v4352 = vadd.f32 %v4350, 1.0
    %v4353 = vadd.f32 %v4351, 1.0
    %v4354 = vrcp.pop %v4352
    %v4355 = vmul.f32 1.0, %v4354
    %v4356 = vrcp.pop %v4353
    %v4357 = vmul.f32 1.0, %v4356
    %v4358 = vmul.f32 %v4355, 1.0614054
    %v4359 = vmul.f32 %v4357, 1.0614054
    %v4360 = vadd.f32 %v4358, -1.4531521
    %v4361 = vadd.f32 %v4359, -1.4531521
    %v4362 = vmul.f32 %v4360, %v4355
    %v4363 = vmul.f32 %v4361, %v4357
    %v4364 = vadd.f32 %v4362, 1.4214138
    %v4365 = vadd.f32 %v4363, 1.4214138
    %v4366 = vmul.f32 %v4364, %v4355
    %v4367 = vmul.f32 %v4365, %v4357
    %v4368 = vadd.f32 %v4366, -0.28449672
    %v4369 = vadd.f32 %v4367, -0.28449672
    %v4370 = vmul.f32 %v4368, %v4355
    %v4371 = vmul.f32 %v4369, %v4357
    %v4372 = vadd.f32 %v4370, 0.2548296
    %v4373 = vadd.f32 %v4371, 0.2548296
    %v4374 = vmul.f32 %v4372, %v4355
    %v4375 = vmul.f32 %v4373, %v4357
    %v4376 = vsub.f32 0.0, %v4348
    %v4377 = vsub.f32 0.0, %v4349
    %v4378 = vmul.f32 %v4376, %v4348
    %v4379 = vmul.f32 %v4377, %v4349
    %v4380 = vmul.f32 %v4378, 1.442695
    %v4381 = vpow.pop %v4380
    %v4382 = vmul.f32 %v4379, 1.442695
    %v4383 = vpow.pop %v4382
    %v4384 = vmul.f32 %v4374, %v4381
    %v4385 = vmul.f32 %v4375, %v4383
    %v4386 = vsub.f32 1.0, %v4384
    %v4387 = vsub.f32 1.0, %v4385
    %v4388 = vmul.f32 %v4346, %v4386
    %v4389 = vmul.f32 %v4347, %v4387
    %v4390 = vadd.f32 %v4388, 1.0
    %v4391 = vadd.f32 %v4389, 1.0
    %v4392 = vmul.f32 %v4340, %v4390
    %v4393 = vmul.f32 %v4341, %v4391
    %v4394 = vmul.f32 %v4392, %v4332
    %v4395 = vmul.f32 %v4393, %v4337
    %v4397 = vsel %vm105, %v4394, 0
    %v4400 = vsel %vm105, %v4395, 0
    %4402 = vmatprep.subr.mxu0 0.0
    %4403 = vmatpush1.msra.mxu0 %v4144
    %4404 = vmatprep.subr.mxu0 0.0
    %4405 = vmatpush1.msra.mxu0 %v4145
    %4406 = vmatprep.subr.mxu0 0.0
    %4407 = vmatpush1.msra.mxu0 %v4146
    %4408 = vmatprep.subr.mxu0 0.0
    %4409 = vmatpush1.msra.mxu0 %v4147
    %4410 = vmatprep.subr.mxu0 0.0
    %4411 = vmatpush1.msra.mxu0 %v4148
    %4412 = vmatprep.subr.mxu0 0.0
    %4413 = vmatpush1.msra.mxu0 %v4149
    %4414 = vmatprep.subr.mxu0 0.0
    %4415 = vmatpush1.msra.mxu0 %v4150
    %4416 = vmatprep.subr.mxu0 0.0
    %4417 = vmatpush1.msra.mxu0 %v4151
    %4418 = vmatprep.subr.mxu0 0.0
    %4419 = vmatpush1.msra.mxu0 0.0
    %4420 = vmatprep.subr.mxu0 0.0
    %4421 = vmatpush1.msra.mxu0 0.0
    %4422 = vmatprep.subr.mxu0 0.0
    %4423 = vmatpush1.msra.mxu0 0.0
    %4424 = vmatprep.subr.mxu0 0.0
    %4425 = vmatpush1.msra.mxu0 0.0
    %4426 = vmatprep.subr.mxu0 0.0
    %4427 = vmatpush1.msra.mxu0 0.0
    %4428 = vmatprep.subr.mxu0 0.0
    %4429 = vmatpush1.msra.mxu0 0.0
    %4430 = vmatprep.subr.mxu0 0.0
    %4431 = vmatpush1.msra.mxu0 0.0
    %4432 = vmatprep.subr.mxu0 0.0
    %4433 = vmatpush1.msra.mxu0 0.0
    %4434 = vmatprep.subr.mxu0 0.0
    %4435 = vmatpush1.msra.mxu0 0.0
    %4436 = vmatprep.subr.mxu0 0.0
    %4437 = vmatpush1.msra.mxu0 0.0
    %4438 = vmatprep.subr.mxu0 0.0
    %4439 = vmatpush1.msra.mxu0 0.0
    %4440 = vmatprep.subr.mxu0 0.0
    %4441 = vmatpush1.msra.mxu0 0.0
    %4442 = vmatprep.subr.mxu0 0.0
    %4443 = vmatpush1.msra.mxu0 0.0
    %4444 = vmatprep.subr.mxu0 0.0
    %4445 = vmatpush1.msra.mxu0 0.0
    %4446 = vmatprep.subr.mxu0 0.0
    %4447 = vmatpush1.msra.mxu0 0.0
    %4448 = vmatprep.subr.mxu0 0.0
    %4449 = vmatpush1.msra.mxu0 0.0
    %4450 = vmatprep.subr.mxu0 0.0
    %4451 = vmatpush1.msra.mxu0 0.0
    %4452 = vmatprep.subr.mxu0 0.0
    %4453 = vmatpush1.msra.mxu0 0.0
    %4454 = vmatprep.subr.mxu0 0.0
    %4455 = vmatpush1.msra.mxu0 0.0
    %4456 = vmatprep.subr.mxu0 0.0
    %4457 = vmatpush1.msra.mxu0 0.0
    %4458 = vmatprep.subr.mxu0 0.0
    %4459 = vmatpush1.msra.mxu0 0.0
    %4460 = vmatprep.subr.mxu0 0.0
    %4461 = vmatpush1.msra.mxu0 0.0
    %4462 = vmatprep.subr.mxu0 0.0
    %4463 = vmatpush1.msra.mxu0 0.0
    %4464 = vmatprep.subr.mxu0 0.0
    %4465 = vmatpush1.msra.mxu0 0.0
    %4466 = vmatprep.mubr.f32.mxu0 0.0
    %4467 = vmatmul.mubr.f32.gmra.mrb[0].mxu0 %v4397
    %v4468 = vpop.f32.mrb[0].mxu0
    %v4469 = vadd.f32 0.0, %v4468
    %v4470 = vpop.f32.mrb[0].mxu0
    %4471 = vmatprep.mubr.f32.mxu0 0.0
    %4472 = vmatmul.mubr.f32.gmra.mrb[0].mxu0 %v4400
    %v4473 = vpop.f32.mrb[0].mxu0
    %v4474 = vadd.f32 0.0, %v4473
    %v4475 = vpop.f32.mrb[0].mxu0
    %4476 = vdwg.mxu0
    %v4477 = vadd.f32 %v4134, %v4469
    %v4478 = vadd.f32 %v4135, %v4474
    %s4479 = scalar_lea.vmem %s5, 32
    %4480 = vst.msk [vmem:[%s4479] sm:$0xff] %vm188, %v4477
    %4481 = vst.msk [vmem:[%s4479 + $0x8] sm:$0xff] %vm188, %v4478
    %v4482 = vld [vmem:[%s3 + $0x45] sm:$0x1]
    %v4483 = vsel %vm188, %v4477, 0.0
    %4484 = vadd.xlane.f32.xlu0 %v4483
    %v4485 = vpop.xlane.xlu0 %4484
    %v4486 = vsel %vm188, %v4478, 0.0
    %4487 = vadd.xlane.f32.xlu0 %v4486
    %v4488 = vpop.xlane.xlu0 %4487
    %v4489 = vmul.f32 %v4485, %v195
    %v4490 = vmul.f32 %v4488, %v195
    %v4491 = vsub.f32 %v4477, %v4489
    %v4492 = vsub.f32 %v4478, %v4490
    %v4493 = vmul.f32 %v4491, %v4491
    %v4494 = vmul.f32 %v4492, %v4492
    %v4495 = vsel %vm188, %v4493, 0.0
    %4496 = vadd.xlane.f32.xlu0 %v4495
    %v4497 = vpop.xlane.xlu0 %4496
    %v4498 = vsel %vm188, %v4494, 0.0
    %4499 = vadd.xlane.f32.xlu0 %v4498
    %v4500 = vpop.xlane.xlu0 %4499
    %v4501 = vmul.f32 %v4497, %v195
    %v4502 = vmul.f32 %v4500, %v195
    %v4503 = vadd.f32 %v4501, 1e-05
    %v4504 = vadd.f32 %v4502, 1e-05
    %v4505 = vrsqrt.pop %v4503
    %v4506 = vrsqrt.pop %v4504
    %v4507 = vmul.f32 %v4491, %v4505
    %v4508 = vmul.f32 %v4492, %v4506
    %v4509 = vlaneseq
    %v4510 = vshrl.u32 %v4509, 7
    %v4511 = vsub.s32 0, %v4510
    %v4512 = vrot.slane %v4482, %v4511
    %v4513 = vmul.f32 %v4507, %v4512
    %v4514 = vmul.f32 %v4508, %v4512
    %s4515 = scalar_lea.vmem %s5, 48
    %4516 = vst.msk [vmem:[%s4515] sm:$0xff] %vm188, %v4513
    %4517 = vst.msk [vmem:[%s4515 + $0x8] sm:$0xff] %vm188, %v4514
    // Predicated region
    $region26: #{midi_modernbert_forward.1} parent=1 // pred_check
      _
    $region27: #{midi_modernbert_forward.1} parent=1 // pred_check_branch
      %4519 = sbr.rel (0) target = $region29
    $region28: #{midi_modernbert_forward.1} parent=1 // pred_region
      _
    $region29: #{midi_modernbert_forward.1} parent=1 // pred_fallthru
      _
    // Predicated region
    $region30: #{midi_modernbert_forward.1} parent=1 // pred_check
      _
    $region31: #{midi_modernbert_forward.1} parent=1 // pred_check_branch
      %4521 = sbr.rel (0) target = $region33
    $region32: #{midi_modernbert_forward.1} parent=1 // pred_region
      _
    $region33: #{midi_modernbert_forward.1} parent=1 // pred_fallthru
      _
    %4522 = vsyncpa [#allocation3], 1

</llo_original>
